<compile_context>
chip_gen: v7x
topology: tpu7x:2x2x1
jax: 0.10.0
libtpu: 0.0.40
codegen_flags: <defaults>
</compile_context>

<pallas_src>
import functools

import jax
import jax.numpy as jnp
from jax.experimental import pallas as pl
from jax.experimental.pallas import tpu as pltpu


# ----------------------------- Pallas kernel --------------------------------


def _drbs_kernel(x_ref, w_in_ref, b_in_ref, wd_ref, bd_ref, w1_ref, b1_ref,
                 w_out_ref, b_out_ref, out_ref, stacked_ref, *,
                 num_stages, num_layers, seg_len, compute_dtype):
  # x_ref block:   (1, Cpad, Lf)        out_ref block: (1, S*Cpad, Lf)
  # w_in_ref:  (S, Fpad, Cpad)          b_in_ref:  (S, Fpad, 1)
  # wd_ref:    (S, NL, Fpad, 3*Fpad)    bd_ref:    (S, NL, Fpad, 1)
  # w1_ref:    (S, NL, Fpad, Fpad)      b1_ref:    (S, NL, Fpad, 1)
  # w_out_ref: (S, Cpad, Fpad)          b_out_ref: (S, Cpad, 1)
  # stacked_ref (scratch): (3*Fpad, Lf)
  x = x_ref[0]                           # (Cpad, Lf)
  Lf = x.shape[1]
  Fpad = w_in_ref.shape[1]

  # Per-layer boundary masks, built once (hoisted out of the unrolled loops).
  # Masks operate on the within-segment lane index so rolls never leak across
  # the length-`seg_len` batch segments folded into the lane axis.
  lane = jax.lax.broadcasted_iota(jnp.int32, (1, Lf), 1) % seg_len
  masks = []
  for l in range(num_layers):
    d = 2 ** l
    masks.append((lane >= d, lane < seg_len - d))

  def mm(w, a):
    return jnp.dot(w.astype(compute_dtype), a.astype(compute_dtype),
                   preferred_element_type=jnp.float32)

  Cpad = w_out_ref.shape[1]
  cur = x
  for s in range(num_stages):
    # DRB.conv_1x1 (bias already shaped (Fpad, 1) -> implicit broadcast).
    h = mm(w_in_ref[s], cur) + b_in_ref[s]                      # (Fpad, Lf)

    # DilatedResidualLayer stack.
    for l in range(num_layers):
      d = 2 ** l
      m_left, m_right = masks[l]
      # x_left[:, t]  = h[:, t-d]  (zero for t < d within each segment)
      # x_right[:, t] = h[:, t+d]  (zero for t >= seg_len-d within each seg.)
      x_left = jnp.where(m_left, pltpu.roll(h, shift=d, axis=1), 0.0)
      x_right = jnp.where(m_right, pltpu.roll(h, shift=Lf - d, axis=1), 0.0)

      # Three 8-aligned slice stores into the persistent VMEM scratch; the
      # fused 3-tap dilated conv is one (Fpad, 3Fpad) @ (3Fpad, Lf) matmul.
      stacked_ref[0:Fpad, :] = x_left
      stacked_ref[Fpad:2 * Fpad, :] = h
      stacked_ref[2 * Fpad:3 * Fpad, :] = x_right

      y = mm(wd_ref[s, l], stacked_ref[...]) + bd_ref[s, l]
      y = jnp.maximum(y, 0.0)                                   # ReLU
      y = mm(w1_ref[s, l], y) + b1_ref[s, l]                    # conv_1x1
      h = h + y                                                 # residual

    # DRB.conv_out -> store directly into the 8-aligned output slice.
    stage_out = mm(w_out_ref[s], h) + b_out_ref[s]              # (Cpad, Lf)
    out_ref[0, s * Cpad:(s + 1) * Cpad, :] = stage_out.astype(out_ref.dtype)
    cur = stage_out                      # next stage consumes this output


# ------------------------------- wrapper -------------------------------------


def _pad_to(a, axis, size):
  pad = [(0, 0)] * a.ndim
  pad[axis] = (0, size - a.shape[axis])
  return jnp.pad(a, pad)


def drbs_forward(x, params, *, num_stages, num_layers, grid_steps=1,
                 compute_dtype=jnp.float32):
  """x: (N, C_in, L) f32 -> (num_stages, N, C_out, L) f32.

  grid_steps: number of grid iterations the folded batch is split over
    (1 for single-TC v5e/v6e; 2 on dual-TC v7x when N is even).
  compute_dtype: dtype of the MXU matmul operands (f32 default; bf16 on
    v6e/v7x for a bf16-native MXU at reduced precision).
  """
  N, C_in, L = x.shape
  w_in, b_in, wd, bd, w1, b1, w_out, b_out = params
  S = num_stages
  NL = num_layers
  F = w_in.shape[1]
  C_out = w_out.shape[1]
  assert C_in == C_out, "stage chaining requires in_channels == out_channels"
  assert N % grid_steps == 0

  # Pad feature / channel dims to the 8-sublane f32 tile so every sublane
  # segment, matmul operand and store is aligned.
  Fp = ((F + 7) // 8) * 8
  Cp = ((C_out + 7) // 8) * 8

  # Host-side weight prep (zero-padded rows/cols stay exactly zero through
  # ReLU / residual, so the pad never contaminates real channels).
  w_in_p = _pad_to(_pad_to(w_in, 1, Fp), 2, Cp)                 # (S, Fp, Cp)
  b_in_p = _pad_to(b_in, 1, Fp)[..., None]                      # (S, Fp, 1)
  # Fuse the 3 dilation taps: (S, NL, 3, Fp, Fp) -> (S, NL, Fp, 3*Fp), block
  # order matching the kernel's stacked activation [x_left; h; x_right].
  wd_p = _pad_to(_pad_to(wd, 3, Fp), 4, Fp)                     # (S,NL,3,Fp,Fp)
  wd_fused = jnp.transpose(wd_p, (0, 1, 3, 2, 4)).reshape(S, NL, Fp, 3 * Fp)
  bd_p = _pad_to(bd, 2, Fp)[..., None]                          # (S, NL, Fp, 1)
  w1_p = _pad_to(_pad_to(w1, 2, Fp), 3, Fp)                     # (S, NL, Fp, Fp)
  b1_p = _pad_to(b1, 2, Fp)[..., None]                          # (S, NL, Fp, 1)
  w_out_p = _pad_to(_pad_to(w_out, 1, Cp), 2, Fp)               # (S, Cp, Fp)
  b_out_p = _pad_to(b_out, 1, Cp)[..., None]                    # (S, Cp, 1)

  # Fold the batch into the lane axis: each grid step processes Nf elements
  # laid out as (Cp, Nf*L) with lane index n_local*L + t.
  Nf = N // grid_steps
  Lf = Nf * L
  x_p = _pad_to(x, 1, Cp)                                       # (N, Cp, L)
  x_folded = (x_p.reshape(grid_steps, Nf, Cp, L)
              .transpose(0, 2, 1, 3)
              .reshape(grid_steps, Cp, Lf))

  kernel = functools.partial(
      _drbs_kernel, num_stages=num_stages, num_layers=num_layers,
      seg_len=L, compute_dtype=compute_dtype)

  weight_spec = pl.BlockSpec(memory_space=pltpu.MemorySpace.VMEM)

  out = pl.pallas_call(
      kernel,
      out_shape=jax.ShapeDtypeStruct((grid_steps, S * Cp, Lf), jnp.float32),
      grid=(grid_steps,),
      in_specs=[
          pl.BlockSpec((1, Cp, Lf), lambda g: (g, 0, 0)),
          weight_spec, weight_spec, weight_spec, weight_spec,
          weight_spec, weight_spec, weight_spec, weight_spec,
      ],
      out_specs=pl.BlockSpec((1, S * Cp, Lf), lambda g: (g, 0, 0)),
      scratch_shapes=[pltpu.VMEM((3 * Fp, Lf), jnp.float32)],
      compiler_params=pltpu.CompilerParams(
          dimension_semantics=("parallel",)),
  )(x_folded, w_in_p, b_in_p, wd_fused, bd_p, w1_p, b1_p, w_out_p, b_out_p)

  # (G, S*Cp, Nf*L) -> (S, N, Cp, L) -> slice off the channel pad.
  out = out.reshape(grid_steps, S, Cp, Nf, L)
  out = jnp.transpose(out, (1, 0, 3, 2, 4)).reshape(S, N, Cp, L)
  return out[:, :, :C_out, :]


# ----------------------- deterministic parameter init ------------------------


def init_params(key, num_stages, num_layers, num_f_maps, in_channels,
                out_channels):
  # NB: stage1 takes in_channels inputs, later stages take out_channels; with
  # the default config they are equal, which lets us stack the stages.
  assert in_channels == out_channels
  F = num_f_maps
  ks = jax.random.split(key, 8)
  scale = 0.1
  w_in = scale * jax.random.normal(ks[0], (num_stages, F, in_channels), jnp.float32)
  b_in = scale * jax.random.normal(ks[1], (num_stages, F), jnp.float32)
  # dilated conv weights, (S, NL, K=3, F, F); tap k corresponds to the PyTorch
  # Conv1d offset (k*dilation - padding) = (-d, 0, +d).
  wd = scale * jax.random.normal(ks[2], (num_stages, num_layers, 3, F, F), jnp.float32)
  bd = scale * jax.random.normal(ks[3], (num_stages, num_layers, F), jnp.float32)
  w1 = scale * jax.random.normal(ks[4], (num_stages, num_layers, F, F), jnp.float32)
  b1 = scale * jax.random.normal(ks[5], (num_stages, num_layers, F), jnp.float32)
  w_out = scale * jax.random.normal(ks[6], (num_stages, out_channels, F), jnp.float32)
  b_out = scale * jax.random.normal(ks[7], (num_stages, out_channels), jnp.float32)
  return (w_in, b_in, wd, bd, w1, b1, w_out, b_out)


# --------------------------- pure-JAX reference -------------------------------


def _conv1d_ref(x, w, b, dilation=1, padding=0):
  # x: (N, C_in, L), w: (C_out, C_in, K) -- PyTorch Conv1d semantics.
  out = jax.lax.conv_general_dilated(
      x, w, window_strides=(1,), padding=[(padding, padding)],
      rhs_dilation=(dilation,), dimension_numbers=("NCH", "OIH", "NCH"))
  return out + b[None, :, None]


def drbs_reference(x, params, *, num_stages, num_layers):
  w_in, b_in, wd, bd, w1, b1, w_out, b_out = params
  outs = []
  cur = x
  for s in range(num_stages):
    h = _conv1d_ref(cur, w_in[s][:, :, None], b_in[s])
    for l in range(num_layers):
      d = 2 ** l
      wk = jnp.transpose(wd[s, l], (1, 2, 0))          # (F, F, 3)
      y = _conv1d_ref(h, wk, bd[s, l], dilation=d, padding=d)
      y = jnp.maximum(y, 0.0)
      y = _conv1d_ref(y, w1[s, l][:, :, None], b1[s, l])
      h = h + y
    cur = _conv1d_ref(h, w_out[s][:, :, None], b_out[s])
    outs.append(cur)
  return jnp.stack(outs, axis=0)


# ----------------------------------- main -------------------------------------


if __name__ == "__main__":
  num_stages, num_layers = 3, 3
  num_f_maps, in_channels, out_channels = 5, 5, 5
  N, L = 2, 256                       # L = H*W (e.g. 16*16)

  key = jax.random.PRNGKey(0)
  k_x, k_p = jax.random.split(key)
  x = jax.random.normal(k_x, (N, in_channels, L), jnp.float32)
  params = init_params(k_p, num_stages, num_layers, num_f_maps,
                       in_channels, out_channels)

  out = drbs_forward(x, params, num_stages=num_stages, num_layers=num_layers,
                     grid_steps=1)
  out = jax.block_until_ready(out)

  ref = drbs_reference(x, params, num_stages=num_stages, num_layers=num_layers)
  assert out.shape == (num_stages, N, out_channels, L), out.shape
  assert jnp.allclose(out, ref, atol=1e-3, rtol=1e-3), float(
      jnp.max(jnp.abs(out - ref)))

  print("KERNEL_OK")
</pallas_src>

<mosaic_0001>
module attributes {stable_mosaic.version = 11 : i64} {
  func.func @_drbs_kernel(%arg0: i32, %arg1: memref<1x8x512xf32, #tpu.memory_space<vmem>>, %arg2: memref<3x8x8xf32, #tpu.memory_space<vmem>>, %arg3: memref<3x8x1xf32, #tpu.memory_space<vmem>>, %arg4: memref<3x3x8x24xf32, #tpu.memory_space<vmem>>, %arg5: memref<3x3x8x1xf32, #tpu.memory_space<vmem>>, %arg6: memref<3x3x8x8xf32, #tpu.memory_space<vmem>>, %arg7: memref<3x3x8x1xf32, #tpu.memory_space<vmem>>, %arg8: memref<3x8x8xf32, #tpu.memory_space<vmem>>, %arg9: memref<3x8x1xf32, #tpu.memory_space<vmem>>, %arg10: memref<1x24x512xf32, #tpu.memory_space<vmem>>, %arg11: memref<24x512xf32, #tpu.memory_space<vmem>>) attributes {dimension_semantics = [#tpu.dimension_semantics<parallel>], iteration_bounds = array<i64: 1>, scalar_prefetch = 0 : i64, scratch_operands = 1 : i64, tpu.core_type = #tpu.core_type<tc>, window_params = [{transform_indices = @transform_0, window_bounds = array<i64: 1, 8, 512>}, {pipeline_mode = #tpu.pipeline_mode<synchronous>, transform_indices = @transform_1, window_bounds = array<i64: 3, 8, 8>}, {pipeline_mode = #tpu.pipeline_mode<synchronous>, transform_indices = @transform_2, window_bounds = array<i64: 3, 8, 1>}, {pipeline_mode = #tpu.pipeline_mode<synchronous>, transform_indices = @transform_3, window_bounds = array<i64: 3, 3, 8, 24>}, {pipeline_mode = #tpu.pipeline_mode<synchronous>, transform_indices = @transform_4, window_bounds = array<i64: 3, 3, 8, 1>}, {pipeline_mode = #tpu.pipeline_mode<synchronous>, transform_indices = @transform_5, window_bounds = array<i64: 3, 3, 8, 8>}, {pipeline_mode = #tpu.pipeline_mode<synchronous>, transform_indices = @transform_6, window_bounds = array<i64: 3, 3, 8, 1>}, {pipeline_mode = #tpu.pipeline_mode<synchronous>, transform_indices = @transform_7, window_bounds = array<i64: 3, 8, 8>}, {pipeline_mode = #tpu.pipeline_mode<synchronous>, transform_indices = @transform_8, window_bounds = array<i64: 3, 8, 1>}, {transform_indices = @transform_9, window_bounds = array<i64: 1, 24, 512>}]} {
    %c0 = arith.constant 0 : index
    %c0_0 = arith.constant 0 : index
    %c0_1 = arith.constant 0 : index
    %0 = vector.load %arg1[%c0, %c0_0, %c0_1] : memref<1x8x512xf32, #tpu.memory_space<vmem>>, vector<1x8x512xf32>
    %1 = vector.shape_cast %0 : vector<1x8x512xf32> to vector<8x512xf32>
    %2 = tpu.iota {dimensions = array<i32: 1>} : vector<1x512xi32>
    %c256_i32 = arith.constant 256 : i32
    %c0_i32 = arith.constant 0 : i32
    %3 = arith.cmpi eq, %c256_i32, %c0_i32 : i32
    %c1_i32 = arith.constant 1 : i32
    %4 = arith.select %3, %c1_i32, %c256_i32 : i32
    %5 = vector.broadcast %4 : i32 to vector<1x512xi32>
    %6 = arith.remsi %2, %5 : vector<1x512xi32>
    %c0_i32_2 = arith.constant 0 : i32
    %7 = vector.broadcast %c0_i32_2 : i32 to vector<1x512xi32>
    %8 = arith.cmpi ne, %6, %7 : vector<1x512xi32>
    %c0_i32_3 = arith.constant 0 : i32
    %9 = vector.broadcast %c0_i32_3 : i32 to vector<1x512xi32>
    %10 = arith.cmpi slt, %6, %9 : vector<1x512xi32>
    %c0_i32_4 = arith.constant 0 : i32
    %11 = arith.cmpi slt, %4, %c0_i32_4 : i32
    %12 = vector.broadcast %11 : i1 to vector<1x512xi1>
    %13 = vector.broadcast %12 : vector<1x512xi1> to vector<1x512xi1>
    %14 = arith.xori %10, %13 : vector<1x512xi1>
    %15 = arith.andi %14, %8 : vector<1x512xi1>
    %16 = vector.broadcast %4 : i32 to vector<1x512xi32>
    %17 = arith.addi %6, %16 : vector<1x512xi32>
    %18 = arith.select %15, %17, %6 : vector<1x512xi1>, vector<1x512xi32>
    %c1_i32_5 = arith.constant 1 : i32
    %19 = vector.broadcast %c1_i32_5 : i32 to vector<1x512xi32>
    %20 = arith.cmpi sge, %18, %19 : vector<1x512xi32>
    %c255_i32 = arith.constant 255 : i32
    %21 = vector.broadcast %c255_i32 : i32 to vector<1x512xi32>
    %22 = arith.cmpi slt, %18, %21 : vector<1x512xi32>
    %c2_i32 = arith.constant 2 : i32
    %23 = vector.broadcast %c2_i32 : i32 to vector<1x512xi32>
    %24 = arith.cmpi sge, %18, %23 : vector<1x512xi32>
    %c254_i32 = arith.constant 254 : i32
    %25 = vector.broadcast %c254_i32 : i32 to vector<1x512xi32>
    %26 = arith.cmpi slt, %18, %25 : vector<1x512xi32>
    %c4_i32 = arith.constant 4 : i32
    %27 = vector.broadcast %c4_i32 : i32 to vector<1x512xi32>
    %28 = arith.cmpi sge, %18, %27 : vector<1x512xi32>
    %c252_i32 = arith.constant 252 : i32
    %29 = vector.broadcast %c252_i32 : i32 to vector<1x512xi32>
    %30 = arith.cmpi slt, %18, %29 : vector<1x512xi32>
    %c0_6 = arith.constant 0 : index
    %c0_7 = arith.constant 0 : index
    %c0_8 = arith.constant 0 : index
    %31 = vector.load %arg2[%c0_6, %c0_7, %c0_8] : memref<3x8x8xf32, #tpu.memory_space<vmem>>, vector<1x8x8xf32>
    %32 = vector.shape_cast %31 : vector<1x8x8xf32> to vector<8x8xf32>
    %cst = arith.constant dense<0.000000e+00> : vector<8x512xf32>
    %33 = tpu.matmul %32, %1, %cst {dimension_numbers = #tpu.dot_dimension_numbers<[1], [0], [0], [1], [0, 0, 1, 1], [], []>} : vector<8x8xf32>, vector<8x512xf32>, vector<8x512xf32> -> vector<8x512xf32>
    %c0_9 = arith.constant 0 : index
    %c0_10 = arith.constant 0 : index
    %c0_11 = arith.constant 0 : index
    %34 = vector.load %arg3[%c0_9, %c0_10, %c0_11] : memref<3x8x1xf32, #tpu.memory_space<vmem>>, vector<1x8x1xf32>
    %35 = vector.shape_cast %34 : vector<1x8x1xf32> to vector<8x1xf32>
    %36 = vector.broadcast %35 : vector<8x1xf32> to vector<8x512xf32>
    %37 = arith.addf %33, %36 : vector<8x512xf32>
    %c1_i32_12 = arith.constant 1 : i32
    %38 = tpu.dynamic_rotate %37 by %c1_i32_12 dim 1 : vector<8x512xf32>, i32 -> vector<8x512xf32>
    %cst_13 = arith.constant 0.000000e+00 : f32
    %39 = vector.shape_cast %20 : vector<1x512xi1> to vector<1x512xi1>
    %40 = vector.broadcast %39 : vector<1x512xi1> to vector<8x512xi1>
    %41 = vector.broadcast %cst_13 : f32 to vector<8x512xf32>
    %42 = arith.select %40, %38, %41 : vector<8x512xi1>, vector<8x512xf32>
    %c511_i32 = arith.constant 511 : i32
    %43 = tpu.dynamic_rotate %37 by %c511_i32 dim 1 : vector<8x512xf32>, i32 -> vector<8x512xf32>
    %cst_14 = arith.constant 0.000000e+00 : f32
    %44 = vector.shape_cast %22 : vector<1x512xi1> to vector<1x512xi1>
    %45 = vector.broadcast %44 : vector<1x512xi1> to vector<8x512xi1>
    %46 = vector.broadcast %cst_14 : f32 to vector<8x512xf32>
    %47 = arith.select %45, %43, %46 : vector<8x512xi1>, vector<8x512xf32>
    %c0_15 = arith.constant 0 : index
    %c0_16 = arith.constant 0 : index
    %48 = vector.load %arg11[%c0_15, %c0_16] : memref<24x512xf32, #tpu.memory_space<vmem>>, vector<8x512xf32>
    tpu.vector_store %arg11[%c0_15, %c0_16], %42 {strides = array<i32>} : memref<24x512xf32, #tpu.memory_space<vmem>>, vector<8x512xf32>,
    %c8 = arith.constant 8 : index
    %c0_17 = arith.constant 0 : index
    %49 = vector.load %arg11[%c8, %c0_17] : memref<24x512xf32, #tpu.memory_space<vmem>>, vector<8x512xf32>
    tpu.vector_store %arg11[%c8, %c0_17], %37 {strides = array<i32>} : memref<24x512xf32, #tpu.memory_space<vmem>>, vector<8x512xf32>,
    %c16 = arith.constant 16 : index
    %c0_18 = arith.constant 0 : index
    %50 = vector.load %arg11[%c16, %c0_18] : memref<24x512xf32, #tpu.memory_space<vmem>>, vector<8x512xf32>
    tpu.vector_store %arg11[%c16, %c0_18], %47 {strides = array<i32>} : memref<24x512xf32, #tpu.memory_space<vmem>>, vector<8x512xf32>,
    %c0_19 = arith.constant 0 : index
    %c0_20 = arith.constant 0 : index
    %c0_21 = arith.constant 0 : index
    %c0_22 = arith.constant 0 : index
    %51 = vector.load %arg4[%c0_19, %c0_20, %c0_21, %c0_22] : memref<3x3x8x24xf32, #tpu.memory_space<vmem>>, vector<1x1x8x24xf32>
    %52 = vector.shape_cast %51 : vector<1x1x8x24xf32> to vector<8x24xf32>
    %c0_23 = arith.constant 0 : index
    %c0_24 = arith.constant 0 : index
    %53 = vector.load %arg11[%c0_23, %c0_24] : memref<24x512xf32, #tpu.memory_space<vmem>>, vector<24x512xf32>
    %cst_25 = arith.constant dense<0.000000e+00> : vector<8x512xf32>
    %54 = tpu.matmul %52, %53, %cst_25 {dimension_numbers = #tpu.dot_dimension_numbers<[1], [0], [0], [1], [0, 0, 1, 1], [], []>} : vector<8x24xf32>, vector<24x512xf32>, vector<8x512xf32> -> vector<8x512xf32>
    %c0_26 = arith.constant 0 : index
    %c0_27 = arith.constant 0 : index
    %c0_28 = arith.constant 0 : index
    %c0_29 = arith.constant 0 : index
    %55 = vector.load %arg5[%c0_26, %c0_27, %c0_28, %c0_29] : memref<3x3x8x1xf32, #tpu.memory_space<vmem>>, vector<1x1x8x1xf32>
    %56 = vector.shape_cast %55 : vector<1x1x8x1xf32> to vector<8x1xf32>
    %57 = vector.broadcast %56 : vector<8x1xf32> to vector<8x512xf32>
    %58 = arith.addf %54, %57 : vector<8x512xf32>
    %cst_30 = arith.constant 0.000000e+00 : f32
    %59 = vector.broadcast %cst_30 : f32 to vector<8x512xf32>
    %60 = arith.maximumf %58, %59 : vector<8x512xf32>
    %c0_31 = arith.constant 0 : index
    %c0_32 = arith.constant 0 : index
    %c0_33 = arith.constant 0 : index
    %c0_34 = arith.constant 0 : index
    %61 = vector.load %arg6[%c0_31, %c0_32, %c0_33, %c0_34] : memref<3x3x8x8xf32, #tpu.memory_space<vmem>>, vector<1x1x8x8xf32>
    %62 = vector.shape_cast %61 : vector<1x1x8x8xf32> to vector<8x8xf32>
    %cst_35 = arith.constant dense<0.000000e+00> : vector<8x512xf32>
    %63 = tpu.matmul %62, %60, %cst_35 {dimension_numbers = #tpu.dot_dimension_numbers<[1], [0], [0], [1], [0, 0, 1, 1], [], []>} : vector<8x8xf32>, vector<8x512xf32>, vector<8x512xf32> -> vector<8x512xf32>
    %c0_36 = arith.constant 0 : index
    %c0_37 = arith.constant 0 : index
    %c0_38 = arith.constant 0 : index
    %c0_39 = arith.constant 0 : index
    %64 = vector.load %arg7[%c0_36, %c0_37, %c0_38, %c0_39] : memref<3x3x8x1xf32, #tpu.memory_space<vmem>>, vector<1x1x8x1xf32>
    %65 = vector.shape_cast %64 : vector<1x1x8x1xf32> to vector<8x1xf32>
    %66 = vector.broadcast %65 : vector<8x1xf32> to vector<8x512xf32>
    %67 = arith.addf %63, %66 : vector<8x512xf32>
    %68 = arith.addf %37, %67 : vector<8x512xf32>
    %c2_i32_40 = arith.constant 2 : i32
    %69 = tpu.dynamic_rotate %68 by %c2_i32_40 dim 1 : vector<8x512xf32>, i32 -> vector<8x512xf32>
    %cst_41 = arith.constant 0.000000e+00 : f32
    %70 = vector.shape_cast %24 : vector<1x512xi1> to vector<1x512xi1>
    %71 = vector.broadcast %70 : vector<1x512xi1> to vector<8x512xi1>
    %72 = vector.broadcast %cst_41 : f32 to vector<8x512xf32>
    %73 = arith.select %71, %69, %72 : vector<8x512xi1>, vector<8x512xf32>
    %c510_i32 = arith.constant 510 : i32
    %74 = tpu.dynamic_rotate %68 by %c510_i32 dim 1 : vector<8x512xf32>, i32 -> vector<8x512xf32>
    %cst_42 = arith.constant 0.000000e+00 : f32
    %75 = vector.shape_cast %26 : vector<1x512xi1> to vector<1x512xi1>
    %76 = vector.broadcast %75 : vector<1x512xi1> to vector<8x512xi1>
    %77 = vector.broadcast %cst_42 : f32 to vector<8x512xf32>
    %78 = arith.select %76, %74, %77 : vector<8x512xi1>, vector<8x512xf32>
    %c0_43 = arith.constant 0 : index
    %c0_44 = arith.constant 0 : index
    %79 = vector.load %arg11[%c0_43, %c0_44] : memref<24x512xf32, #tpu.memory_space<vmem>>, vector<8x512xf32>
    tpu.vector_store %arg11[%c0_43, %c0_44], %73 {strides = array<i32>} : memref<24x512xf32, #tpu.memory_space<vmem>>, vector<8x512xf32>,
    %c8_45 = arith.constant 8 : index
    %c0_46 = arith.constant 0 : index
    %80 = vector.load %arg11[%c8_45, %c0_46] : memref<24x512xf32, #tpu.memory_space<vmem>>, vector<8x512xf32>
    tpu.vector_store %arg11[%c8_45, %c0_46], %68 {strides = array<i32>} : memref<24x512xf32, #tpu.memory_space<vmem>>, vector<8x512xf32>,
    %c16_47 = arith.constant 16 : index
    %c0_48 = arith.constant 0 : index
    %81 = vector.load %arg11[%c16_47, %c0_48] : memref<24x512xf32, #tpu.memory_space<vmem>>, vector<8x512xf32>
    tpu.vector_store %arg11[%c16_47, %c0_48], %78 {strides = array<i32>} : memref<24x512xf32, #tpu.memory_space<vmem>>, vector<8x512xf32>,
    %c0_49 = arith.constant 0 : index
    %c1 = arith.constant 1 : index
    %c0_50 = arith.constant 0 : index
    %c0_51 = arith.constant 0 : index
    %82 = vector.load %arg4[%c0_49, %c1, %c0_50, %c0_51] : memref<3x3x8x24xf32, #tpu.memory_space<vmem>>, vector<1x1x8x24xf32>
    %83 = vector.shape_cast %82 : vector<1x1x8x24xf32> to vector<8x24xf32>
    %c0_52 = arith.constant 0 : index
    %c0_53 = arith.constant 0 : index
    %84 = vector.load %arg11[%c0_52, %c0_53] : memref<24x512xf32, #tpu.memory_space<vmem>>, vector<24x512xf32>
    %cst_54 = arith.constant dense<0.000000e+00> : vector<8x512xf32>
    %85 = tpu.matmul %83, %84, %cst_54 {dimension_numbers = #tpu.dot_dimension_numbers<[1], [0], [0], [1], [0, 0, 1, 1], [], []>} : vector<8x24xf32>, vector<24x512xf32>, vector<8x512xf32> -> vector<8x512xf32>
    %c0_55 = arith.constant 0 : index
    %c1_56 = arith.constant 1 : index
    %c0_57 = arith.constant 0 : index
    %c0_58 = arith.constant 0 : index
    %86 = vector.load %arg5[%c0_55, %c1_56, %c0_57, %c0_58] : memref<3x3x8x1xf32, #tpu.memory_space<vmem>>, vector<1x1x8x1xf32>
    %87 = vector.shape_cast %86 : vector<1x1x8x1xf32> to vector<8x1xf32>
    %88 = vector.broadcast %87 : vector<8x1xf32> to vector<8x512xf32>
    %89 = arith.addf %85, %88 : vector<8x512xf32>
    %cst_59 = arith.constant 0.000000e+00 : f32
    %90 = vector.broadcast %cst_59 : f32 to vector<8x512xf32>
    %91 = arith.maximumf %89, %90 : vector<8x512xf32>
    %c0_60 = arith.constant 0 : index
    %c1_61 = arith.constant 1 : index
    %c0_62 = arith.constant 0 : index
    %c0_63 = arith.constant 0 : index
    %92 = vector.load %arg6[%c0_60, %c1_61, %c0_62, %c0_63] : memref<3x3x8x8xf32, #tpu.memory_space<vmem>>, vector<1x1x8x8xf32>
    %93 = vector.shape_cast %92 : vector<1x1x8x8xf32> to vector<8x8xf32>
    %cst_64 = arith.constant dense<0.000000e+00> : vector<8x512xf32>
    %94 = tpu.matmul %93, %91, %cst_64 {dimension_numbers = #tpu.dot_dimension_numbers<[1], [0], [0], [1], [0, 0, 1, 1], [], []>} : vector<8x8xf32>, vector<8x512xf32>, vector<8x512xf32> -> vector<8x512xf32>
    %c0_65 = arith.constant 0 : index
    %c1_66 = arith.constant 1 : index
    %c0_67 = arith.constant 0 : index
    %c0_68 = arith.constant 0 : index
    %95 = vector.load %arg7[%c0_65, %c1_66, %c0_67, %c0_68] : memref<3x3x8x1xf32, #tpu.memory_space<vmem>>, vector<1x1x8x1xf32>
    %96 = vector.shape_cast %95 : vector<1x1x8x1xf32> to vector<8x1xf32>
    %97 = vector.broadcast %96 : vector<8x1xf32> to vector<8x512xf32>
    %98 = arith.addf %94, %97 : vector<8x512xf32>
    %99 = arith.addf %68, %98 : vector<8x512xf32>
    %c4_i32_69 = arith.constant 4 : i32
    %100 = tpu.dynamic_rotate %99 by %c4_i32_69 dim 1 : vector<8x512xf32>, i32 -> vector<8x512xf32>
    %cst_70 = arith.constant 0.000000e+00 : f32
    %101 = vector.shape_cast %28 : vector<1x512xi1> to vector<1x512xi1>
    %102 = vector.broadcast %101 : vector<1x512xi1> to vector<8x512xi1>
    %103 = vector.broadcast %cst_70 : f32 to vector<8x512xf32>
    %104 = arith.select %102, %100, %103 : vector<8x512xi1>, vector<8x512xf32>
    %c508_i32 = arith.constant 508 : i32
    %105 = tpu.dynamic_rotate %99 by %c508_i32 dim 1 : vector<8x512xf32>, i32 -> vector<8x512xf32>
    %cst_71 = arith.constant 0.000000e+00 : f32
    %106 = vector.shape_cast %30 : vector<1x512xi1> to vector<1x512xi1>
    %107 = vector.broadcast %106 : vector<1x512xi1> to vector<8x512xi1>
    %108 = vector.broadcast %cst_71 : f32 to vector<8x512xf32>
    %109 = arith.select %107, %105, %108 : vector<8x512xi1>, vector<8x512xf32>
    %c0_72 = arith.constant 0 : index
    %c0_73 = arith.constant 0 : index
    %110 = vector.load %arg11[%c0_72, %c0_73] : memref<24x512xf32, #tpu.memory_space<vmem>>, vector<8x512xf32>
    tpu.vector_store %arg11[%c0_72, %c0_73], %104 {strides = array<i32>} : memref<24x512xf32, #tpu.memory_space<vmem>>, vector<8x512xf32>,
    %c8_74 = arith.constant 8 : index
    %c0_75 = arith.constant 0 : index
    %111 = vector.load %arg11[%c8_74, %c0_75] : memref<24x512xf32, #tpu.memory_space<vmem>>, vector<8x512xf32>
    tpu.vector_store %arg11[%c8_74, %c0_75], %99 {strides = array<i32>} : memref<24x512xf32, #tpu.memory_space<vmem>>, vector<8x512xf32>,
    %c16_76 = arith.constant 16 : index
    %c0_77 = arith.constant 0 : index
    %112 = vector.load %arg11[%c16_76, %c0_77] : memref<24x512xf32, #tpu.memory_space<vmem>>, vector<8x512xf32>
    tpu.vector_store %arg11[%c16_76, %c0_77], %109 {strides = array<i32>} : memref<24x512xf32, #tpu.memory_space<vmem>>, vector<8x512xf32>,
    %c0_78 = arith.constant 0 : index
    %c2 = arith.constant 2 : index
    %c0_79 = arith.constant 0 : index
    %c0_80 = arith.constant 0 : index
    %113 = vector.load %arg4[%c0_78, %c2, %c0_79, %c0_80] : memref<3x3x8x24xf32, #tpu.memory_space<vmem>>, vector<1x1x8x24xf32>
    %114 = vector.shape_cast %113 : vector<1x1x8x24xf32> to vector<8x24xf32>
    %c0_81 = arith.constant 0 : index
    %c0_82 = arith.constant 0 : index
    %115 = vector.load %arg11[%c0_81, %c0_82] : memref<24x512xf32, #tpu.memory_space<vmem>>, vector<24x512xf32>
    %cst_83 = arith.constant dense<0.000000e+00> : vector<8x512xf32>
    %116 = tpu.matmul %114, %115, %cst_83 {dimension_numbers = #tpu.dot_dimension_numbers<[1], [0], [0], [1], [0, 0, 1, 1], [], []>} : vector<8x24xf32>, vector<24x512xf32>, vector<8x512xf32> -> vector<8x512xf32>
    %c0_84 = arith.constant 0 : index
    %c2_85 = arith.constant 2 : index
    %c0_86 = arith.constant 0 : index
    %c0_87 = arith.constant 0 : index
    %117 = vector.load %arg5[%c0_84, %c2_85, %c0_86, %c0_87] : memref<3x3x8x1xf32, #tpu.memory_space<vmem>>, vector<1x1x8x1xf32>
    %118 = vector.shape_cast %117 : vector<1x1x8x1xf32> to vector<8x1xf32>
    %119 = vector.broadcast %118 : vector<8x1xf32> to vector<8x512xf32>
    %120 = arith.addf %116, %119 : vector<8x512xf32>
    %cst_88 = arith.constant 0.000000e+00 : f32
    %121 = vector.broadcast %cst_88 : f32 to vector<8x512xf32>
    %122 = arith.maximumf %120, %121 : vector<8x512xf32>
    %c0_89 = arith.constant 0 : index
    %c2_90 = arith.constant 2 : index
    %c0_91 = arith.constant 0 : index
    %c0_92 = arith.constant 0 : index
    %123 = vector.load %arg6[%c0_89, %c2_90, %c0_91, %c0_92] : memref<3x3x8x8xf32, #tpu.memory_space<vmem>>, vector<1x1x8x8xf32>
    %124 = vector.shape_cast %123 : vector<1x1x8x8xf32> to vector<8x8xf32>
    %cst_93 = arith.constant dense<0.000000e+00> : vector<8x512xf32>
    %125 = tpu.matmul %124, %122, %cst_93 {dimension_numbers = #tpu.dot_dimension_numbers<[1], [0], [0], [1], [0, 0, 1, 1], [], []>} : vector<8x8xf32>, vector<8x512xf32>, vector<8x512xf32> -> vector<8x512xf32>
    %c0_94 = arith.constant 0 : index
    %c2_95 = arith.constant 2 : index
    %c0_96 = arith.constant 0 : index
    %c0_97 = arith.constant 0 : index
    %126 = vector.load %arg7[%c0_94, %c2_95, %c0_96, %c0_97] : memref<3x3x8x1xf32, #tpu.memory_space<vmem>>, vector<1x1x8x1xf32>
    %127 = vector.shape_cast %126 : vector<1x1x8x1xf32> to vector<8x1xf32>
    %128 = vector.broadcast %127 : vector<8x1xf32> to vector<8x512xf32>
    %129 = arith.addf %125, %128 : vector<8x512xf32>
    %130 = arith.addf %99, %129 : vector<8x512xf32>
    %c0_98 = arith.constant 0 : index
    %c0_99 = arith.constant 0 : index
    %c0_100 = arith.constant 0 : index
    %131 = vector.load %arg8[%c0_98, %c0_99, %c0_100] : memref<3x8x8xf32, #tpu.memory_space<vmem>>, vector<1x8x8xf32>
    %132 = vector.shape_cast %131 : vector<1x8x8xf32> to vector<8x8xf32>
    %cst_101 = arith.constant dense<0.000000e+00> : vector<8x512xf32>
    %133 = tpu.matmul %132, %130, %cst_101 {dimension_numbers = #tpu.dot_dimension_numbers<[1], [0], [0], [1], [0, 0, 1, 1], [], []>} : vector<8x8xf32>, vector<8x512xf32>, vector<8x512xf32> -> vector<8x512xf32>
    %c0_102 = arith.constant 0 : index
    %c0_103 = arith.constant 0 : index
    %c0_104 = arith.constant 0 : index
    %134 = vector.load %arg9[%c0_102, %c0_103, %c0_104] : memref<3x8x1xf32, #tpu.memory_space<vmem>>, vector<1x8x1xf32>
    %135 = vector.shape_cast %134 : vector<1x8x1xf32> to vector<8x1xf32>
    %136 = vector.broadcast %135 : vector<8x1xf32> to vector<8x512xf32>
    %137 = arith.addf %133, %136 : vector<8x512xf32>
    %c0_105 = arith.constant 0 : index
    %c0_106 = arith.constant 0 : index
    %c0_107 = arith.constant 0 : index
    %138 = vector.load %arg10[%c0_105, %c0_106, %c0_107] : memref<1x24x512xf32, #tpu.memory_space<vmem>>, vector<1x8x512xf32>
    %139 = vector.shape_cast %138 : vector<1x8x512xf32> to vector<8x512xf32>
    %140 = vector.shape_cast %137 : vector<8x512xf32> to vector<1x8x512xf32>
    tpu.vector_store %arg10[%c0_105, %c0_106, %c0_107], %140 {strides = array<i32>} : memref<1x24x512xf32, #tpu.memory_space<vmem>>, vector<1x8x512xf32>,
    %c1_108 = arith.constant 1 : index
    %c0_109 = arith.constant 0 : index
    %c0_110 = arith.constant 0 : index
    %141 = vector.load %arg2[%c1_108, %c0_109, %c0_110] : memref<3x8x8xf32, #tpu.memory_space<vmem>>, vector<1x8x8xf32>
    %142 = vector.shape_cast %141 : vector<1x8x8xf32> to vector<8x8xf32>
    %cst_111 = arith.constant dense<0.000000e+00> : vector<8x512xf32>
    %143 = tpu.matmul %142, %137, %cst_111 {dimension_numbers = #tpu.dot_dimension_numbers<[1], [0], [0], [1], [0, 0, 1, 1], [], []>} : vector<8x8xf32>, vector<8x512xf32>, vector<8x512xf32> -> vector<8x512xf32>
    %c1_112 = arith.constant 1 : index
    %c0_113 = arith.constant 0 : index
    %c0_114 = arith.constant 0 : index
    %144 = vector.load %arg3[%c1_112, %c0_113, %c0_114] : memref<3x8x1xf32, #tpu.memory_space<vmem>>, vector<1x8x1xf32>
    %145 = vector.shape_cast %144 : vector<1x8x1xf32> to vector<8x1xf32>
    %146 = vector.broadcast %145 : vector<8x1xf32> to vector<8x512xf32>
    %147 = arith.addf %143, %146 : vector<8x512xf32>
    %c1_i32_115 = arith.constant 1 : i32
    %148 = tpu.dynamic_rotate %147 by %c1_i32_115 dim 1 : vector<8x512xf32>, i32 -> vector<8x512xf32>
    %cst_116 = arith.constant 0.000000e+00 : f32
    %149 = vector.shape_cast %20 : vector<1x512xi1> to vector<1x512xi1>
    %150 = vector.broadcast %149 : vector<1x512xi1> to vector<8x512xi1>
    %151 = vector.broadcast %cst_116 : f32 to vector<8x512xf32>
    %152 = arith.select %150, %148, %151 : vector<8x512xi1>, vector<8x512xf32>
    %c511_i32_117 = arith.constant 511 : i32
    %153 = tpu.dynamic_rotate %147 by %c511_i32_117 dim 1 : vector<8x512xf32>, i32 -> vector<8x512xf32>
    %cst_118 = arith.constant 0.000000e+00 : f32
    %154 = vector.shape_cast %22 : vector<1x512xi1> to vector<1x512xi1>
    %155 = vector.broadcast %154 : vector<1x512xi1> to vector<8x512xi1>
    %156 = vector.broadcast %cst_118 : f32 to vector<8x512xf32>
    %157 = arith.select %155, %153, %156 : vector<8x512xi1>, vector<8x512xf32>
    %c0_119 = arith.constant 0 : index
    %c0_120 = arith.constant 0 : index
    %158 = vector.load %arg11[%c0_119, %c0_120] : memref<24x512xf32, #tpu.memory_space<vmem>>, vector<8x512xf32>
    tpu.vector_store %arg11[%c0_119, %c0_120], %152 {strides = array<i32>} : memref<24x512xf32, #tpu.memory_space<vmem>>, vector<8x512xf32>,
    %c8_121 = arith.constant 8 : index
    %c0_122 = arith.constant 0 : index
    %159 = vector.load %arg11[%c8_121, %c0_122] : memref<24x512xf32, #tpu.memory_space<vmem>>, vector<8x512xf32>
    tpu.vector_store %arg11[%c8_121, %c0_122], %147 {strides = array<i32>} : memref<24x512xf32, #tpu.memory_space<vmem>>, vector<8x512xf32>,
    %c16_123 = arith.constant 16 : index
    %c0_124 = arith.constant 0 : index
    %160 = vector.load %arg11[%c16_123, %c0_124] : memref<24x512xf32, #tpu.memory_space<vmem>>, vector<8x512xf32>
    tpu.vector_store %arg11[%c16_123, %c0_124], %157 {strides = array<i32>} : memref<24x512xf32, #tpu.memory_space<vmem>>, vector<8x512xf32>,
    %c1_125 = arith.constant 1 : index
    %c0_126 = arith.constant 0 : index
    %c0_127 = arith.constant 0 : index
    %c0_128 = arith.constant 0 : index
    %161 = vector.load %arg4[%c1_125, %c0_126, %c0_127, %c0_128] : memref<3x3x8x24xf32, #tpu.memory_space<vmem>>, vector<1x1x8x24xf32>
    %162 = vector.shape_cast %161 : vector<1x1x8x24xf32> to vector<8x24xf32>
    %c0_129 = arith.constant 0 : index
    %c0_130 = arith.constant 0 : index
    %163 = vector.load %arg11[%c0_129, %c0_130] : memref<24x512xf32, #tpu.memory_space<vmem>>, vector<24x512xf32>
    %cst_131 = arith.constant dense<0.000000e+00> : vector<8x512xf32>
    %164 = tpu.matmul %162, %163, %cst_131 {dimension_numbers = #tpu.dot_dimension_numbers<[1], [0], [0], [1], [0, 0, 1, 1], [], []>} : vector<8x24xf32>, vector<24x512xf32>, vector<8x512xf32> -> vector<8x512xf32>
    %c1_132 = arith.constant 1 : index
    %c0_133 = arith.constant 0 : index
    %c0_134 = arith.constant 0 : index
    %c0_135 = arith.constant 0 : index
    %165 = vector.load %arg5[%c1_132, %c0_133, %c0_134, %c0_135] : memref<3x3x8x1xf32, #tpu.memory_space<vmem>>, vector<1x1x8x1xf32>
    %166 = vector.shape_cast %165 : vector<1x1x8x1xf32> to vector<8x1xf32>
    %167 = vector.broadcast %166 : vector<8x1xf32> to vector<8x512xf32>
    %168 = arith.addf %164, %167 : vector<8x512xf32>
    %cst_136 = arith.constant 0.000000e+00 : f32
    %169 = vector.broadcast %cst_136 : f32 to vector<8x512xf32>
    %170 = arith.maximumf %168, %169 : vector<8x512xf32>
    %c1_137 = arith.constant 1 : index
    %c0_138 = arith.constant 0 : index
    %c0_139 = arith.constant 0 : index
    %c0_140 = arith.constant 0 : index
    %171 = vector.load %arg6[%c1_137, %c0_138, %c0_139, %c0_140] : memref<3x3x8x8xf32, #tpu.memory_space<vmem>>, vector<1x1x8x8xf32>
    %172 = vector.shape_cast %171 : vector<1x1x8x8xf32> to vector<8x8xf32>
    %cst_141 = arith.constant dense<0.000000e+00> : vector<8x512xf32>
    %173 = tpu.matmul %172, %170, %cst_141 {dimension_numbers = #tpu.dot_dimension_numbers<[1], [0], [0], [1], [0, 0, 1, 1], [], []>} : vector<8x8xf32>, vector<8x512xf32>, vector<8x512xf32> -> vector<8x512xf32>
    %c1_142 = arith.constant 1 : index
    %c0_143 = arith.constant 0 : index
    %c0_144 = arith.constant 0 : index
    %c0_145 = arith.constant 0 : index
    %174 = vector.load %arg7[%c1_142, %c0_143, %c0_144, %c0_145] : memref<3x3x8x1xf32, #tpu.memory_space<vmem>>, vector<1x1x8x1xf32>
    %175 = vector.shape_cast %174 : vector<1x1x8x1xf32> to vector<8x1xf32>
    %176 = vector.broadcast %175 : vector<8x1xf32> to vector<8x512xf32>
    %177 = arith.addf %173, %176 : vector<8x512xf32>
    %178 = arith.addf %147, %177 : vector<8x512xf32>
    %c2_i32_146 = arith.constant 2 : i32
    %179 = tpu.dynamic_rotate %178 by %c2_i32_146 dim 1 : vector<8x512xf32>, i32 -> vector<8x512xf32>
    %cst_147 = arith.constant 0.000000e+00 : f32
    %180 = vector.shape_cast %24 : vector<1x512xi1> to vector<1x512xi1>
    %181 = vector.broadcast %180 : vector<1x512xi1> to vector<8x512xi1>
    %182 = vector.broadcast %cst_147 : f32 to vector<8x512xf32>
    %183 = arith.select %181, %179, %182 : vector<8x512xi1>, vector<8x512xf32>
    %c510_i32_148 = arith.constant 510 : i32
    %184 = tpu.dynamic_rotate %178 by %c510_i32_148 dim 1 : vector<8x512xf32>, i32 -> vector<8x512xf32>
    %cst_149 = arith.constant 0.000000e+00 : f32
    %185 = vector.shape_cast %26 : vector<1x512xi1> to vector<1x512xi1>
    %186 = vector.broadcast %185 : vector<1x512xi1> to vector<8x512xi1>
    %187 = vector.broadcast %cst_149 : f32 to vector<8x512xf32>
    %188 = arith.select %186, %184, %187 : vector<8x512xi1>, vector<8x512xf32>
    %c0_150 = arith.constant 0 : index
    %c0_151 = arith.constant 0 : index
    %189 = vector.load %arg11[%c0_150, %c0_151] : memref<24x512xf32, #tpu.memory_space<vmem>>, vector<8x512xf32>
    tpu.vector_store %arg11[%c0_150, %c0_151], %183 {strides = array<i32>} : memref<24x512xf32, #tpu.memory_space<vmem>>, vector<8x512xf32>,
    %c8_152 = arith.constant 8 : index
    %c0_153 = arith.constant 0 : index
    %190 = vector.load %arg11[%c8_152, %c0_153] : memref<24x512xf32, #tpu.memory_space<vmem>>, vector<8x512xf32>
    tpu.vector_store %arg11[%c8_152, %c0_153], %178 {strides = array<i32>} : memref<24x512xf32, #tpu.memory_space<vmem>>, vector<8x512xf32>,
    %c16_154 = arith.constant 16 : index
    %c0_155 = arith.constant 0 : index
    %191 = vector.load %arg11[%c16_154, %c0_155] : memref<24x512xf32, #tpu.memory_space<vmem>>, vector<8x512xf32>
    tpu.vector_store %arg11[%c16_154, %c0_155], %188 {strides = array<i32>} : memref<24x512xf32, #tpu.memory_space<vmem>>, vector<8x512xf32>,
    %c1_156 = arith.constant 1 : index
    %c1_157 = arith.constant 1 : index
    %c0_158 = arith.constant 0 : index
    %c0_159 = arith.constant 0 : index
    %192 = vector.load %arg4[%c1_156, %c1_157, %c0_158, %c0_159] : memref<3x3x8x24xf32, #tpu.memory_space<vmem>>, vector<1x1x8x24xf32>
    %193 = vector.shape_cast %192 : vector<1x1x8x24xf32> to vector<8x24xf32>
    %c0_160 = arith.constant 0 : index
    %c0_161 = arith.constant 0 : index
    %194 = vector.load %arg11[%c0_160, %c0_161] : memref<24x512xf32, #tpu.memory_space<vmem>>, vector<24x512xf32>
    %cst_162 = arith.constant dense<0.000000e+00> : vector<8x512xf32>
    %195 = tpu.matmul %193, %194, %cst_162 {dimension_numbers = #tpu.dot_dimension_numbers<[1], [0], [0], [1], [0, 0, 1, 1], [], []>} : vector<8x24xf32>, vector<24x512xf32>, vector<8x512xf32> -> vector<8x512xf32>
    %c1_163 = arith.constant 1 : index
    %c1_164 = arith.constant 1 : index
    %c0_165 = arith.constant 0 : index
    %c0_166 = arith.constant 0 : index
    %196 = vector.load %arg5[%c1_163, %c1_164, %c0_165, %c0_166] : memref<3x3x8x1xf32, #tpu.memory_space<vmem>>, vector<1x1x8x1xf32>
    %197 = vector.shape_cast %196 : vector<1x1x8x1xf32> to vector<8x1xf32>
    %198 = vector.broadcast %197 : vector<8x1xf32> to vector<8x512xf32>
    %199 = arith.addf %195, %198 : vector<8x512xf32>
    %cst_167 = arith.constant 0.000000e+00 : f32
    %200 = vector.broadcast %cst_167 : f32 to vector<8x512xf32>
    %201 = arith.maximumf %199, %200 : vector<8x512xf32>
    %c1_168 = arith.constant 1 : index
    %c1_169 = arith.constant 1 : index
    %c0_170 = arith.constant 0 : index
    %c0_171 = arith.constant 0 : index
    %202 = vector.load %arg6[%c1_168, %c1_169, %c0_170, %c0_171] : memref<3x3x8x8xf32, #tpu.memory_space<vmem>>, vector<1x1x8x8xf32>
    %203 = vector.shape_cast %202 : vector<1x1x8x8xf32> to vector<8x8xf32>
    %cst_172 = arith.constant dense<0.000000e+00> : vector<8x512xf32>
    %204 = tpu.matmul %203, %201, %cst_172 {dimension_numbers = #tpu.dot_dimension_numbers<[1], [0], [0], [1], [0, 0, 1, 1], [], []>} : vector<8x8xf32>, vector<8x512xf32>, vector<8x512xf32> -> vector<8x512xf32>
    %c1_173 = arith.constant 1 : index
    %c1_174 = arith.constant 1 : index
    %c0_175 = arith.constant 0 : index
    %c0_176 = arith.constant 0 : index
    %205 = vector.load %arg7[%c1_173, %c1_174, %c0_175, %c0_176] : memref<3x3x8x1xf32, #tpu.memory_space<vmem>>, vector<1x1x8x1xf32>
    %206 = vector.shape_cast %205 : vector<1x1x8x1xf32> to vector<8x1xf32>
    %207 = vector.broadcast %206 : vector<8x1xf32> to vector<8x512xf32>
    %208 = arith.addf %204, %207 : vector<8x512xf32>
    %209 = arith.addf %178, %208 : vector<8x512xf32>
    %c4_i32_177 = arith.constant 4 : i32
    %210 = tpu.dynamic_rotate %209 by %c4_i32_177 dim 1 : vector<8x512xf32>, i32 -> vector<8x512xf32>
    %cst_178 = arith.constant 0.000000e+00 : f32
    %211 = vector.shape_cast %28 : vector<1x512xi1> to vector<1x512xi1>
    %212 = vector.broadcast %211 : vector<1x512xi1> to vector<8x512xi1>
    %213 = vector.broadcast %cst_178 : f32 to vector<8x512xf32>
    %214 = arith.select %212, %210, %213 : vector<8x512xi1>, vector<8x512xf32>
    %c508_i32_179 = arith.constant 508 : i32
    %215 = tpu.dynamic_rotate %209 by %c508_i32_179 dim 1 : vector<8x512xf32>, i32 -> vector<8x512xf32>
    %cst_180 = arith.constant 0.000000e+00 : f32
    %216 = vector.shape_cast %30 : vector<1x512xi1> to vector<1x512xi1>
    %217 = vector.broadcast %216 : vector<1x512xi1> to vector<8x512xi1>
    %218 = vector.broadcast %cst_180 : f32 to vector<8x512xf32>
    %219 = arith.select %217, %215, %218 : vector<8x512xi1>, vector<8x512xf32>
    %c0_181 = arith.constant 0 : index
    %c0_182 = arith.constant 0 : index
    %220 = vector.load %arg11[%c0_181, %c0_182] : memref<24x512xf32, #tpu.memory_space<vmem>>, vector<8x512xf32>
    tpu.vector_store %arg11[%c0_181, %c0_182], %214 {strides = array<i32>} : memref<24x512xf32, #tpu.memory_space<vmem>>, vector<8x512xf32>,
    %c8_183 = arith.constant 8 : index
    %c0_184 = arith.constant 0 : index
    %221 = vector.load %arg11[%c8_183, %c0_184] : memref<24x512xf32, #tpu.memory_space<vmem>>, vector<8x512xf32>
    tpu.vector_store %arg11[%c8_183, %c0_184], %209 {strides = array<i32>} : memref<24x512xf32, #tpu.memory_space<vmem>>, vector<8x512xf32>,
    %c16_185 = arith.constant 16 : index
    %c0_186 = arith.constant 0 : index
    %222 = vector.load %arg11[%c16_185, %c0_186] : memref<24x512xf32, #tpu.memory_space<vmem>>, vector<8x512xf32>
    tpu.vector_store %arg11[%c16_185, %c0_186], %219 {strides = array<i32>} : memref<24x512xf32, #tpu.memory_space<vmem>>, vector<8x512xf32>,
    %c1_187 = arith.constant 1 : index
    %c2_188 = arith.constant 2 : index
    %c0_189 = arith.constant 0 : index
    %c0_190 = arith.constant 0 : index
    %223 = vector.load %arg4[%c1_187, %c2_188, %c0_189, %c0_190] : memref<3x3x8x24xf32, #tpu.memory_space<vmem>>, vector<1x1x8x24xf32>
    %224 = vector.shape_cast %223 : vector<1x1x8x24xf32> to vector<8x24xf32>
    %c0_191 = arith.constant 0 : index
    %c0_192 = arith.constant 0 : index
    %225 = vector.load %arg11[%c0_191, %c0_192] : memref<24x512xf32, #tpu.memory_space<vmem>>, vector<24x512xf32>
    %cst_193 = arith.constant dense<0.000000e+00> : vector<8x512xf32>
    %226 = tpu.matmul %224, %225, %cst_193 {dimension_numbers = #tpu.dot_dimension_numbers<[1], [0], [0], [1], [0, 0, 1, 1], [], []>} : vector<8x24xf32>, vector<24x512xf32>, vector<8x512xf32> -> vector<8x512xf32>
    %c1_194 = arith.constant 1 : index
    %c2_195 = arith.constant 2 : index
    %c0_196 = arith.constant 0 : index
    %c0_197 = arith.constant 0 : index
    %227 = vector.load %arg5[%c1_194, %c2_195, %c0_196, %c0_197] : memref<3x3x8x1xf32, #tpu.memory_space<vmem>>, vector<1x1x8x1xf32>
    %228 = vector.shape_cast %227 : vector<1x1x8x1xf32> to vector<8x1xf32>
    %229 = vector.broadcast %228 : vector<8x1xf32> to vector<8x512xf32>
    %230 = arith.addf %226, %229 : vector<8x512xf32>
    %cst_198 = arith.constant 0.000000e+00 : f32
    %231 = vector.broadcast %cst_198 : f32 to vector<8x512xf32>
    %232 = arith.maximumf %230, %231 : vector<8x512xf32>
    %c1_199 = arith.constant 1 : index
    %c2_200 = arith.constant 2 : index
    %c0_201 = arith.constant 0 : index
    %c0_202 = arith.constant 0 : index
    %233 = vector.load %arg6[%c1_199, %c2_200, %c0_201, %c0_202] : memref<3x3x8x8xf32, #tpu.memory_space<vmem>>, vector<1x1x8x8xf32>
    %234 = vector.shape_cast %233 : vector<1x1x8x8xf32> to vector<8x8xf32>
    %cst_203 = arith.constant dense<0.000000e+00> : vector<8x512xf32>
    %235 = tpu.matmul %234, %232, %cst_203 {dimension_numbers = #tpu.dot_dimension_numbers<[1], [0], [0], [1], [0, 0, 1, 1], [], []>} : vector<8x8xf32>, vector<8x512xf32>, vector<8x512xf32> -> vector<8x512xf32>
    %c1_204 = arith.constant 1 : index
    %c2_205 = arith.constant 2 : index
    %c0_206 = arith.constant 0 : index
    %c0_207 = arith.constant 0 : index
    %236 = vector.load %arg7[%c1_204, %c2_205, %c0_206, %c0_207] : memref<3x3x8x1xf32, #tpu.memory_space<vmem>>, vector<1x1x8x1xf32>
    %237 = vector.shape_cast %236 : vector<1x1x8x1xf32> to vector<8x1xf32>
    %238 = vector.broadcast %237 : vector<8x1xf32> to vector<8x512xf32>
    %239 = arith.addf %235, %238 : vector<8x512xf32>
    %240 = arith.addf %209, %239 : vector<8x512xf32>
    %c1_208 = arith.constant 1 : index
    %c0_209 = arith.constant 0 : index
    %c0_210 = arith.constant 0 : index
    %241 = vector.load %arg8[%c1_208, %c0_209, %c0_210] : memref<3x8x8xf32, #tpu.memory_space<vmem>>, vector<1x8x8xf32>
    %242 = vector.shape_cast %241 : vector<1x8x8xf32> to vector<8x8xf32>
    %cst_211 = arith.constant dense<0.000000e+00> : vector<8x512xf32>
    %243 = tpu.matmul %242, %240, %cst_211 {dimension_numbers = #tpu.dot_dimension_numbers<[1], [0], [0], [1], [0, 0, 1, 1], [], []>} : vector<8x8xf32>, vector<8x512xf32>, vector<8x512xf32> -> vector<8x512xf32>
    %c1_212 = arith.constant 1 : index
    %c0_213 = arith.constant 0 : index
    %c0_214 = arith.constant 0 : index
    %244 = vector.load %arg9[%c1_212, %c0_213, %c0_214] : memref<3x8x1xf32, #tpu.memory_space<vmem>>, vector<1x8x1xf32>
    %245 = vector.shape_cast %244 : vector<1x8x1xf32> to vector<8x1xf32>
    %246 = vector.broadcast %245 : vector<8x1xf32> to vector<8x512xf32>
    %247 = arith.addf %243, %246 : vector<8x512xf32>
    %c0_215 = arith.constant 0 : index
    %c8_216 = arith.constant 8 : index
    %c0_217 = arith.constant 0 : index
    %248 = vector.load %arg10[%c0_215, %c8_216, %c0_217] : memref<1x24x512xf32, #tpu.memory_space<vmem>>, vector<1x8x512xf32>
    %249 = vector.shape_cast %248 : vector<1x8x512xf32> to vector<8x512xf32>
    %250 = vector.shape_cast %247 : vector<8x512xf32> to vector<1x8x512xf32>
    tpu.vector_store %arg10[%c0_215, %c8_216, %c0_217], %250 {strides = array<i32>} : memref<1x24x512xf32, #tpu.memory_space<vmem>>, vector<1x8x512xf32>,
    %c2_218 = arith.constant 2 : index
    %c0_219 = arith.constant 0 : index
    %c0_220 = arith.constant 0 : index
    %251 = vector.load %arg2[%c2_218, %c0_219, %c0_220] : memref<3x8x8xf32, #tpu.memory_space<vmem>>, vector<1x8x8xf32>
    %252 = vector.shape_cast %251 : vector<1x8x8xf32> to vector<8x8xf32>
    %cst_221 = arith.constant dense<0.000000e+00> : vector<8x512xf32>
    %253 = tpu.matmul %252, %247, %cst_221 {dimension_numbers = #tpu.dot_dimension_numbers<[1], [0], [0], [1], [0, 0, 1, 1], [], []>} : vector<8x8xf32>, vector<8x512xf32>, vector<8x512xf32> -> vector<8x512xf32>
    %c2_222 = arith.constant 2 : index
    %c0_223 = arith.constant 0 : index
    %c0_224 = arith.constant 0 : index
    %254 = vector.load %arg3[%c2_222, %c0_223, %c0_224] : memref<3x8x1xf32, #tpu.memory_space<vmem>>, vector<1x8x1xf32>
    %255 = vector.shape_cast %254 : vector<1x8x1xf32> to vector<8x1xf32>
    %256 = vector.broadcast %255 : vector<8x1xf32> to vector<8x512xf32>
    %257 = arith.addf %253, %256 : vector<8x512xf32>
    %c1_i32_225 = arith.constant 1 : i32
    %258 = tpu.dynamic_rotate %257 by %c1_i32_225 dim 1 : vector<8x512xf32>, i32 -> vector<8x512xf32>
    %cst_226 = arith.constant 0.000000e+00 : f32
    %259 = vector.shape_cast %20 : vector<1x512xi1> to vector<1x512xi1>
    %260 = vector.broadcast %259 : vector<1x512xi1> to vector<8x512xi1>
    %261 = vector.broadcast %cst_226 : f32 to vector<8x512xf32>
    %262 = arith.select %260, %258, %261 : vector<8x512xi1>, vector<8x512xf32>
    %c511_i32_227 = arith.constant 511 : i32
    %263 = tpu.dynamic_rotate %257 by %c511_i32_227 dim 1 : vector<8x512xf32>, i32 -> vector<8x512xf32>
    %cst_228 = arith.constant 0.000000e+00 : f32
    %264 = vector.shape_cast %22 : vector<1x512xi1> to vector<1x512xi1>
    %265 = vector.broadcast %264 : vector<1x512xi1> to vector<8x512xi1>
    %266 = vector.broadcast %cst_228 : f32 to vector<8x512xf32>
    %267 = arith.select %265, %263, %266 : vector<8x512xi1>, vector<8x512xf32>
    %c0_229 = arith.constant 0 : index
    %c0_230 = arith.constant 0 : index
    %268 = vector.load %arg11[%c0_229, %c0_230] : memref<24x512xf32, #tpu.memory_space<vmem>>, vector<8x512xf32>
    tpu.vector_store %arg11[%c0_229, %c0_230], %262 {strides = array<i32>} : memref<24x512xf32, #tpu.memory_space<vmem>>, vector<8x512xf32>,
    %c8_231 = arith.constant 8 : index
    %c0_232 = arith.constant 0 : index
    %269 = vector.load %arg11[%c8_231, %c0_232] : memref<24x512xf32, #tpu.memory_space<vmem>>, vector<8x512xf32>
    tpu.vector_store %arg11[%c8_231, %c0_232], %257 {strides = array<i32>} : memref<24x512xf32, #tpu.memory_space<vmem>>, vector<8x512xf32>,
    %c16_233 = arith.constant 16 : index
    %c0_234 = arith.constant 0 : index
    %270 = vector.load %arg11[%c16_233, %c0_234] : memref<24x512xf32, #tpu.memory_space<vmem>>, vector<8x512xf32>
    tpu.vector_store %arg11[%c16_233, %c0_234], %267 {strides = array<i32>} : memref<24x512xf32, #tpu.memory_space<vmem>>, vector<8x512xf32>,
    %c2_235 = arith.constant 2 : index
    %c0_236 = arith.constant 0 : index
    %c0_237 = arith.constant 0 : index
    %c0_238 = arith.constant 0 : index
    %271 = vector.load %arg4[%c2_235, %c0_236, %c0_237, %c0_238] : memref<3x3x8x24xf32, #tpu.memory_space<vmem>>, vector<1x1x8x24xf32>
    %272 = vector.shape_cast %271 : vector<1x1x8x24xf32> to vector<8x24xf32>
    %c0_239 = arith.constant 0 : index
    %c0_240 = arith.constant 0 : index
    %273 = vector.load %arg11[%c0_239, %c0_240] : memref<24x512xf32, #tpu.memory_space<vmem>>, vector<24x512xf32>
    %cst_241 = arith.constant dense<0.000000e+00> : vector<8x512xf32>
    %274 = tpu.matmul %272, %273, %cst_241 {dimension_numbers = #tpu.dot_dimension_numbers<[1], [0], [0], [1], [0, 0, 1, 1], [], []>} : vector<8x24xf32>, vector<24x512xf32>, vector<8x512xf32> -> vector<8x512xf32>
    %c2_242 = arith.constant 2 : index
    %c0_243 = arith.constant 0 : index
    %c0_244 = arith.constant 0 : index
    %c0_245 = arith.constant 0 : index
    %275 = vector.load %arg5[%c2_242, %c0_243, %c0_244, %c0_245] : memref<3x3x8x1xf32, #tpu.memory_space<vmem>>, vector<1x1x8x1xf32>
    %276 = vector.shape_cast %275 : vector<1x1x8x1xf32> to vector<8x1xf32>
    %277 = vector.broadcast %276 : vector<8x1xf32> to vector<8x512xf32>
    %278 = arith.addf %274, %277 : vector<8x512xf32>
    %cst_246 = arith.constant 0.000000e+00 : f32
    %279 = vector.broadcast %cst_246 : f32 to vector<8x512xf32>
    %280 = arith.maximumf %278, %279 : vector<8x512xf32>
    %c2_247 = arith.constant 2 : index
    %c0_248 = arith.constant 0 : index
    %c0_249 = arith.constant 0 : index
    %c0_250 = arith.constant 0 : index
    %281 = vector.load %arg6[%c2_247, %c0_248, %c0_249, %c0_250] : memref<3x3x8x8xf32, #tpu.memory_space<vmem>>, vector<1x1x8x8xf32>
    %282 = vector.shape_cast %281 : vector<1x1x8x8xf32> to vector<8x8xf32>
    %cst_251 = arith.constant dense<0.000000e+00> : vector<8x512xf32>
    %283 = tpu.matmul %282, %280, %cst_251 {dimension_numbers = #tpu.dot_dimension_numbers<[1], [0], [0], [1], [0, 0, 1, 1], [], []>} : vector<8x8xf32>, vector<8x512xf32>, vector<8x512xf32> -> vector<8x512xf32>
    %c2_252 = arith.constant 2 : index
    %c0_253 = arith.constant 0 : index
    %c0_254 = arith.constant 0 : index
    %c0_255 = arith.constant 0 : index
    %284 = vector.load %arg7[%c2_252, %c0_253, %c0_254, %c0_255] : memref<3x3x8x1xf32, #tpu.memory_space<vmem>>, vector<1x1x8x1xf32>
    %285 = vector.shape_cast %284 : vector<1x1x8x1xf32> to vector<8x1xf32>
    %286 = vector.broadcast %285 : vector<8x1xf32> to vector<8x512xf32>
    %287 = arith.addf %283, %286 : vector<8x512xf32>
    %288 = arith.addf %257, %287 : vector<8x512xf32>
    %c2_i32_256 = arith.constant 2 : i32
    %289 = tpu.dynamic_rotate %288 by %c2_i32_256 dim 1 : vector<8x512xf32>, i32 -> vector<8x512xf32>
    %cst_257 = arith.constant 0.000000e+00 : f32
    %290 = vector.shape_cast %24 : vector<1x512xi1> to vector<1x512xi1>
    %291 = vector.broadcast %290 : vector<1x512xi1> to vector<8x512xi1>
    %292 = vector.broadcast %cst_257 : f32 to vector<8x512xf32>
    %293 = arith.select %291, %289, %292 : vector<8x512xi1>, vector<8x512xf32>
    %c510_i32_258 = arith.constant 510 : i32
    %294 = tpu.dynamic_rotate %288 by %c510_i32_258 dim 1 : vector<8x512xf32>, i32 -> vector<8x512xf32>
    %cst_259 = arith.constant 0.000000e+00 : f32
    %295 = vector.shape_cast %26 : vector<1x512xi1> to vector<1x512xi1>
    %296 = vector.broadcast %295 : vector<1x512xi1> to vector<8x512xi1>
    %297 = vector.broadcast %cst_259 : f32 to vector<8x512xf32>
    %298 = arith.select %296, %294, %297 : vector<8x512xi1>, vector<8x512xf32>
    %c0_260 = arith.constant 0 : index
    %c0_261 = arith.constant 0 : index
    %299 = vector.load %arg11[%c0_260, %c0_261] : memref<24x512xf32, #tpu.memory_space<vmem>>, vector<8x512xf32>
    tpu.vector_store %arg11[%c0_260, %c0_261], %293 {strides = array<i32>} : memref<24x512xf32, #tpu.memory_space<vmem>>, vector<8x512xf32>,
    %c8_262 = arith.constant 8 : index
    %c0_263 = arith.constant 0 : index
    %300 = vector.load %arg11[%c8_262, %c0_263] : memref<24x512xf32, #tpu.memory_space<vmem>>, vector<8x512xf32>
    tpu.vector_store %arg11[%c8_262, %c0_263], %288 {strides = array<i32>} : memref<24x512xf32, #tpu.memory_space<vmem>>, vector<8x512xf32>,
    %c16_264 = arith.constant 16 : index
    %c0_265 = arith.constant 0 : index
    %301 = vector.load %arg11[%c16_264, %c0_265] : memref<24x512xf32, #tpu.memory_space<vmem>>, vector<8x512xf32>
    tpu.vector_store %arg11[%c16_264, %c0_265], %298 {strides = array<i32>} : memref<24x512xf32, #tpu.memory_space<vmem>>, vector<8x512xf32>,
    %c2_266 = arith.constant 2 : index
    %c1_267 = arith.constant 1 : index
    %c0_268 = arith.constant 0 : index
    %c0_269 = arith.constant 0 : index
    %302 = vector.load %arg4[%c2_266, %c1_267, %c0_268, %c0_269] : memref<3x3x8x24xf32, #tpu.memory_space<vmem>>, vector<1x1x8x24xf32>
    %303 = vector.shape_cast %302 : vector<1x1x8x24xf32> to vector<8x24xf32>
    %c0_270 = arith.constant 0 : index
    %c0_271 = arith.constant 0 : index
    %304 = vector.load %arg11[%c0_270, %c0_271] : memref<24x512xf32, #tpu.memory_space<vmem>>, vector<24x512xf32>
    %cst_272 = arith.constant dense<0.000000e+00> : vector<8x512xf32>
    %305 = tpu.matmul %303, %304, %cst_272 {dimension_numbers = #tpu.dot_dimension_numbers<[1], [0], [0], [1], [0, 0, 1, 1], [], []>} : vector<8x24xf32>, vector<24x512xf32>, vector<8x512xf32> -> vector<8x512xf32>
    %c2_273 = arith.constant 2 : index
    %c1_274 = arith.constant 1 : index
    %c0_275 = arith.constant 0 : index
    %c0_276 = arith.constant 0 : index
    %306 = vector.load %arg5[%c2_273, %c1_274, %c0_275, %c0_276] : memref<3x3x8x1xf32, #tpu.memory_space<vmem>>, vector<1x1x8x1xf32>
    %307 = vector.shape_cast %306 : vector<1x1x8x1xf32> to vector<8x1xf32>
    %308 = vector.broadcast %307 : vector<8x1xf32> to vector<8x512xf32>
    %309 = arith.addf %305, %308 : vector<8x512xf32>
    %cst_277 = arith.constant 0.000000e+00 : f32
    %310 = vector.broadcast %cst_277 : f32 to vector<8x512xf32>
    %311 = arith.maximumf %309, %310 : vector<8x512xf32>
    %c2_278 = arith.constant 2 : index
    %c1_279 = arith.constant 1 : index
    %c0_280 = arith.constant 0 : index
    %c0_281 = arith.constant 0 : index
    %312 = vector.load %arg6[%c2_278, %c1_279, %c0_280, %c0_281] : memref<3x3x8x8xf32, #tpu.memory_space<vmem>>, vector<1x1x8x8xf32>
    %313 = vector.shape_cast %312 : vector<1x1x8x8xf32> to vector<8x8xf32>
    %cst_282 = arith.constant dense<0.000000e+00> : vector<8x512xf32>
    %314 = tpu.matmul %313, %311, %cst_282 {dimension_numbers = #tpu.dot_dimension_numbers<[1], [0], [0], [1], [0, 0, 1, 1], [], []>} : vector<8x8xf32>, vector<8x512xf32>, vector<8x512xf32> -> vector<8x512xf32>
    %c2_283 = arith.constant 2 : index
    %c1_284 = arith.constant 1 : index
    %c0_285 = arith.constant 0 : index
    %c0_286 = arith.constant 0 : index
    %315 = vector.load %arg7[%c2_283, %c1_284, %c0_285, %c0_286] : memref<3x3x8x1xf32, #tpu.memory_space<vmem>>, vector<1x1x8x1xf32>
    %316 = vector.shape_cast %315 : vector<1x1x8x1xf32> to vector<8x1xf32>
    %317 = vector.broadcast %316 : vector<8x1xf32> to vector<8x512xf32>
    %318 = arith.addf %314, %317 : vector<8x512xf32>
    %319 = arith.addf %288, %318 : vector<8x512xf32>
    %c4_i32_287 = arith.constant 4 : i32
    %320 = tpu.dynamic_rotate %319 by %c4_i32_287 dim 1 : vector<8x512xf32>, i32 -> vector<8x512xf32>
    %cst_288 = arith.constant 0.000000e+00 : f32
    %321 = vector.shape_cast %28 : vector<1x512xi1> to vector<1x512xi1>
    %322 = vector.broadcast %321 : vector<1x512xi1> to vector<8x512xi1>
    %323 = vector.broadcast %cst_288 : f32 to vector<8x512xf32>
    %324 = arith.select %322, %320, %323 : vector<8x512xi1>, vector<8x512xf32>
    %c508_i32_289 = arith.constant 508 : i32
    %325 = tpu.dynamic_rotate %319 by %c508_i32_289 dim 1 : vector<8x512xf32>, i32 -> vector<8x512xf32>
    %cst_290 = arith.constant 0.000000e+00 : f32
    %326 = vector.shape_cast %30 : vector<1x512xi1> to vector<1x512xi1>
    %327 = vector.broadcast %326 : vector<1x512xi1> to vector<8x512xi1>
    %328 = vector.broadcast %cst_290 : f32 to vector<8x512xf32>
    %329 = arith.select %327, %325, %328 : vector<8x512xi1>, vector<8x512xf32>
    %c0_291 = arith.constant 0 : index
    %c0_292 = arith.constant 0 : index
    %330 = vector.load %arg11[%c0_291, %c0_292] : memref<24x512xf32, #tpu.memory_space<vmem>>, vector<8x512xf32>
    tpu.vector_store %arg11[%c0_291, %c0_292], %324 {strides = array<i32>} : memref<24x512xf32, #tpu.memory_space<vmem>>, vector<8x512xf32>,
    %c8_293 = arith.constant 8 : index
    %c0_294 = arith.constant 0 : index
    %331 = vector.load %arg11[%c8_293, %c0_294] : memref<24x512xf32, #tpu.memory_space<vmem>>, vector<8x512xf32>
    tpu.vector_store %arg11[%c8_293, %c0_294], %319 {strides = array<i32>} : memref<24x512xf32, #tpu.memory_space<vmem>>, vector<8x512xf32>,
    %c16_295 = arith.constant 16 : index
    %c0_296 = arith.constant 0 : index
    %332 = vector.load %arg11[%c16_295, %c0_296] : memref<24x512xf32, #tpu.memory_space<vmem>>, vector<8x512xf32>
    tpu.vector_store %arg11[%c16_295, %c0_296], %329 {strides = array<i32>} : memref<24x512xf32, #tpu.memory_space<vmem>>, vector<8x512xf32>,
    %c2_297 = arith.constant 2 : index
    %c2_298 = arith.constant 2 : index
    %c0_299 = arith.constant 0 : index
    %c0_300 = arith.constant 0 : index
    %333 = vector.load %arg4[%c2_297, %c2_298, %c0_299, %c0_300] : memref<3x3x8x24xf32, #tpu.memory_space<vmem>>, vector<1x1x8x24xf32>
    %334 = vector.shape_cast %333 : vector<1x1x8x24xf32> to vector<8x24xf32>
    %c0_301 = arith.constant 0 : index
    %c0_302 = arith.constant 0 : index
    %335 = vector.load %arg11[%c0_301, %c0_302] : memref<24x512xf32, #tpu.memory_space<vmem>>, vector<24x512xf32>
    %cst_303 = arith.constant dense<0.000000e+00> : vector<8x512xf32>
    %336 = tpu.matmul %334, %335, %cst_303 {dimension_numbers = #tpu.dot_dimension_numbers<[1], [0], [0], [1], [0, 0, 1, 1], [], []>} : vector<8x24xf32>, vector<24x512xf32>, vector<8x512xf32> -> vector<8x512xf32>
    %c2_304 = arith.constant 2 : index
    %c2_305 = arith.constant 2 : index
    %c0_306 = arith.constant 0 : index
    %c0_307 = arith.constant 0 : index
    %337 = vector.load %arg5[%c2_304, %c2_305, %c0_306, %c0_307] : memref<3x3x8x1xf32, #tpu.memory_space<vmem>>, vector<1x1x8x1xf32>
    %338 = vector.shape_cast %337 : vector<1x1x8x1xf32> to vector<8x1xf32>
    %339 = vector.broadcast %338 : vector<8x1xf32> to vector<8x512xf32>
    %340 = arith.addf %336, %339 : vector<8x512xf32>
    %cst_308 = arith.constant 0.000000e+00 : f32
    %341 = vector.broadcast %cst_308 : f32 to vector<8x512xf32>
    %342 = arith.maximumf %340, %341 : vector<8x512xf32>
    %c2_309 = arith.constant 2 : index
    %c2_310 = arith.constant 2 : index
    %c0_311 = arith.constant 0 : index
    %c0_312 = arith.constant 0 : index
    %343 = vector.load %arg6[%c2_309, %c2_310, %c0_311, %c0_312] : memref<3x3x8x8xf32, #tpu.memory_space<vmem>>, vector<1x1x8x8xf32>
    %344 = vector.shape_cast %343 : vector<1x1x8x8xf32> to vector<8x8xf32>
    %cst_313 = arith.constant dense<0.000000e+00> : vector<8x512xf32>
    %345 = tpu.matmul %344, %342, %cst_313 {dimension_numbers = #tpu.dot_dimension_numbers<[1], [0], [0], [1], [0, 0, 1, 1], [], []>} : vector<8x8xf32>, vector<8x512xf32>, vector<8x512xf32> -> vector<8x512xf32>
    %c2_314 = arith.constant 2 : index
    %c2_315 = arith.constant 2 : index
    %c0_316 = arith.constant 0 : index
    %c0_317 = arith.constant 0 : index
    %346 = vector.load %arg7[%c2_314, %c2_315, %c0_316, %c0_317] : memref<3x3x8x1xf32, #tpu.memory_space<vmem>>, vector<1x1x8x1xf32>
    %347 = vector.shape_cast %346 : vector<1x1x8x1xf32> to vector<8x1xf32>
    %348 = vector.broadcast %347 : vector<8x1xf32> to vector<8x512xf32>
    %349 = arith.addf %345, %348 : vector<8x512xf32>
    %350 = arith.addf %319, %349 : vector<8x512xf32>
    %c2_318 = arith.constant 2 : index
    %c0_319 = arith.constant 0 : index
    %c0_320 = arith.constant 0 : index
    %351 = vector.load %arg8[%c2_318, %c0_319, %c0_320] : memref<3x8x8xf32, #tpu.memory_space<vmem>>, vector<1x8x8xf32>
    %352 = vector.shape_cast %351 : vector<1x8x8xf32> to vector<8x8xf32>
    %cst_321 = arith.constant dense<0.000000e+00> : vector<8x512xf32>
    %353 = tpu.matmul %352, %350, %cst_321 {dimension_numbers = #tpu.dot_dimension_numbers<[1], [0], [0], [1], [0, 0, 1, 1], [], []>} : vector<8x8xf32>, vector<8x512xf32>, vector<8x512xf32> -> vector<8x512xf32>
    %c2_322 = arith.constant 2 : index
    %c0_323 = arith.constant 0 : index
    %c0_324 = arith.constant 0 : index
    %354 = vector.load %arg9[%c2_322, %c0_323, %c0_324] : memref<3x8x1xf32, #tpu.memory_space<vmem>>, vector<1x8x1xf32>
    %355 = vector.shape_cast %354 : vector<1x8x1xf32> to vector<8x1xf32>
    %356 = vector.broadcast %355 : vector<8x1xf32> to vector<8x512xf32>
    %357 = arith.addf %353, %356 : vector<8x512xf32>
    %c0_325 = arith.constant 0 : index
    %c16_326 = arith.constant 16 : index
    %c0_327 = arith.constant 0 : index
    %358 = vector.load %arg10[%c0_325, %c16_326, %c0_327] : memref<1x24x512xf32, #tpu.memory_space<vmem>>, vector<1x8x512xf32>
    %359 = vector.shape_cast %358 : vector<1x8x512xf32> to vector<8x512xf32>
    %360 = vector.shape_cast %357 : vector<8x512xf32> to vector<1x8x512xf32>
    tpu.vector_store %arg10[%c0_325, %c16_326, %c0_327], %360 {strides = array<i32>} : memref<1x24x512xf32, #tpu.memory_space<vmem>>, vector<1x8x512xf32>,
    return
  }
  func.func @transform_0(%arg0: i32) -> (i32, i32, i32) {
    %c0_i32 = arith.constant 0 : i32
    %c0_i32_0 = arith.constant 0 : i32
    %c0_i32_1 = arith.constant 0 : i32
    return %arg0, %c0_i32, %c0_i32_0 : i32, i32, i32
  }
  func.func @transform_1(%arg0: i32) -> (i32, i32, i32) {
    %c0_i32 = arith.constant 0 : i32
    %c0_i32_0 = arith.constant 0 : i32
    %c0_i32_1 = arith.constant 0 : i32
    %c0_i32_2 = arith.constant 0 : i32
    return %c0_i32, %c0_i32_0, %c0_i32_1 : i32, i32, i32
  }
  func.func @transform_2(%arg0: i32) -> (i32, i32, i32) {
    %c0_i32 = arith.constant 0 : i32
    %c0_i32_0 = arith.constant 0 : i32
    %c0_i32_1 = arith.constant 0 : i32
    %c0_i32_2 = arith.constant 0 : i32
    return %c0_i32, %c0_i32_0, %c0_i32_1 : i32, i32, i32
  }
  func.func @transform_3(%arg0: i32) -> (i32, i32, i32, i32) {
    %c0_i32 = arith.constant 0 : i32
    %c0_i32_0 = arith.constant 0 : i32
    %c0_i32_1 = arith.constant 0 : i32
    %c0_i32_2 = arith.constant 0 : i32
    %c0_i32_3 = arith.constant 0 : i32
    return %c0_i32, %c0_i32_0, %c0_i32_1, %c0_i32_2 : i32, i32, i32, i32
  }
  func.func @transform_4(%arg0: i32) -> (i32, i32, i32, i32) {
    %c0_i32 = arith.constant 0 : i32
    %c0_i32_0 = arith.constant 0 : i32
    %c0_i32_1 = arith.constant 0 : i32
    %c0_i32_2 = arith.constant 0 : i32
    %c0_i32_3 = arith.constant 0 : i32
    return %c0_i32, %c0_i32_0, %c0_i32_1, %c0_i32_2 : i32, i32, i32, i32
  }
  func.func @transform_5(%arg0: i32) -> (i32, i32, i32, i32) {
    %c0_i32 = arith.constant 0 : i32
    %c0_i32_0 = arith.constant 0 : i32
    %c0_i32_1 = arith.constant 0 : i32
    %c0_i32_2 = arith.constant 0 : i32
    %c0_i32_3 = arith.constant 0 : i32
    return %c0_i32, %c0_i32_0, %c0_i32_1, %c0_i32_2 : i32, i32, i32, i32
  }
  func.func @transform_6(%arg0: i32) -> (i32, i32, i32, i32) {
    %c0_i32 = arith.constant 0 : i32
    %c0_i32_0 = arith.constant 0 : i32
    %c0_i32_1 = arith.constant 0 : i32
    %c0_i32_2 = arith.constant 0 : i32
    %c0_i32_3 = arith.constant 0 : i32
    return %c0_i32, %c0_i32_0, %c0_i32_1, %c0_i32_2 : i32, i32, i32, i32
  }
  func.func @transform_7(%arg0: i32) -> (i32, i32, i32) {
    %c0_i32 = arith.constant 0 : i32
    %c0_i32_0 = arith.constant 0 : i32
    %c0_i32_1 = arith.constant 0 : i32
    %c0_i32_2 = arith.constant 0 : i32
    return %c0_i32, %c0_i32_0, %c0_i32_1 : i32, i32, i32
  }
  func.func @transform_8(%arg0: i32) -> (i32, i32, i32) {
    %c0_i32 = arith.constant 0 : i32
    %c0_i32_0 = arith.constant 0 : i32
    %c0_i32_1 = arith.constant 0 : i32
    %c0_i32_2 = arith.constant 0 : i32
    return %c0_i32, %c0_i32_0, %c0_i32_1 : i32, i32, i32
  }
  func.func @transform_9(%arg0: i32) -> (i32, i32, i32) {
    %c0_i32 = arith.constant 0 : i32
    %c0_i32_0 = arith.constant 0 : i32
    %c0_i32_1 = arith.constant 0 : i32
    return %arg0, %c0_i32, %c0_i32_0 : i32, i32, i32
  }
}

</mosaic_0001>

<llo_original>
// kernel: tpu_custom_call.1
$region0: #{tpu_custom_call.1}
  #allocation0 [shape = 'u32[]', space=smem, size = 0x4, offset = 0x4, fixed_abs, tag = 'smem constant byte address 0x4 - core index']
  #allocation1 [shape = 'u32[144,128]{1,0:T(1,128)}', space=vmem, size = 0x12000, scoped, tag = 'internal scratch']
  #allocation2 [shape = 'f32[24,512]{1,0:T(8,128)}', space=vmem, size = 0xc000, scoped, tag = 'scratch operand']
  %s0 = inlined_call_operand.vmem [shape: f32[1,8,512], index: 0, kind: input, shape index: {}]
  %s1 = inlined_call_operand.vmem [shape: f32[3,8,8], index: 1, kind: input, shape index: {}]
  %s2 = inlined_call_operand.vmem [shape: f32[3,8,1], index: 2, kind: input, shape index: {}]
  %s3 = inlined_call_operand.vmem [shape: f32[3,3,8,24], index: 3, kind: input, shape index: {}]
  %s4 = inlined_call_operand.vmem [shape: f32[3,3,8,1], index: 4, kind: input, shape index: {}]
  %s5 = inlined_call_operand.vmem [shape: f32[3,3,8,8], index: 5, kind: input, shape index: {}]
  %s6 = inlined_call_operand.vmem [shape: f32[3,3,8,1], index: 6, kind: input, shape index: {}]
  %s7 = inlined_call_operand.vmem [shape: f32[3,8,8], index: 7, kind: input, shape index: {}]
  %s8 = inlined_call_operand.vmem [shape: f32[3,8,1], index: 8, kind: input, shape index: {}]
  %s9 = inlined_call_operand.hbm [shape: f32[1,24,512], index: 9, kind: output, shape index: {}]
  %s10 = sld [smem:[#allocation0]]
  $region46: #{tpu_custom_call.1} parent=0
    _
  %s12 = ssub.s32 1, %s10
  %s13 = scalar_select 0, %s12, %s10
  $region1: #{tpu_custom_call.1} parent=0
    #allocation3 [shape = 'u8[49152]{0}', space=vmem, size = 0xc000, scoped, tag = 'output window, operand 0, single buffered']
    #allocation4 [shape = 's32[1]{0}', space=sflag, size = 0x4, scoped, tag = 'scoped memory for tpu_custom_call.1']
    %14 = vsyncpa [#allocation4], 0
    // Predicated region
    $region2: #{tpu_custom_call.1} parent=1 // pred_check
      _
    $region3: #{tpu_custom_call.1} parent=1 // pred_check_branch
      %16 = sbr.rel (0) target = $region5
    $region4: #{tpu_custom_call.1} parent=1 // pred_region
      _
    $region5: #{tpu_custom_call.1} parent=1 // pred_fallthru
      _
    // Predicated region
    $region6: #{tpu_custom_call.1} parent=1 // pred_check
      _
    $region7: #{tpu_custom_call.1} parent=1 // pred_check_branch
      %18 = sbr.rel (0) target = $region9
    $region8: #{tpu_custom_call.1} parent=1 // pred_region
      _
    $region9: #{tpu_custom_call.1} parent=1 // pred_fallthru
      _
    // Predicated region
    $region10: #{tpu_custom_call.1} parent=1 // pred_check
      _
    $region11: #{tpu_custom_call.1} parent=1 // pred_check_branch
      %20 = sbr.rel (0) target = $region13
    $region12: #{tpu_custom_call.1} parent=1 // pred_region
      _
    $region13: #{tpu_custom_call.1} parent=1 // pred_fallthru
      _
    // Predicated region
    $region14: #{tpu_custom_call.1} parent=1 // pred_check
      _
    $region15: #{tpu_custom_call.1} parent=1 // pred_check_branch
      %22 = sbr.rel (0) target = $region17
    $region16: #{tpu_custom_call.1} parent=1 // pred_region
      _
    $region17: #{tpu_custom_call.1} parent=1 // pred_fallthru
      _
    // Predicated region
    $region18: #{tpu_custom_call.1} parent=1 // pred_check
      _
    $region19: #{tpu_custom_call.1} parent=1 // pred_check_branch
      %24 = sbr.rel (0) target = $region21
    $region20: #{tpu_custom_call.1} parent=1 // pred_region
      _
    $region21: #{tpu_custom_call.1} parent=1 // pred_fallthru
      _
    // Predicated region
    $region22: #{tpu_custom_call.1} parent=1 // pred_check
      _
    $region23: #{tpu_custom_call.1} parent=1 // pred_check_branch
      %26 = sbr.rel (0) target = $region25
    $region24: #{tpu_custom_call.1} parent=1 // pred_region
      _
    $region25: #{tpu_custom_call.1} parent=1 // pred_fallthru
      _
    // Predicated region
    $region26: #{tpu_custom_call.1} parent=1 // pred_check
      _
    $region27: #{tpu_custom_call.1} parent=1 // pred_check_branch
      %28 = sbr.rel (0) target = $region29
    $region28: #{tpu_custom_call.1} parent=1 // pred_region
      _
    $region29: #{tpu_custom_call.1} parent=1 // pred_fallthru
      _
    // Predicated region
    $region30: #{tpu_custom_call.1} parent=1 // pred_check
      _
    $region31: #{tpu_custom_call.1} parent=1 // pred_check_branch
      %30 = sbr.rel (0) target = $region33
    $region32: #{tpu_custom_call.1} parent=1 // pred_region
      _
    $region33: #{tpu_custom_call.1} parent=1 // pred_fallthru
      _
    // Predicated region
    $region34: #{tpu_custom_call.1} parent=1 // pred_check
      _
    $region35: #{tpu_custom_call.1} parent=1 // pred_check_branch
      %32 = sbr.rel (0) target = $region37
    $region36: #{tpu_custom_call.1} parent=1 // pred_region
      _
    $region37: #{tpu_custom_call.1} parent=1 // pred_fallthru
      _
    %v33 = vld [vmem:[%s0] sm:$0xff]
    %v34 = vld [vmem:[%s0 + $0x8] sm:$0xff]
    %v35 = vld [vmem:[%s0 + $0x10] sm:$0xff]
    %v36 = vld [vmem:[%s0 + $0x18] sm:$0xff]
    %v37 = vlaneseq
    %v38 = vand.u32 %v37, 127
    %v39 = vadd.s32 %v38, 128
    %v40 = vadd.s32 %v38, 256
    %v41 = vadd.s32 %v38, 384
    %vm42 = vcmp.lt.s32.totalorder %v38, 0
    %v43 = vsub.s32 0, %v38
    %v44 = vsel %vm42, %v43, %v38
    %v45 = vshrl.u32 %v44, 8
    %v46 = vand.u32 %v44, 255
    %v47 = vsub.s32 0, %v46
    %v48 = vsel %vm42, %v47, %v46
    %vm49 = vcmp.lt.s32.totalorder %v39, 0
    %v50 = vsub.s32 0, %v39
    %v51 = vsel %vm49, %v50, %v39
    %v52 = vshrl.u32 %v51, 8
    %v53 = vand.u32 %v51, 255
    %v54 = vsub.s32 0, %v53
    %v55 = vsel %vm49, %v54, %v53
    %vm56 = vcmp.lt.s32.totalorder %v40, 0
    %v57 = vsub.s32 0, %v40
    %v58 = vsel %vm56, %v57, %v40
    %v59 = vshrl.u32 %v58, 8
    %v60 = vand.u32 %v58, 255
    %v61 = vsub.s32 0, %v60
    %v62 = vsel %vm56, %v61, %v60
    %vm63 = vcmp.lt.s32.totalorder %v41, 0
    %v64 = vsub.s32 0, %v41
    %v65 = vsel %vm63, %v64, %v41
    %v66 = vshrl.u32 %v65, 8
    %v67 = vand.u32 %v65, 255
    %v68 = vsub.s32 0, %v67
    %v69 = vsel %vm63, %v68, %v67
    %vm70 = vcmp.ne.s32.totalorder %v48, 0
    %vm71 = vcmp.ne.s32.totalorder %v55, 0
    %vm72 = vcmp.ne.s32.totalorder %v62, 0
    %vm73 = vcmp.ne.s32.totalorder %v69, 0
    %vm74 = vcmp.lt.s32.totalorder %v48, 0
    %vm75 = vcmp.lt.s32.totalorder %v55, 0
    %vm76 = vcmp.lt.s32.totalorder %v62, 0
    %vm77 = vcmp.lt.s32.totalorder %v69, 0
    %vm78 = vmand %vm74, %vm70
    %vm79 = vmand %vm75, %vm71
    %vm80 = vmand %vm76, %vm72
    %vm81 = vmand %vm77, %vm73
    %v82 = vadd.s32 %v48, 256
    %v83 = vadd.s32 %v55, 256
    %v84 = vadd.s32 %v62, 256
    %v85 = vadd.s32 %v69, 256
    %v86 = vsel %vm78, %v82, %v48
    %v87 = vsel %vm79, %v83, %v55
    %v88 = vsel %vm80, %v84, %v62
    %v89 = vsel %vm81, %v85, %v69
    %vm90 = vcmp.ge.s32.totalorder %v86, 1
    %vm91 = vcmp.ge.s32.totalorder %v87, 1
    %vm92 = vcmp.ge.s32.totalorder %v88, 1
    %vm93 = vcmp.ge.s32.totalorder %v89, 1
    %vm94 = vcmp.lt.s32.totalorder %v86, 255
    %vm95 = vcmp.lt.s32.totalorder %v87, 255
    %vm96 = vcmp.lt.s32.totalorder %v88, 255
    %vm97 = vcmp.lt.s32.totalorder %v89, 255
    %vm98 = vcmp.ge.s32.totalorder %v86, 2
    %vm99 = vcmp.ge.s32.totalorder %v87, 2
    %vm100 = vcmp.ge.s32.totalorder %v88, 2
    %vm101 = vcmp.ge.s32.totalorder %v89, 2
    %vm102 = vcmp.lt.s32.totalorder %v86, 254
    %vm103 = vcmp.lt.s32.totalorder %v87, 254
    %vm104 = vcmp.lt.s32.totalorder %v88, 254
    %vm105 = vcmp.lt.s32.totalorder %v89, 254
    %vm106 = vcmp.ge.s32.totalorder %v86, 4
    %vm107 = vcmp.ge.s32.totalorder %v87, 4
    %vm108 = vcmp.ge.s32.totalorder %v88, 4
    %vm109 = vcmp.ge.s32.totalorder %v89, 4
    %vm110 = vcmp.lt.s32.totalorder %v86, 252
    %vm111 = vcmp.lt.s32.totalorder %v87, 252
    %vm112 = vcmp.lt.s32.totalorder %v88, 252
    %vm113 = vcmp.lt.s32.totalorder %v89, 252
    %v114 = vld [vmem:[%s1] sm:$0xff]
    %v115 = vld [vmem:[%s2] sm:$0xff]
    %117 = vset.pattern.permute.xlu0 0
    %118 = vperm.xlu0 %117, %v115
    %v119 = vpop.permute.xlu0 %118
    %vm121 = vcmask 64512
    %v123 = vsel %vm121, %v114, 0
    %125 = vmatprep.subr.mxu0 %v34
    %126 = vmatpush1.msra.mxu0 %v33
    %127 = vmatprep.subr.mxu0 0.0
    %128 = vmatpush1.msra.mxu0 0.0
    %129 = vmatprep.subr.mxu0 0.0
    %130 = vmatpush1.msra.mxu0 0.0
    %131 = vmatprep.subr.mxu0 0.0
    %132 = vmatpush1.msra.mxu0 0.0
    %133 = vmatprep.subr.mxu0 0.0
    %134 = vmatpush1.msra.mxu0 0.0
    %135 = vmatprep.subr.mxu0 0.0
    %136 = vmatpush1.msra.mxu0 0.0
    %137 = vmatprep.subr.mxu0 0.0
    %138 = vmatpush1.msra.mxu0 0.0
    %139 = vmatprep.subr.mxu0 0.0
    %140 = vmatpush1.msra.mxu0 0.0
    %141 = vmatprep.subr.mxu0 0.0
    %142 = vmatpush1.msra.mxu0 0.0
    %143 = vmatprep.subr.mxu0 0.0
    %144 = vmatpush1.msra.mxu0 0.0
    %145 = vmatprep.subr.mxu0 0.0
    %146 = vmatpush1.msra.mxu0 0.0
    %147 = vmatprep.subr.mxu0 0.0
    %148 = vmatpush1.msra.mxu0 0.0
    %149 = vmatprep.subr.mxu0 0.0
    %150 = vmatpush1.msra.mxu0 0.0
    %151 = vmatprep.subr.mxu0 0.0
    %152 = vmatpush1.msra.mxu0 0.0
    %153 = vmatprep.subr.mxu0 0.0
    %154 = vmatpush1.msra.mxu0 0.0
    %155 = vmatprep.subr.mxu0 0.0
    %156 = vmatpush1.msra.mxu0 0.0
    %157 = vmatprep.subr.mxu0 0.0
    %158 = vmatpush1.msra.mxu0 0.0
    %159 = vmatprep.subr.mxu0 0.0
    %160 = vmatpush1.msra.mxu0 0.0
    %161 = vmatprep.subr.mxu0 0.0
    %162 = vmatpush1.msra.mxu0 0.0
    %163 = vmatprep.subr.mxu0 0.0
    %164 = vmatpush1.msra.mxu0 0.0
    %165 = vmatprep.subr.mxu0 0.0
    %166 = vmatpush1.msra.mxu0 0.0
    %167 = vmatprep.subr.mxu0 0.0
    %168 = vmatpush1.msra.mxu0 0.0
    %169 = vmatprep.subr.mxu0 0.0
    %170 = vmatpush1.msra.mxu0 0.0
    %171 = vmatprep.subr.mxu0 0.0
    %172 = vmatpush1.msra.mxu0 0.0
    %173 = vmatprep.subr.mxu0 0.0
    %174 = vmatpush1.msra.mxu0 0.0
    %175 = vmatprep.subr.mxu0 0.0
    %176 = vmatpush1.msra.mxu0 0.0
    %177 = vmatprep.subr.mxu0 0.0
    %178 = vmatpush1.msra.mxu0 0.0
    %179 = vmatprep.subr.mxu0 0.0
    %180 = vmatpush1.msra.mxu0 0.0
    %181 = vmatprep.subr.mxu0 0.0
    %182 = vmatpush1.msra.mxu0 0.0
    %183 = vmatprep.subr.mxu0 0.0
    %184 = vmatpush1.msra.mxu0 0.0
    %185 = vmatprep.subr.mxu0 0.0
    %186 = vmatpush1.msra.mxu0 0.0
    %187 = vmatprep.subr.mxu0 0.0
    %188 = vmatpush1.msra.mxu0 0.0
    %189 = vmatprep.mubr.f32.mxu0 0.0
    %190 = vmatmul.mubr.f32.gmra.mrb[0].mxu0 %v123
    %v191 = vpop.f32.mrb[0].mxu0
    %v192 = vadd.f32 %v119, %v191
    %v193 = vpop.f32.mrb[0].mxu0
    %v194 = vadd.f32 %v119, %v193
    %195 = vdwg.mxu0
    %196 = vmatprep.subr.mxu0 %v36
    %197 = vmatpush1.msra.mxu0 %v35
    %198 = vmatprep.subr.mxu0 0.0
    %199 = vmatpush1.msra.mxu0 0.0
    %200 = vmatprep.subr.mxu0 0.0
    %201 = vmatpush1.msra.mxu0 0.0
    %202 = vmatprep.subr.mxu0 0.0
    %203 = vmatpush1.msra.mxu0 0.0
    %204 = vmatprep.subr.mxu0 0.0
    %205 = vmatpush1.msra.mxu0 0.0
    %206 = vmatprep.subr.mxu0 0.0
    %207 = vmatpush1.msra.mxu0 0.0
    %208 = vmatprep.subr.mxu0 0.0
    %209 = vmatpush1.msra.mxu0 0.0
    %210 = vmatprep.subr.mxu0 0.0
    %211 = vmatpush1.msra.mxu0 0.0
    %212 = vmatprep.subr.mxu0 0.0
    %213 = vmatpush1.msra.mxu0 0.0
    %214 = vmatprep.subr.mxu0 0.0
    %215 = vmatpush1.msra.mxu0 0.0
    %216 = vmatprep.subr.mxu0 0.0
    %217 = vmatpush1.msra.mxu0 0.0
    %218 = vmatprep.subr.mxu0 0.0
    %219 = vmatpush1.msra.mxu0 0.0
    %220 = vmatprep.subr.mxu0 0.0
    %221 = vmatpush1.msra.mxu0 0.0
    %222 = vmatprep.subr.mxu0 0.0
    %223 = vmatpush1.msra.mxu0 0.0
    %224 = vmatprep.subr.mxu0 0.0
    %225 = vmatpush1.msra.mxu0 0.0
    %226 = vmatprep.subr.mxu0 0.0
    %227 = vmatpush1.msra.mxu0 0.0
    %228 = vmatprep.subr.mxu0 0.0
    %229 = vmatpush1.msra.mxu0 0.0
    %230 = vmatprep.subr.mxu0 0.0
    %231 = vmatpush1.msra.mxu0 0.0
    %232 = vmatprep.subr.mxu0 0.0
    %233 = vmatpush1.msra.mxu0 0.0
    %234 = vmatprep.subr.mxu0 0.0
    %235 = vmatpush1.msra.mxu0 0.0
    %236 = vmatprep.subr.mxu0 0.0
    %237 = vmatpush1.msra.mxu0 0.0
    %238 = vmatprep.subr.mxu0 0.0
    %239 = vmatpush1.msra.mxu0 0.0
    %240 = vmatprep.subr.mxu0 0.0
    %241 = vmatpush1.msra.mxu0 0.0
    %242 = vmatprep.subr.mxu0 0.0
    %243 = vmatpush1.msra.mxu0 0.0
    %244 = vmatprep.subr.mxu0 0.0
    %245 = vmatpush1.msra.mxu0 0.0
    %246 = vmatprep.subr.mxu0 0.0
    %247 = vmatpush1.msra.mxu0 0.0
    %248 = vmatprep.subr.mxu0 0.0
    %249 = vmatpush1.msra.mxu0 0.0
    %250 = vmatprep.subr.mxu0 0.0
    %251 = vmatpush1.msra.mxu0 0.0
    %252 = vmatprep.subr.mxu0 0.0
    %253 = vmatpush1.msra.mxu0 0.0
    %254 = vmatprep.subr.mxu0 0.0
    %255 = vmatpush1.msra.mxu0 0.0
    %256 = vmatprep.subr.mxu0 0.0
    %257 = vmatpush1.msra.mxu0 0.0
    %258 = vmatprep.subr.mxu0 0.0
    %259 = vmatpush1.msra.mxu0 0.0
    %260 = vmatprep.mubr.f32.mxu0 0.0
    %261 = vmatmul.mubr.f32.gmra.mrb[0].mxu0 %v123
    %v262 = vpop.f32.mrb[0].mxu0
    %v263 = vadd.f32 %v119, %v262
    %v264 = vpop.f32.mrb[0].mxu0
    %v265 = vadd.f32 %v119, %v264
    %266 = vdwg.mxu0
    %267 = vrot.lane.b32.xlu0 %v192, 1
    %v268 = vpop.permute.xlu0 %267
    %269 = vrot.lane.b32.xlu0 %v194, 1
    %v270 = vpop.permute.xlu0 %269
    %271 = vrot.lane.b32.xlu0 %v263, 1
    %v272 = vpop.permute.xlu0 %271
    %273 = vrot.lane.b32.xlu0 %v265, 1
    %v274 = vpop.permute.xlu0 %273
    %vm275 = vcmp.lt.s32.totalorder %v38, 1
    %v276 = vsel %vm275, %v272, %v274
    %v277 = vsel %vm275, %v270, %v272
    %v278 = vsel %vm275, %v268, %v270
    %v279 = vsel %vm275, %v274, %v268
    %v280 = vsel %vm90, 1, 0
    %v281 = vsel %vm91, 1, 0
    %v282 = vsel %vm92, 1, 0
    %v283 = vsel %vm93, 1, 0
    %vm284 = vcmp.eq.s32.totalorder %v280, 1
    %vm285 = vcmp.eq.s32.totalorder %v281, 1
    %vm286 = vcmp.eq.s32.totalorder %v282, 1
    %vm287 = vcmp.eq.s32.totalorder %v283, 1
    %v288 = vsel %vm284, %v279, 0.0
    %v289 = vsel %vm285, %v278, 0.0
    %v290 = vsel %vm286, %v277, 0.0
    %v291 = vsel %vm287, %v276, 0.0
    %292 = vrot.lane.b32.xlu0 %v192, 127
    %v293 = vpop.permute.xlu0 %292
    %294 = vrot.lane.b32.xlu0 %v194, 127
    %v295 = vpop.permute.xlu0 %294
    %296 = vrot.lane.b32.xlu0 %v263, 127
    %v297 = vpop.permute.xlu0 %296
    %298 = vrot.lane.b32.xlu0 %v265, 127
    %v299 = vpop.permute.xlu0 %298
    %vm300 = vcmp.lt.s32.totalorder %v38, 127
    %v301 = vsel %vm300, %v297, %v299
    %v302 = vsel %vm300, %v295, %v297
    %v303 = vsel %vm300, %v293, %v295
    %v304 = vsel %vm300, %v299, %v293
    %v305 = vsel %vm94, 1, 0
    %v306 = vsel %vm95, 1, 0
    %v307 = vsel %vm96, 1, 0
    %v308 = vsel %vm97, 1, 0
    %vm309 = vcmp.eq.s32.totalorder %v305, 1
    %vm310 = vcmp.eq.s32.totalorder %v306, 1
    %vm311 = vcmp.eq.s32.totalorder %v307, 1
    %vm312 = vcmp.eq.s32.totalorder %v308, 1
    %v313 = vsel %vm309, %v303, 0.0
    %v314 = vsel %vm310, %v302, 0.0
    %v315 = vsel %vm311, %v301, 0.0
    %v316 = vsel %vm312, %v304, 0.0
    %317 = vst [vmem:[#allocation2] sm:$0xff] %v288
    %318 = vst [vmem:[#allocation2 + $0x8] sm:$0xff] %v289
    %319 = vst [vmem:[#allocation2 + $0x10] sm:$0xff] %v290
    %320 = vst [vmem:[#allocation2 + $0x18] sm:$0xff] %v291
    %321 = vst [vmem:[#allocation2 + $0x20] sm:$0xff] %v192
    %322 = vst [vmem:[#allocation2 + $0x28] sm:$0xff] %v194
    %323 = vst [vmem:[#allocation2 + $0x30] sm:$0xff] %v263
    %324 = vst [vmem:[#allocation2 + $0x38] sm:$0xff] %v265
    %325 = vst [vmem:[#allocation2 + $0x40] sm:$0xff] %v313
    %326 = vst [vmem:[#allocation2 + $0x48] sm:$0xff] %v314
    %327 = vst [vmem:[#allocation2 + $0x50] sm:$0xff] %v315
    %328 = vst [vmem:[#allocation2 + $0x58] sm:$0xff] %v316
    %v329 = vld [vmem:[%s3] sm:$0xff]
    %v330 = vld [vmem:[#allocation2] sm:$0xff]
    %v331 = vld [vmem:[#allocation2 + $0x8] sm:$0xff]
    %v332 = vld [vmem:[#allocation2 + $0x10] sm:$0xff]
    %v333 = vld [vmem:[#allocation2 + $0x18] sm:$0xff]
    %v334 = vld [vmem:[#allocation2 + $0x20] sm:$0xff]
    %v335 = vld [vmem:[#allocation2 + $0x28] sm:$0xff]
    %v336 = vld [vmem:[#allocation2 + $0x30] sm:$0xff]
    %v337 = vld [vmem:[#allocation2 + $0x38] sm:$0xff]
    %v338 = vld [vmem:[#allocation2 + $0x40] sm:$0xff]
    %v339 = vld [vmem:[#allocation2 + $0x48] sm:$0xff]
    %v340 = vld [vmem:[#allocation2 + $0x50] sm:$0xff]
    %v341 = vld [vmem:[#allocation2 + $0x58] sm:$0xff]
    %v342 = vld [vmem:[%s4] sm:$0xff]
    %344 = vset.pattern.permute.xlu0 0
    %345 = vperm.xlu0 %344, %v342
    %v346 = vpop.permute.xlu0 %345
    %vm348 = vcmask 195584
    %v350 = vsel %vm348, %v329, 0
    %352 = vmatprep.subr.mxu0 %v331
    %353 = vmatpush1.msra.mxu0 %v330
    %354 = vmatprep.subr.mxu0 %v335
    %355 = vmatpush1.msra.mxu0 %v334
    %356 = vmatprep.subr.mxu0 %v339
    %357 = vmatpush1.msra.mxu0 %v338
    %358 = vmatprep.subr.mxu0 0.0
    %359 = vmatpush1.msra.mxu0 0.0
    %360 = vmatprep.subr.mxu0 0.0
    %361 = vmatpush1.msra.mxu0 0.0
    %362 = vmatprep.subr.mxu0 0.0
    %363 = vmatpush1.msra.mxu0 0.0
    %364 = vmatprep.subr.mxu0 0.0
    %365 = vmatpush1.msra.mxu0 0.0
    %366 = vmatprep.subr.mxu0 0.0
    %367 = vmatpush1.msra.mxu0 0.0
    %368 = vmatprep.subr.mxu0 0.0
    %369 = vmatpush1.msra.mxu0 0.0
    %370 = vmatprep.subr.mxu0 0.0
    %371 = vmatpush1.msra.mxu0 0.0
    %372 = vmatprep.subr.mxu0 0.0
    %373 = vmatpush1.msra.mxu0 0.0
    %374 = vmatprep.subr.mxu0 0.0
    %375 = vmatpush1.msra.mxu0 0.0
    %376 = vmatprep.subr.mxu0 0.0
    %377 = vmatpush1.msra.mxu0 0.0
    %378 = vmatprep.subr.mxu0 0.0
    %379 = vmatpush1.msra.mxu0 0.0
    %380 = vmatprep.subr.mxu0 0.0
    %381 = vmatpush1.msra.mxu0 0.0
    %382 = vmatprep.subr.mxu0 0.0
    %383 = vmatpush1.msra.mxu0 0.0
    %384 = vmatprep.subr.mxu0 0.0
    %385 = vmatpush1.msra.mxu0 0.0
    %386 = vmatprep.subr.mxu0 0.0
    %387 = vmatpush1.msra.mxu0 0.0
    %388 = vmatprep.subr.mxu0 0.0
    %389 = vmatpush1.msra.mxu0 0.0
    %390 = vmatprep.subr.mxu0 0.0
    %391 = vmatpush1.msra.mxu0 0.0
    %392 = vmatprep.subr.mxu0 0.0
    %393 = vmatpush1.msra.mxu0 0.0
    %394 = vmatprep.subr.mxu0 0.0
    %395 = vmatpush1.msra.mxu0 0.0
    %396 = vmatprep.subr.mxu0 0.0
    %397 = vmatpush1.msra.mxu0 0.0
    %398 = vmatprep.subr.mxu0 0.0
    %399 = vmatpush1.msra.mxu0 0.0
    %400 = vmatprep.subr.mxu0 0.0
    %401 = vmatpush1.msra.mxu0 0.0
    %402 = vmatprep.subr.mxu0 0.0
    %403 = vmatpush1.msra.mxu0 0.0
    %404 = vmatprep.subr.mxu0 0.0
    %405 = vmatpush1.msra.mxu0 0.0
    %406 = vmatprep.subr.mxu0 0.0
    %407 = vmatpush1.msra.mxu0 0.0
    %408 = vmatprep.subr.mxu0 0.0
    %409 = vmatpush1.msra.mxu0 0.0
    %410 = vmatprep.subr.mxu0 0.0
    %411 = vmatpush1.msra.mxu0 0.0
    %412 = vmatprep.subr.mxu0 0.0
    %413 = vmatpush1.msra.mxu0 0.0
    %414 = vmatprep.subr.mxu0 0.0
    %415 = vmatpush1.msra.mxu0 0.0
    %416 = vmatprep.mubr.f32.mxu0 0.0
    %417 = vmatmul.mubr.f32.gmra.mrb[0].mxu0 %v350
    %v418 = vpop.f32.mrb[0].mxu0
    %v419 = vadd.f32 %v346, %v418
    %v420 = vpop.f32.mrb[0].mxu0
    %v421 = vadd.f32 %v346, %v420
    %422 = vdwg.mxu0
    %423 = vmatprep.subr.mxu0 %v333
    %424 = vmatpush1.msra.mxu0 %v332
    %425 = vmatprep.subr.mxu0 %v337
    %426 = vmatpush1.msra.mxu0 %v336
    %427 = vmatprep.subr.mxu0 %v341
    %428 = vmatpush1.msra.mxu0 %v340
    %429 = vmatprep.subr.mxu0 0.0
    %430 = vmatpush1.msra.mxu0 0.0
    %431 = vmatprep.subr.mxu0 0.0
    %432 = vmatpush1.msra.mxu0 0.0
    %433 = vmatprep.subr.mxu0 0.0
    %434 = vmatpush1.msra.mxu0 0.0
    %435 = vmatprep.subr.mxu0 0.0
    %436 = vmatpush1.msra.mxu0 0.0
    %437 = vmatprep.subr.mxu0 0.0
    %438 = vmatpush1.msra.mxu0 0.0
    %439 = vmatprep.subr.mxu0 0.0
    %440 = vmatpush1.msra.mxu0 0.0
    %441 = vmatprep.subr.mxu0 0.0
    %442 = vmatpush1.msra.mxu0 0.0
    %443 = vmatprep.subr.mxu0 0.0
    %444 = vmatpush1.msra.mxu0 0.0
    %445 = vmatprep.subr.mxu0 0.0
    %446 = vmatpush1.msra.mxu0 0.0
    %447 = vmatprep.subr.mxu0 0.0
    %448 = vmatpush1.msra.mxu0 0.0
    %449 = vmatprep.subr.mxu0 0.0
    %450 = vmatpush1.msra.mxu0 0.0
    %451 = vmatprep.subr.mxu0 0.0
    %452 = vmatpush1.msra.mxu0 0.0
    %453 = vmatprep.subr.mxu0 0.0
    %454 = vmatpush1.msra.mxu0 0.0
    %455 = vmatprep.subr.mxu0 0.0
    %456 = vmatpush1.msra.mxu0 0.0
    %457 = vmatprep.subr.mxu0 0.0
    %458 = vmatpush1.msra.mxu0 0.0
    %459 = vmatprep.subr.mxu0 0.0
    %460 = vmatpush1.msra.mxu0 0.0
    %461 = vmatprep.subr.mxu0 0.0
    %462 = vmatpush1.msra.mxu0 0.0
    %463 = vmatprep.subr.mxu0 0.0
    %464 = vmatpush1.msra.mxu0 0.0
    %465 = vmatprep.subr.mxu0 0.0
    %466 = vmatpush1.msra.mxu0 0.0
    %467 = vmatprep.subr.mxu0 0.0
    %468 = vmatpush1.msra.mxu0 0.0
    %469 = vmatprep.subr.mxu0 0.0
    %470 = vmatpush1.msra.mxu0 0.0
    %471 = vmatprep.subr.mxu0 0.0
    %472 = vmatpush1.msra.mxu0 0.0
    %473 = vmatprep.subr.mxu0 0.0
    %474 = vmatpush1.msra.mxu0 0.0
    %475 = vmatprep.subr.mxu0 0.0
    %476 = vmatpush1.msra.mxu0 0.0
    %477 = vmatprep.subr.mxu0 0.0
    %478 = vmatpush1.msra.mxu0 0.0
    %479 = vmatprep.subr.mxu0 0.0
    %480 = vmatpush1.msra.mxu0 0.0
    %481 = vmatprep.subr.mxu0 0.0
    %482 = vmatpush1.msra.mxu0 0.0
    %483 = vmatprep.subr.mxu0 0.0
    %484 = vmatpush1.msra.mxu0 0.0
    %485 = vmatprep.subr.mxu0 0.0
    %486 = vmatpush1.msra.mxu0 0.0
    %487 = vmatprep.mubr.f32.mxu0 0.0
    %488 = vmatmul.mubr.f32.gmra.mrb[0].mxu0 %v350
    %v489 = vpop.f32.mrb[0].mxu0
    %v490 = vadd.f32 %v346, %v489
    %v491 = vpop.f32.mrb[0].mxu0
    %v492 = vadd.f32 %v346, %v491
    %493 = vdwg.mxu0
    %v494 = vmax.f32 %v419, 0.0
    %v495 = vmax.f32 %v421, 0.0
    %v496 = vmax.f32 %v490, 0.0
    %v497 = vmax.f32 %v492, 0.0
    %v498 = vld [vmem:[%s5] sm:$0xff]
    %v499 = vld [vmem:[%s6] sm:$0xff]
    %501 = vset.pattern.permute.xlu0 0
    %502 = vperm.xlu0 %501, %v499
    %v503 = vpop.permute.xlu0 %502
    %v506 = vsel %vm121, %v498, 0
    %508 = vmatprep.subr.mxu0 %v495
    %509 = vmatpush1.msra.mxu0 %v494
    %510 = vmatprep.subr.mxu0 0.0
    %511 = vmatpush1.msra.mxu0 0.0
    %512 = vmatprep.subr.mxu0 0.0
    %513 = vmatpush1.msra.mxu0 0.0
    %514 = vmatprep.subr.mxu0 0.0
    %515 = vmatpush1.msra.mxu0 0.0
    %516 = vmatprep.subr.mxu0 0.0
    %517 = vmatpush1.msra.mxu0 0.0
    %518 = vmatprep.subr.mxu0 0.0
    %519 = vmatpush1.msra.mxu0 0.0
    %520 = vmatprep.subr.mxu0 0.0
    %521 = vmatpush1.msra.mxu0 0.0
    %522 = vmatprep.subr.mxu0 0.0
    %523 = vmatpush1.msra.mxu0 0.0
    %524 = vmatprep.subr.mxu0 0.0
    %525 = vmatpush1.msra.mxu0 0.0
    %526 = vmatprep.subr.mxu0 0.0
    %527 = vmatpush1.msra.mxu0 0.0
    %528 = vmatprep.subr.mxu0 0.0
    %529 = vmatpush1.msra.mxu0 0.0
    %530 = vmatprep.subr.mxu0 0.0
    %531 = vmatpush1.msra.mxu0 0.0
    %532 = vmatprep.subr.mxu0 0.0
    %533 = vmatpush1.msra.mxu0 0.0
    %534 = vmatprep.subr.mxu0 0.0
    %535 = vmatpush1.msra.mxu0 0.0
    %536 = vmatprep.subr.mxu0 0.0
    %537 = vmatpush1.msra.mxu0 0.0
    %538 = vmatprep.subr.mxu0 0.0
    %539 = vmatpush1.msra.mxu0 0.0
    %540 = vmatprep.subr.mxu0 0.0
    %541 = vmatpush1.msra.mxu0 0.0
    %542 = vmatprep.subr.mxu0 0.0
    %543 = vmatpush1.msra.mxu0 0.0
    %544 = vmatprep.subr.mxu0 0.0
    %545 = vmatpush1.msra.mxu0 0.0
    %546 = vmatprep.subr.mxu0 0.0
    %547 = vmatpush1.msra.mxu0 0.0
    %548 = vmatprep.subr.mxu0 0.0
    %549 = vmatpush1.msra.mxu0 0.0
    %550 = vmatprep.subr.mxu0 0.0
    %551 = vmatpush1.msra.mxu0 0.0
    %552 = vmatprep.subr.mxu0 0.0
    %553 = vmatpush1.msra.mxu0 0.0
    %554 = vmatprep.subr.mxu0 0.0
    %555 = vmatpush1.msra.mxu0 0.0
    %556 = vmatprep.subr.mxu0 0.0
    %557 = vmatpush1.msra.mxu0 0.0
    %558 = vmatprep.subr.mxu0 0.0
    %559 = vmatpush1.msra.mxu0 0.0
    %560 = vmatprep.subr.mxu0 0.0
    %561 = vmatpush1.msra.mxu0 0.0
    %562 = vmatprep.subr.mxu0 0.0
    %563 = vmatpush1.msra.mxu0 0.0
    %564 = vmatprep.subr.mxu0 0.0
    %565 = vmatpush1.msra.mxu0 0.0
    %566 = vmatprep.subr.mxu0 0.0
    %567 = vmatpush1.msra.mxu0 0.0
    %568 = vmatprep.subr.mxu0 0.0
    %569 = vmatpush1.msra.mxu0 0.0
    %570 = vmatprep.subr.mxu0 0.0
    %571 = vmatpush1.msra.mxu0 0.0
    %572 = vmatprep.mubr.f32.mxu0 0.0
    %573 = vmatmul.mubr.f32.gmra.mrb[0].mxu0 %v506
    %v574 = vpop.f32.mrb[0].mxu0
    %v575 = vadd.f32 %v503, %v574
    %v576 = vpop.f32.mrb[0].mxu0
    %v577 = vadd.f32 %v503, %v576
    %578 = vdwg.mxu0
    %579 = vmatprep.subr.mxu0 %v497
    %580 = vmatpush1.msra.mxu0 %v496
    %581 = vmatprep.subr.mxu0 0.0
    %582 = vmatpush1.msra.mxu0 0.0
    %583 = vmatprep.subr.mxu0 0.0
    %584 = vmatpush1.msra.mxu0 0.0
    %585 = vmatprep.subr.mxu0 0.0
    %586 = vmatpush1.msra.mxu0 0.0
    %587 = vmatprep.subr.mxu0 0.0
    %588 = vmatpush1.msra.mxu0 0.0
    %589 = vmatprep.subr.mxu0 0.0
    %590 = vmatpush1.msra.mxu0 0.0
    %591 = vmatprep.subr.mxu0 0.0
    %592 = vmatpush1.msra.mxu0 0.0
    %593 = vmatprep.subr.mxu0 0.0
    %594 = vmatpush1.msra.mxu0 0.0
    %595 = vmatprep.subr.mxu0 0.0
    %596 = vmatpush1.msra.mxu0 0.0
    %597 = vmatprep.subr.mxu0 0.0
    %598 = vmatpush1.msra.mxu0 0.0
    %599 = vmatprep.subr.mxu0 0.0
    %600 = vmatpush1.msra.mxu0 0.0
    %601 = vmatprep.subr.mxu0 0.0
    %602 = vmatpush1.msra.mxu0 0.0
    %603 = vmatprep.subr.mxu0 0.0
    %604 = vmatpush1.msra.mxu0 0.0
    %605 = vmatprep.subr.mxu0 0.0
    %606 = vmatpush1.msra.mxu0 0.0
    %607 = vmatprep.subr.mxu0 0.0
    %608 = vmatpush1.msra.mxu0 0.0
    %609 = vmatprep.subr.mxu0 0.0
    %610 = vmatpush1.msra.mxu0 0.0
    %611 = vmatprep.subr.mxu0 0.0
    %612 = vmatpush1.msra.mxu0 0.0
    %613 = vmatprep.subr.mxu0 0.0
    %614 = vmatpush1.msra.mxu0 0.0
    %615 = vmatprep.subr.mxu0 0.0
    %616 = vmatpush1.msra.mxu0 0.0
    %617 = vmatprep.subr.mxu0 0.0
    %618 = vmatpush1.msra.mxu0 0.0
    %619 = vmatprep.subr.mxu0 0.0
    %620 = vmatpush1.msra.mxu0 0.0
    %621 = vmatprep.subr.mxu0 0.0
    %622 = vmatpush1.msra.mxu0 0.0
    %623 = vmatprep.subr.mxu0 0.0
    %624 = vmatpush1.msra.mxu0 0.0
    %625 = vmatprep.subr.mxu0 0.0
    %626 = vmatpush1.msra.mxu0 0.0
    %627 = vmatprep.subr.mxu0 0.0
    %628 = vmatpush1.msra.mxu0 0.0
    %629 = vmatprep.subr.mxu0 0.0
    %630 = vmatpush1.msra.mxu0 0.0
    %631 = vmatprep.subr.mxu0 0.0
    %632 = vmatpush1.msra.mxu0 0.0
    %633 = vmatprep.subr.mxu0 0.0
    %634 = vmatpush1.msra.mxu0 0.0
    %635 = vmatprep.subr.mxu0 0.0
    %636 = vmatpush1.msra.mxu0 0.0
    %637 = vmatprep.subr.mxu0 0.0
    %638 = vmatpush1.msra.mxu0 0.0
    %639 = vmatprep.subr.mxu0 0.0
    %640 = vmatpush1.msra.mxu0 0.0
    %641 = vmatprep.subr.mxu0 0.0
    %642 = vmatpush1.msra.mxu0 0.0
    %643 = vmatprep.mubr.f32.mxu0 0.0
    %644 = vmatmul.mubr.f32.gmra.mrb[0].mxu0 %v506
    %v645 = vpop.f32.mrb[0].mxu0
    %v646 = vadd.f32 %v503, %v645
    %v647 = vpop.f32.mrb[0].mxu0
    %v648 = vadd.f32 %v503, %v647
    %649 = vdwg.mxu0
    %v650 = vadd.f32 %v192, %v575
    %v651 = vadd.f32 %v194, %v577
    %v652 = vadd.f32 %v263, %v646
    %v653 = vadd.f32 %v265, %v648
    %654 = vrot.lane.b32.xlu0 %v650, 2
    %v655 = vpop.permute.xlu0 %654
    %656 = vrot.lane.b32.xlu0 %v651, 2
    %v657 = vpop.permute.xlu0 %656
    %658 = vrot.lane.b32.xlu0 %v652, 2
    %v659 = vpop.permute.xlu0 %658
    %660 = vrot.lane.b32.xlu0 %v653, 2
    %v661 = vpop.permute.xlu0 %660
    %vm662 = vcmp.lt.s32.totalorder %v38, 2
    %v663 = vsel %vm662, %v659, %v661
    %v664 = vsel %vm662, %v657, %v659
    %v665 = vsel %vm662, %v655, %v657
    %v666 = vsel %vm662, %v661, %v655
    %v667 = vsel %vm98, 1, 0
    %v668 = vsel %vm99, 1, 0
    %v669 = vsel %vm100, 1, 0
    %v670 = vsel %vm101, 1, 0
    %vm671 = vcmp.eq.s32.totalorder %v667, 1
    %vm672 = vcmp.eq.s32.totalorder %v668, 1
    %vm673 = vcmp.eq.s32.totalorder %v669, 1
    %vm674 = vcmp.eq.s32.totalorder %v670, 1
    %v675 = vsel %vm671, %v666, 0.0
    %v676 = vsel %vm672, %v665, 0.0
    %v677 = vsel %vm673, %v664, 0.0
    %v678 = vsel %vm674, %v663, 0.0
    %679 = vrot.lane.b32.xlu0 %v650, 126
    %v680 = vpop.permute.xlu0 %679
    %681 = vrot.lane.b32.xlu0 %v651, 126
    %v682 = vpop.permute.xlu0 %681
    %683 = vrot.lane.b32.xlu0 %v652, 126
    %v684 = vpop.permute.xlu0 %683
    %685 = vrot.lane.b32.xlu0 %v653, 126
    %v686 = vpop.permute.xlu0 %685
    %vm687 = vcmp.lt.s32.totalorder %v38, 126
    %v688 = vsel %vm687, %v684, %v686
    %v689 = vsel %vm687, %v682, %v684
    %v690 = vsel %vm687, %v680, %v682
    %v691 = vsel %vm687, %v686, %v680
    %v692 = vsel %vm102, 1, 0
    %v693 = vsel %vm103, 1, 0
    %v694 = vsel %vm104, 1, 0
    %v695 = vsel %vm105, 1, 0
    %vm696 = vcmp.eq.s32.totalorder %v692, 1
    %vm697 = vcmp.eq.s32.totalorder %v693, 1
    %vm698 = vcmp.eq.s32.totalorder %v694, 1
    %vm699 = vcmp.eq.s32.totalorder %v695, 1
    %v700 = vsel %vm696, %v690, 0.0
    %v701 = vsel %vm697, %v689, 0.0
    %v702 = vsel %vm698, %v688, 0.0
    %v703 = vsel %vm699, %v691, 0.0
    %704 = vst [vmem:[#allocation2] sm:$0xff] %v675
    %705 = vst [vmem:[#allocation2 + $0x8] sm:$0xff] %v676
    %706 = vst [vmem:[#allocation2 + $0x10] sm:$0xff] %v677
    %707 = vst [vmem:[#allocation2 + $0x18] sm:$0xff] %v678
    %708 = vst [vmem:[#allocation2 + $0x20] sm:$0xff] %v650
    %709 = vst [vmem:[#allocation2 + $0x28] sm:$0xff] %v651
    %710 = vst [vmem:[#allocation2 + $0x30] sm:$0xff] %v652
    %711 = vst [vmem:[#allocation2 + $0x38] sm:$0xff] %v653
    %712 = vst [vmem:[#allocation2 + $0x40] sm:$0xff] %v700
    %713 = vst [vmem:[#allocation2 + $0x48] sm:$0xff] %v701
    %714 = vst [vmem:[#allocation2 + $0x50] sm:$0xff] %v702
    %715 = vst [vmem:[#allocation2 + $0x58] sm:$0xff] %v703
    %s716 = scalar_lea.vmem %s3, 8
    %v717 = vld [vmem:[%s716] sm:$0xff]
    %v718 = vld [vmem:[#allocation2] sm:$0xff]
    %v719 = vld [vmem:[#allocation2 + $0x8] sm:$0xff]
    %v720 = vld [vmem:[#allocation2 + $0x10] sm:$0xff]
    %v721 = vld [vmem:[#allocation2 + $0x18] sm:$0xff]
    %v722 = vld [vmem:[#allocation2 + $0x20] sm:$0xff]
    %v723 = vld [vmem:[#allocation2 + $0x28] sm:$0xff]
    %v724 = vld [vmem:[#allocation2 + $0x30] sm:$0xff]
    %v725 = vld [vmem:[#allocation2 + $0x38] sm:$0xff]
    %v726 = vld [vmem:[#allocation2 + $0x40] sm:$0xff]
    %v727 = vld [vmem:[#allocation2 + $0x48] sm:$0xff]
    %v728 = vld [vmem:[#allocation2 + $0x50] sm:$0xff]
    %v729 = vld [vmem:[#allocation2 + $0x58] sm:$0xff]
    %s730 = scalar_lea.vmem %s4, 8
    %v731 = vld [vmem:[%s730] sm:$0xff]
    %733 = vset.pattern.permute.xlu0 0
    %734 = vperm.xlu0 %733, %v731
    %v735 = vpop.permute.xlu0 %734
    %v738 = vsel %vm348, %v717, 0
    %740 = vmatprep.subr.mxu0 %v719
    %741 = vmatpush1.msra.mxu0 %v718
    %742 = vmatprep.subr.mxu0 %v723
    %743 = vmatpush1.msra.mxu0 %v722
    %744 = vmatprep.subr.mxu0 %v727
    %745 = vmatpush1.msra.mxu0 %v726
    %746 = vmatprep.subr.mxu0 0.0
    %747 = vmatpush1.msra.mxu0 0.0
    %748 = vmatprep.subr.mxu0 0.0
    %749 = vmatpush1.msra.mxu0 0.0
    %750 = vmatprep.subr.mxu0 0.0
    %751 = vmatpush1.msra.mxu0 0.0
    %752 = vmatprep.subr.mxu0 0.0
    %753 = vmatpush1.msra.mxu0 0.0
    %754 = vmatprep.subr.mxu0 0.0
    %755 = vmatpush1.msra.mxu0 0.0
    %756 = vmatprep.subr.mxu0 0.0
    %757 = vmatpush1.msra.mxu0 0.0
    %758 = vmatprep.subr.mxu0 0.0
    %759 = vmatpush1.msra.mxu0 0.0
    %760 = vmatprep.subr.mxu0 0.0
    %761 = vmatpush1.msra.mxu0 0.0
    %762 = vmatprep.subr.mxu0 0.0
    %763 = vmatpush1.msra.mxu0 0.0
    %764 = vmatprep.subr.mxu0 0.0
    %765 = vmatpush1.msra.mxu0 0.0
    %766 = vmatprep.subr.mxu0 0.0
    %767 = vmatpush1.msra.mxu0 0.0
    %768 = vmatprep.subr.mxu0 0.0
    %769 = vmatpush1.msra.mxu0 0.0
    %770 = vmatprep.subr.mxu0 0.0
    %771 = vmatpush1.msra.mxu0 0.0
    %772 = vmatprep.subr.mxu0 0.0
    %773 = vmatpush1.msra.mxu0 0.0
    %774 = vmatprep.subr.mxu0 0.0
    %775 = vmatpush1.msra.mxu0 0.0
    %776 = vmatprep.subr.mxu0 0.0
    %777 = vmatpush1.msra.mxu0 0.0
    %778 = vmatprep.subr.mxu0 0.0
    %779 = vmatpush1.msra.mxu0 0.0
    %780 = vmatprep.subr.mxu0 0.0
    %781 = vmatpush1.msra.mxu0 0.0
    %782 = vmatprep.subr.mxu0 0.0
    %783 = vmatpush1.msra.mxu0 0.0
    %784 = vmatprep.subr.mxu0 0.0
    %785 = vmatpush1.msra.mxu0 0.0
    %786 = vmatprep.subr.mxu0 0.0
    %787 = vmatpush1.msra.mxu0 0.0
    %788 = vmatprep.subr.mxu0 0.0
    %789 = vmatpush1.msra.mxu0 0.0
    %790 = vmatprep.subr.mxu0 0.0
    %791 = vmatpush1.msra.mxu0 0.0
    %792 = vmatprep.subr.mxu0 0.0
    %793 = vmatpush1.msra.mxu0 0.0
    %794 = vmatprep.subr.mxu0 0.0
    %795 = vmatpush1.msra.mxu0 0.0
    %796 = vmatprep.subr.mxu0 0.0
    %797 = vmatpush1.msra.mxu0 0.0
    %798 = vmatprep.subr.mxu0 0.0
    %799 = vmatpush1.msra.mxu0 0.0
    %800 = vmatprep.subr.mxu0 0.0
    %801 = vmatpush1.msra.mxu0 0.0
    %802 = vmatprep.subr.mxu0 0.0
    %803 = vmatpush1.msra.mxu0 0.0
    %804 = vmatprep.mubr.f32.mxu0 0.0
    %805 = vmatmul.mubr.f32.gmra.mrb[0].mxu0 %v738
    %v806 = vpop.f32.mrb[0].mxu0
    %v807 = vadd.f32 %v735, %v806
    %v808 = vpop.f32.mrb[0].mxu0
    %v809 = vadd.f32 %v735, %v808
    %810 = vdwg.mxu0
    %811 = vmatprep.subr.mxu0 %v721
    %812 = vmatpush1.msra.mxu0 %v720
    %813 = vmatprep.subr.mxu0 %v725
    %814 = vmatpush1.msra.mxu0 %v724
    %815 = vmatprep.subr.mxu0 %v729
    %816 = vmatpush1.msra.mxu0 %v728
    %817 = vmatprep.subr.mxu0 0.0
    %818 = vmatpush1.msra.mxu0 0.0
    %819 = vmatprep.subr.mxu0 0.0
    %820 = vmatpush1.msra.mxu0 0.0
    %821 = vmatprep.subr.mxu0 0.0
    %822 = vmatpush1.msra.mxu0 0.0
    %823 = vmatprep.subr.mxu0 0.0
    %824 = vmatpush1.msra.mxu0 0.0
    %825 = vmatprep.subr.mxu0 0.0
    %826 = vmatpush1.msra.mxu0 0.0
    %827 = vmatprep.subr.mxu0 0.0
    %828 = vmatpush1.msra.mxu0 0.0
    %829 = vmatprep.subr.mxu0 0.0
    %830 = vmatpush1.msra.mxu0 0.0
    %831 = vmatprep.subr.mxu0 0.0
    %832 = vmatpush1.msra.mxu0 0.0
    %833 = vmatprep.subr.mxu0 0.0
    %834 = vmatpush1.msra.mxu0 0.0
    %835 = vmatprep.subr.mxu0 0.0
    %836 = vmatpush1.msra.mxu0 0.0
    %837 = vmatprep.subr.mxu0 0.0
    %838 = vmatpush1.msra.mxu0 0.0
    %839 = vmatprep.subr.mxu0 0.0
    %840 = vmatpush1.msra.mxu0 0.0
    %841 = vmatprep.subr.mxu0 0.0
    %842 = vmatpush1.msra.mxu0 0.0
    %843 = vmatprep.subr.mxu0 0.0
    %844 = vmatpush1.msra.mxu0 0.0
    %845 = vmatprep.subr.mxu0 0.0
    %846 = vmatpush1.msra.mxu0 0.0
    %847 = vmatprep.subr.mxu0 0.0
    %848 = vmatpush1.msra.mxu0 0.0
    %849 = vmatprep.subr.mxu0 0.0
    %850 = vmatpush1.msra.mxu0 0.0
    %851 = vmatprep.subr.mxu0 0.0
    %852 = vmatpush1.msra.mxu0 0.0
    %853 = vmatprep.subr.mxu0 0.0
    %854 = vmatpush1.msra.mxu0 0.0
    %855 = vmatprep.subr.mxu0 0.0
    %856 = vmatpush1.msra.mxu0 0.0
    %857 = vmatprep.subr.mxu0 0.0
    %858 = vmatpush1.msra.mxu0 0.0
    %859 = vmatprep.subr.mxu0 0.0
    %860 = vmatpush1.msra.mxu0 0.0
    %861 = vmatprep.subr.mxu0 0.0
    %862 = vmatpush1.msra.mxu0 0.0
    %863 = vmatprep.subr.mxu0 0.0
    %864 = vmatpush1.msra.mxu0 0.0
    %865 = vmatprep.subr.mxu0 0.0
    %866 = vmatpush1.msra.mxu0 0.0
    %867 = vmatprep.subr.mxu0 0.0
    %868 = vmatpush1.msra.mxu0 0.0
    %869 = vmatprep.subr.mxu0 0.0
    %870 = vmatpush1.msra.mxu0 0.0
    %871 = vmatprep.subr.mxu0 0.0
    %872 = vmatpush1.msra.mxu0 0.0
    %873 = vmatprep.subr.mxu0 0.0
    %874 = vmatpush1.msra.mxu0 0.0
    %875 = vmatprep.mubr.f32.mxu0 0.0
    %876 = vmatmul.mubr.f32.gmra.mrb[0].mxu0 %v738
    %v877 = vpop.f32.mrb[0].mxu0
    %v878 = vadd.f32 %v735, %v877
    %v879 = vpop.f32.mrb[0].mxu0
    %v880 = vadd.f32 %v735, %v879
    %881 = vdwg.mxu0
    %v882 = vmax.f32 %v807, 0.0
    %v883 = vmax.f32 %v809, 0.0
    %v884 = vmax.f32 %v878, 0.0
    %v885 = vmax.f32 %v880, 0.0
    %s886 = scalar_lea.vmem %s5, 8
    %v887 = vld [vmem:[%s886] sm:$0xff]
    %s888 = scalar_lea.vmem %s6, 8
    %v889 = vld [vmem:[%s888] sm:$0xff]
    %891 = vset.pattern.permute.xlu0 0
    %892 = vperm.xlu0 %891, %v889
    %v893 = vpop.permute.xlu0 %892
    %v896 = vsel %vm121, %v887, 0
    %898 = vmatprep.subr.mxu0 %v883
    %899 = vmatpush1.msra.mxu0 %v882
    %900 = vmatprep.subr.mxu0 0.0
    %901 = vmatpush1.msra.mxu0 0.0
    %902 = vmatprep.subr.mxu0 0.0
    %903 = vmatpush1.msra.mxu0 0.0
    %904 = vmatprep.subr.mxu0 0.0
    %905 = vmatpush1.msra.mxu0 0.0
    %906 = vmatprep.subr.mxu0 0.0
    %907 = vmatpush1.msra.mxu0 0.0
    %908 = vmatprep.subr.mxu0 0.0
    %909 = vmatpush1.msra.mxu0 0.0
    %910 = vmatprep.subr.mxu0 0.0
    %911 = vmatpush1.msra.mxu0 0.0
    %912 = vmatprep.subr.mxu0 0.0
    %913 = vmatpush1.msra.mxu0 0.0
    %914 = vmatprep.subr.mxu0 0.0
    %915 = vmatpush1.msra.mxu0 0.0
    %916 = vmatprep.subr.mxu0 0.0
    %917 = vmatpush1.msra.mxu0 0.0
    %918 = vmatprep.subr.mxu0 0.0
    %919 = vmatpush1.msra.mxu0 0.0
    %920 = vmatprep.subr.mxu0 0.0
    %921 = vmatpush1.msra.mxu0 0.0
    %922 = vmatprep.subr.mxu0 0.0
    %923 = vmatpush1.msra.mxu0 0.0
    %924 = vmatprep.subr.mxu0 0.0
    %925 = vmatpush1.msra.mxu0 0.0
    %926 = vmatprep.subr.mxu0 0.0
    %927 = vmatpush1.msra.mxu0 0.0
    %928 = vmatprep.subr.mxu0 0.0
    %929 = vmatpush1.msra.mxu0 0.0
    %930 = vmatprep.subr.mxu0 0.0
    %931 = vmatpush1.msra.mxu0 0.0
    %932 = vmatprep.subr.mxu0 0.0
    %933 = vmatpush1.msra.mxu0 0.0
    %934 = vmatprep.subr.mxu0 0.0
    %935 = vmatpush1.msra.mxu0 0.0
    %936 = vmatprep.subr.mxu0 0.0
    %937 = vmatpush1.msra.mxu0 0.0
    %938 = vmatprep.subr.mxu0 0.0
    %939 = vmatpush1.msra.mxu0 0.0
    %940 = vmatprep.subr.mxu0 0.0
    %941 = vmatpush1.msra.mxu0 0.0
    %942 = vmatprep.subr.mxu0 0.0
    %943 = vmatpush1.msra.mxu0 0.0
    %944 = vmatprep.subr.mxu0 0.0
    %945 = vmatpush1.msra.mxu0 0.0
    %946 = vmatprep.subr.mxu0 0.0
    %947 = vmatpush1.msra.mxu0 0.0
    %948 = vmatprep.subr.mxu0 0.0
    %949 = vmatpush1.msra.mxu0 0.0
    %950 = vmatprep.subr.mxu0 0.0
    %951 = vmatpush1.msra.mxu0 0.0
    %952 = vmatprep.subr.mxu0 0.0
    %953 = vmatpush1.msra.mxu0 0.0
    %954 = vmatprep.subr.mxu0 0.0
    %955 = vmatpush1.msra.mxu0 0.0
    %956 = vmatprep.subr.mxu0 0.0
    %957 = vmatpush1.msra.mxu0 0.0
    %958 = vmatprep.subr.mxu0 0.0
    %959 = vmatpush1.msra.mxu0 0.0
    %960 = vmatprep.subr.mxu0 0.0
    %961 = vmatpush1.msra.mxu0 0.0
    %962 = vmatprep.mubr.f32.mxu0 0.0
    %963 = vmatmul.mubr.f32.gmra.mrb[0].mxu0 %v896
    %v964 = vpop.f32.mrb[0].mxu0
    %v965 = vadd.f32 %v893, %v964
    %v966 = vpop.f32.mrb[0].mxu0
    %v967 = vadd.f32 %v893, %v966
    %968 = vdwg.mxu0
    %969 = vmatprep.subr.mxu0 %v885
    %970 = vmatpush1.msra.mxu0 %v884
    %971 = vmatprep.subr.mxu0 0.0
    %972 = vmatpush1.msra.mxu0 0.0
    %973 = vmatprep.subr.mxu0 0.0
    %974 = vmatpush1.msra.mxu0 0.0
    %975 = vmatprep.subr.mxu0 0.0
    %976 = vmatpush1.msra.mxu0 0.0
    %977 = vmatprep.subr.mxu0 0.0
    %978 = vmatpush1.msra.mxu0 0.0
    %979 = vmatprep.subr.mxu0 0.0
    %980 = vmatpush1.msra.mxu0 0.0
    %981 = vmatprep.subr.mxu0 0.0
    %982 = vmatpush1.msra.mxu0 0.0
    %983 = vmatprep.subr.mxu0 0.0
    %984 = vmatpush1.msra.mxu0 0.0
    %985 = vmatprep.subr.mxu0 0.0
    %986 = vmatpush1.msra.mxu0 0.0
    %987 = vmatprep.subr.mxu0 0.0
    %988 = vmatpush1.msra.mxu0 0.0
    %989 = vmatprep.subr.mxu0 0.0
    %990 = vmatpush1.msra.mxu0 0.0
    %991 = vmatprep.subr.mxu0 0.0
    %992 = vmatpush1.msra.mxu0 0.0
    %993 = vmatprep.subr.mxu0 0.0
    %994 = vmatpush1.msra.mxu0 0.0
    %995 = vmatprep.subr.mxu0 0.0
    %996 = vmatpush1.msra.mxu0 0.0
    %997 = vmatprep.subr.mxu0 0.0
    %998 = vmatpush1.msra.mxu0 0.0
    %999 = vmatprep.subr.mxu0 0.0
    %1000 = vmatpush1.msra.mxu0 0.0
    %1001 = vmatprep.subr.mxu0 0.0
    %1002 = vmatpush1.msra.mxu0 0.0
    %1003 = vmatprep.subr.mxu0 0.0
    %1004 = vmatpush1.msra.mxu0 0.0
    %1005 = vmatprep.subr.mxu0 0.0
    %1006 = vmatpush1.msra.mxu0 0.0
    %1007 = vmatprep.subr.mxu0 0.0
    %1008 = vmatpush1.msra.mxu0 0.0
    %1009 = vmatprep.subr.mxu0 0.0
    %1010 = vmatpush1.msra.mxu0 0.0
    %1011 = vmatprep.subr.mxu0 0.0
    %1012 = vmatpush1.msra.mxu0 0.0
    %1013 = vmatprep.subr.mxu0 0.0
    %1014 = vmatpush1.msra.mxu0 0.0
    %1015 = vmatprep.subr.mxu0 0.0
    %1016 = vmatpush1.msra.mxu0 0.0
    %1017 = vmatprep.subr.mxu0 0.0
    %1018 = vmatpush1.msra.mxu0 0.0
    %1019 = vmatprep.subr.mxu0 0.0
    %1020 = vmatpush1.msra.mxu0 0.0
    %1021 = vmatprep.subr.mxu0 0.0
    %1022 = vmatpush1.msra.mxu0 0.0
    %1023 = vmatprep.subr.mxu0 0.0
    %1024 = vmatpush1.msra.mxu0 0.0
    %1025 = vmatprep.subr.mxu0 0.0
    %1026 = vmatpush1.msra.mxu0 0.0
    %1027 = vmatprep.subr.mxu0 0.0
    %1028 = vmatpush1.msra.mxu0 0.0
    %1029 = vmatprep.subr.mxu0 0.0
    %1030 = vmatpush1.msra.mxu0 0.0
    %1031 = vmatprep.subr.mxu0 0.0
    %1032 = vmatpush1.msra.mxu0 0.0
    %1033 = vmatprep.mubr.f32.mxu0 0.0
    %1034 = vmatmul.mubr.f32.gmra.mrb[0].mxu0 %v896
    %v1035 = vpop.f32.mrb[0].mxu0
    %v1036 = vadd.f32 %v893, %v1035
    %v1037 = vpop.f32.mrb[0].mxu0
    %v1038 = vadd.f32 %v893, %v1037
    %1039 = vdwg.mxu0
    %v1040 = vadd.f32 %v650, %v965
    %v1041 = vadd.f32 %v651, %v967
    %v1042 = vadd.f32 %v652, %v1036
    %v1043 = vadd.f32 %v653, %v1038
    %1044 = vrot.lane.b32.xlu0 %v1040, 4
    %v1045 = vpop.permute.xlu0 %1044
    %1046 = vrot.lane.b32.xlu0 %v1041, 4
    %v1047 = vpop.permute.xlu0 %1046
    %1048 = vrot.lane.b32.xlu0 %v1042, 4
    %v1049 = vpop.permute.xlu0 %1048
    %1050 = vrot.lane.b32.xlu0 %v1043, 4
    %v1051 = vpop.permute.xlu0 %1050
    %vm1052 = vcmp.lt.s32.totalorder %v38, 4
    %v1053 = vsel %vm1052, %v1049, %v1051
    %v1054 = vsel %vm1052, %v1047, %v1049
    %v1055 = vsel %vm1052, %v1045, %v1047
    %v1056 = vsel %vm1052, %v1051, %v1045
    %v1057 = vsel %vm106, 1, 0
    %v1058 = vsel %vm107, 1, 0
    %v1059 = vsel %vm108, 1, 0
    %v1060 = vsel %vm109, 1, 0
    %vm1061 = vcmp.eq.s32.totalorder %v1057, 1
    %vm1062 = vcmp.eq.s32.totalorder %v1058, 1
    %vm1063 = vcmp.eq.s32.totalorder %v1059, 1
    %vm1064 = vcmp.eq.s32.totalorder %v1060, 1
    %v1065 = vsel %vm1061, %v1056, 0.0
    %v1066 = vsel %vm1062, %v1055, 0.0
    %v1067 = vsel %vm1063, %v1054, 0.0
    %v1068 = vsel %vm1064, %v1053, 0.0
    %1069 = vrot.lane.b32.xlu0 %v1040, 124
    %v1070 = vpop.permute.xlu0 %1069
    %1071 = vrot.lane.b32.xlu0 %v1041, 124
    %v1072 = vpop.permute.xlu0 %1071
    %1073 = vrot.lane.b32.xlu0 %v1042, 124
    %v1074 = vpop.permute.xlu0 %1073
    %1075 = vrot.lane.b32.xlu0 %v1043, 124
    %v1076 = vpop.permute.xlu0 %1075
    %vm1077 = vcmp.lt.s32.totalorder %v38, 124
    %v1078 = vsel %vm1077, %v1074, %v1076
    %v1079 = vsel %vm1077, %v1072, %v1074
    %v1080 = vsel %vm1077, %v1070, %v1072
    %v1081 = vsel %vm1077, %v1076, %v1070
    %v1082 = vsel %vm110, 1, 0
    %v1083 = vsel %vm111, 1, 0
    %v1084 = vsel %vm112, 1, 0
    %v1085 = vsel %vm113, 1, 0
    %vm1086 = vcmp.eq.s32.totalorder %v1082, 1
    %vm1087 = vcmp.eq.s32.totalorder %v1083, 1
    %vm1088 = vcmp.eq.s32.totalorder %v1084, 1
    %vm1089 = vcmp.eq.s32.totalorder %v1085, 1
    %v1090 = vsel %vm1086, %v1080, 0.0
    %v1091 = vsel %vm1087, %v1079, 0.0
    %v1092 = vsel %vm1088, %v1078, 0.0
    %v1093 = vsel %vm1089, %v1081, 0.0
    %1094 = vst [vmem:[#allocation2] sm:$0xff] %v1065
    %1095 = vst [vmem:[#allocation2 + $0x8] sm:$0xff] %v1066
    %1096 = vst [vmem:[#allocation2 + $0x10] sm:$0xff] %v1067
    %1097 = vst [vmem:[#allocation2 + $0x18] sm:$0xff] %v1068
    %1098 = vst [vmem:[#allocation2 + $0x20] sm:$0xff] %v1040
    %1099 = vst [vmem:[#allocation2 + $0x28] sm:$0xff] %v1041
    %1100 = vst [vmem:[#allocation2 + $0x30] sm:$0xff] %v1042
    %1101 = vst [vmem:[#allocation2 + $0x38] sm:$0xff] %v1043
    %1102 = vst [vmem:[#allocation2 + $0x40] sm:$0xff] %v1090
    %1103 = vst [vmem:[#allocation2 + $0x48] sm:$0xff] %v1091
    %1104 = vst [vmem:[#allocation2 + $0x50] sm:$0xff] %v1092
    %1105 = vst [vmem:[#allocation2 + $0x58] sm:$0xff] %v1093
    %s1106 = scalar_lea.vmem %s3, 16
    %v1107 = vld [vmem:[%s1106] sm:$0xff]
    %v1108 = vld [vmem:[#allocation2] sm:$0xff]
    %v1109 = vld [vmem:[#allocation2 + $0x8] sm:$0xff]
    %v1110 = vld [vmem:[#allocation2 + $0x10] sm:$0xff]
    %v1111 = vld [vmem:[#allocation2 + $0x18] sm:$0xff]
    %v1112 = vld [vmem:[#allocation2 + $0x20] sm:$0xff]
    %v1113 = vld [vmem:[#allocation2 + $0x28] sm:$0xff]
    %v1114 = vld [vmem:[#allocation2 + $0x30] sm:$0xff]
    %v1115 = vld [vmem:[#allocation2 + $0x38] sm:$0xff]
    %v1116 = vld [vmem:[#allocation2 + $0x40] sm:$0xff]
    %v1117 = vld [vmem:[#allocation2 + $0x48] sm:$0xff]
    %v1118 = vld [vmem:[#allocation2 + $0x50] sm:$0xff]
    %v1119 = vld [vmem:[#allocation2 + $0x58] sm:$0xff]
    %s1120 = scalar_lea.vmem %s4, 16
    %v1121 = vld [vmem:[%s1120] sm:$0xff]
    %1123 = vset.pattern.permute.xlu0 0
    %1124 = vperm.xlu0 %1123, %v1121
    %v1125 = vpop.permute.xlu0 %1124
    %v1128 = vsel %vm348, %v1107, 0
    %1130 = vmatprep.subr.mxu0 %v1109
    %1131 = vmatpush1.msra.mxu0 %v1108
    %1132 = vmatprep.subr.mxu0 %v1113
    %1133 = vmatpush1.msra.mxu0 %v1112
    %1134 = vmatprep.subr.mxu0 %v1117
    %1135 = vmatpush1.msra.mxu0 %v1116
    %1136 = vmatprep.subr.mxu0 0.0
    %1137 = vmatpush1.msra.mxu0 0.0
    %1138 = vmatprep.subr.mxu0 0.0
    %1139 = vmatpush1.msra.mxu0 0.0
    %1140 = vmatprep.subr.mxu0 0.0
    %1141 = vmatpush1.msra.mxu0 0.0
    %1142 = vmatprep.subr.mxu0 0.0
    %1143 = vmatpush1.msra.mxu0 0.0
    %1144 = vmatprep.subr.mxu0 0.0
    %1145 = vmatpush1.msra.mxu0 0.0
    %1146 = vmatprep.subr.mxu0 0.0
    %1147 = vmatpush1.msra.mxu0 0.0
    %1148 = vmatprep.subr.mxu0 0.0
    %1149 = vmatpush1.msra.mxu0 0.0
    %1150 = vmatprep.subr.mxu0 0.0
    %1151 = vmatpush1.msra.mxu0 0.0
    %1152 = vmatprep.subr.mxu0 0.0
    %1153 = vmatpush1.msra.mxu0 0.0
    %1154 = vmatprep.subr.mxu0 0.0
    %1155 = vmatpush1.msra.mxu0 0.0
    %1156 = vmatprep.subr.mxu0 0.0
    %1157 = vmatpush1.msra.mxu0 0.0
    %1158 = vmatprep.subr.mxu0 0.0
    %1159 = vmatpush1.msra.mxu0 0.0
    %1160 = vmatprep.subr.mxu0 0.0
    %1161 = vmatpush1.msra.mxu0 0.0
    %1162 = vmatprep.subr.mxu0 0.0
    %1163 = vmatpush1.msra.mxu0 0.0
    %1164 = vmatprep.subr.mxu0 0.0
    %1165 = vmatpush1.msra.mxu0 0.0
    %1166 = vmatprep.subr.mxu0 0.0
    %1167 = vmatpush1.msra.mxu0 0.0
    %1168 = vmatprep.subr.mxu0 0.0
    %1169 = vmatpush1.msra.mxu0 0.0
    %1170 = vmatprep.subr.mxu0 0.0
    %1171 = vmatpush1.msra.mxu0 0.0
    %1172 = vmatprep.subr.mxu0 0.0
    %1173 = vmatpush1.msra.mxu0 0.0
    %1174 = vmatprep.subr.mxu0 0.0
    %1175 = vmatpush1.msra.mxu0 0.0
    %1176 = vmatprep.subr.mxu0 0.0
    %1177 = vmatpush1.msra.mxu0 0.0
    %1178 = vmatprep.subr.mxu0 0.0
    %1179 = vmatpush1.msra.mxu0 0.0
    %1180 = vmatprep.subr.mxu0 0.0
    %1181 = vmatpush1.msra.mxu0 0.0
    %1182 = vmatprep.subr.mxu0 0.0
    %1183 = vmatpush1.msra.mxu0 0.0
    %1184 = vmatprep.subr.mxu0 0.0
    %1185 = vmatpush1.msra.mxu0 0.0
    %1186 = vmatprep.subr.mxu0 0.0
    %1187 = vmatpush1.msra.mxu0 0.0
    %1188 = vmatprep.subr.mxu0 0.0
    %1189 = vmatpush1.msra.mxu0 0.0
    %1190 = vmatprep.subr.mxu0 0.0
    %1191 = vmatpush1.msra.mxu0 0.0
    %1192 = vmatprep.subr.mxu0 0.0
    %1193 = vmatpush1.msra.mxu0 0.0
    %1194 = vmatprep.mubr.f32.mxu0 0.0
    %1195 = vmatmul.mubr.f32.gmra.mrb[0].mxu0 %v1128
    %v1196 = vpop.f32.mrb[0].mxu0
    %v1197 = vadd.f32 %v1125, %v1196
    %v1198 = vpop.f32.mrb[0].mxu0
    %v1199 = vadd.f32 %v1125, %v1198
    %1200 = vdwg.mxu0
    %1201 = vmatprep.subr.mxu0 %v1111
    %1202 = vmatpush1.msra.mxu0 %v1110
    %1203 = vmatprep.subr.mxu0 %v1115
    %1204 = vmatpush1.msra.mxu0 %v1114
    %1205 = vmatprep.subr.mxu0 %v1119
    %1206 = vmatpush1.msra.mxu0 %v1118
    %1207 = vmatprep.subr.mxu0 0.0
    %1208 = vmatpush1.msra.mxu0 0.0
    %1209 = vmatprep.subr.mxu0 0.0
    %1210 = vmatpush1.msra.mxu0 0.0
    %1211 = vmatprep.subr.mxu0 0.0
    %1212 = vmatpush1.msra.mxu0 0.0
    %1213 = vmatprep.subr.mxu0 0.0
    %1214 = vmatpush1.msra.mxu0 0.0
    %1215 = vmatprep.subr.mxu0 0.0
    %1216 = vmatpush1.msra.mxu0 0.0
    %1217 = vmatprep.subr.mxu0 0.0
    %1218 = vmatpush1.msra.mxu0 0.0
    %1219 = vmatprep.subr.mxu0 0.0
    %1220 = vmatpush1.msra.mxu0 0.0
    %1221 = vmatprep.subr.mxu0 0.0
    %1222 = vmatpush1.msra.mxu0 0.0
    %1223 = vmatprep.subr.mxu0 0.0
    %1224 = vmatpush1.msra.mxu0 0.0
    %1225 = vmatprep.subr.mxu0 0.0
    %1226 = vmatpush1.msra.mxu0 0.0
    %1227 = vmatprep.subr.mxu0 0.0
    %1228 = vmatpush1.msra.mxu0 0.0
    %1229 = vmatprep.subr.mxu0 0.0
    %1230 = vmatpush1.msra.mxu0 0.0
    %1231 = vmatprep.subr.mxu0 0.0
    %1232 = vmatpush1.msra.mxu0 0.0
    %1233 = vmatprep.subr.mxu0 0.0
    %1234 = vmatpush1.msra.mxu0 0.0
    %1235 = vmatprep.subr.mxu0 0.0
    %1236 = vmatpush1.msra.mxu0 0.0
    %1237 = vmatprep.subr.mxu0 0.0
    %1238 = vmatpush1.msra.mxu0 0.0
    %1239 = vmatprep.subr.mxu0 0.0
    %1240 = vmatpush1.msra.mxu0 0.0
    %1241 = vmatprep.subr.mxu0 0.0
    %1242 = vmatpush1.msra.mxu0 0.0
    %1243 = vmatprep.subr.mxu0 0.0
    %1244 = vmatpush1.msra.mxu0 0.0
    %1245 = vmatprep.subr.mxu0 0.0
    %1246 = vmatpush1.msra.mxu0 0.0
    %1247 = vmatprep.subr.mxu0 0.0
    %1248 = vmatpush1.msra.mxu0 0.0
    %1249 = vmatprep.subr.mxu0 0.0
    %1250 = vmatpush1.msra.mxu0 0.0
    %1251 = vmatprep.subr.mxu0 0.0
    %1252 = vmatpush1.msra.mxu0 0.0
    %1253 = vmatprep.subr.mxu0 0.0
    %1254 = vmatpush1.msra.mxu0 0.0
    %1255 = vmatprep.subr.mxu0 0.0
    %1256 = vmatpush1.msra.mxu0 0.0
    %1257 = vmatprep.subr.mxu0 0.0
    %1258 = vmatpush1.msra.mxu0 0.0
    %1259 = vmatprep.subr.mxu0 0.0
    %1260 = vmatpush1.msra.mxu0 0.0
    %1261 = vmatprep.subr.mxu0 0.0
    %1262 = vmatpush1.msra.mxu0 0.0
    %1263 = vmatprep.subr.mxu0 0.0
    %1264 = vmatpush1.msra.mxu0 0.0
    %1265 = vmatprep.mubr.f32.mxu0 0.0
    %1266 = vmatmul.mubr.f32.gmra.mrb[0].mxu0 %v1128
    %v1267 = vpop.f32.mrb[0].mxu0
    %v1268 = vadd.f32 %v1125, %v1267
    %v1269 = vpop.f32.mrb[0].mxu0
    %v1270 = vadd.f32 %v1125, %v1269
    %1271 = vdwg.mxu0
    %v1272 = vmax.f32 %v1197, 0.0
    %v1273 = vmax.f32 %v1199, 0.0
    %v1274 = vmax.f32 %v1268, 0.0
    %v1275 = vmax.f32 %v1270, 0.0
    %s1276 = scalar_lea.vmem %s5, 16
    %v1277 = vld [vmem:[%s1276] sm:$0xff]
    %s1278 = scalar_lea.vmem %s6, 16
    %v1279 = vld [vmem:[%s1278] sm:$0xff]
    %1281 = vset.pattern.permute.xlu0 0
    %1282 = vperm.xlu0 %1281, %v1279
    %v1283 = vpop.permute.xlu0 %1282
    %v1286 = vsel %vm121, %v1277, 0
    %1288 = vmatprep.subr.mxu0 %v1273
    %1289 = vmatpush1.msra.mxu0 %v1272
    %1290 = vmatprep.subr.mxu0 0.0
    %1291 = vmatpush1.msra.mxu0 0.0
    %1292 = vmatprep.subr.mxu0 0.0
    %1293 = vmatpush1.msra.mxu0 0.0
    %1294 = vmatprep.subr.mxu0 0.0
    %1295 = vmatpush1.msra.mxu0 0.0
    %1296 = vmatprep.subr.mxu0 0.0
    %1297 = vmatpush1.msra.mxu0 0.0
    %1298 = vmatprep.subr.mxu0 0.0
    %1299 = vmatpush1.msra.mxu0 0.0
    %1300 = vmatprep.subr.mxu0 0.0
    %1301 = vmatpush1.msra.mxu0 0.0
    %1302 = vmatprep.subr.mxu0 0.0
    %1303 = vmatpush1.msra.mxu0 0.0
    %1304 = vmatprep.subr.mxu0 0.0
    %1305 = vmatpush1.msra.mxu0 0.0
    %1306 = vmatprep.subr.mxu0 0.0
    %1307 = vmatpush1.msra.mxu0 0.0
    %1308 = vmatprep.subr.mxu0 0.0
    %1309 = vmatpush1.msra.mxu0 0.0
    %1310 = vmatprep.subr.mxu0 0.0
    %1311 = vmatpush1.msra.mxu0 0.0
    %1312 = vmatprep.subr.mxu0 0.0
    %1313 = vmatpush1.msra.mxu0 0.0
    %1314 = vmatprep.subr.mxu0 0.0
    %1315 = vmatpush1.msra.mxu0 0.0
    %1316 = vmatprep.subr.mxu0 0.0
    %1317 = vmatpush1.msra.mxu0 0.0
    %1318 = vmatprep.subr.mxu0 0.0
    %1319 = vmatpush1.msra.mxu0 0.0
    %1320 = vmatprep.subr.mxu0 0.0
    %1321 = vmatpush1.msra.mxu0 0.0
    %1322 = vmatprep.subr.mxu0 0.0
    %1323 = vmatpush1.msra.mxu0 0.0
    %1324 = vmatprep.subr.mxu0 0.0
    %1325 = vmatpush1.msra.mxu0 0.0
    %1326 = vmatprep.subr.mxu0 0.0
    %1327 = vmatpush1.msra.mxu0 0.0
    %1328 = vmatprep.subr.mxu0 0.0
    %1329 = vmatpush1.msra.mxu0 0.0
    %1330 = vmatprep.subr.mxu0 0.0
    %1331 = vmatpush1.msra.mxu0 0.0
    %1332 = vmatprep.subr.mxu0 0.0
    %1333 = vmatpush1.msra.mxu0 0.0
    %1334 = vmatprep.subr.mxu0 0.0
    %1335 = vmatpush1.msra.mxu0 0.0
    %1336 = vmatprep.subr.mxu0 0.0
    %1337 = vmatpush1.msra.mxu0 0.0
    %1338 = vmatprep.subr.mxu0 0.0
    %1339 = vmatpush1.msra.mxu0 0.0
    %1340 = vmatprep.subr.mxu0 0.0
    %1341 = vmatpush1.msra.mxu0 0.0
    %1342 = vmatprep.subr.mxu0 0.0
    %1343 = vmatpush1.msra.mxu0 0.0
    %1344 = vmatprep.subr.mxu0 0.0
    %1345 = vmatpush1.msra.mxu0 0.0
    %1346 = vmatprep.subr.mxu0 0.0
    %1347 = vmatpush1.msra.mxu0 0.0
    %1348 = vmatprep.subr.mxu0 0.0
    %1349 = vmatpush1.msra.mxu0 0.0
    %1350 = vmatprep.subr.mxu0 0.0
    %1351 = vmatpush1.msra.mxu0 0.0
    %1352 = vmatprep.mubr.f32.mxu0 0.0
    %1353 = vmatmul.mubr.f32.gmra.mrb[0].mxu0 %v1286
    %v1354 = vpop.f32.mrb[0].mxu0
    %v1355 = vadd.f32 %v1283, %v1354
    %v1356 = vpop.f32.mrb[0].mxu0
    %v1357 = vadd.f32 %v1283, %v1356
    %1358 = vdwg.mxu0
    %1359 = vmatprep.subr.mxu0 %v1275
    %1360 = vmatpush1.msra.mxu0 %v1274
    %1361 = vmatprep.subr.mxu0 0.0
    %1362 = vmatpush1.msra.mxu0 0.0
    %1363 = vmatprep.subr.mxu0 0.0
    %1364 = vmatpush1.msra.mxu0 0.0
    %1365 = vmatprep.subr.mxu0 0.0
    %1366 = vmatpush1.msra.mxu0 0.0
    %1367 = vmatprep.subr.mxu0 0.0
    %1368 = vmatpush1.msra.mxu0 0.0
    %1369 = vmatprep.subr.mxu0 0.0
    %1370 = vmatpush1.msra.mxu0 0.0
    %1371 = vmatprep.subr.mxu0 0.0
    %1372 = vmatpush1.msra.mxu0 0.0
    %1373 = vmatprep.subr.mxu0 0.0
    %1374 = vmatpush1.msra.mxu0 0.0
    %1375 = vmatprep.subr.mxu0 0.0
    %1376 = vmatpush1.msra.mxu0 0.0
    %1377 = vmatprep.subr.mxu0 0.0
    %1378 = vmatpush1.msra.mxu0 0.0
    %1379 = vmatprep.subr.mxu0 0.0
    %1380 = vmatpush1.msra.mxu0 0.0
    %1381 = vmatprep.subr.mxu0 0.0
    %1382 = vmatpush1.msra.mxu0 0.0
    %1383 = vmatprep.subr.mxu0 0.0
    %1384 = vmatpush1.msra.mxu0 0.0
    %1385 = vmatprep.subr.mxu0 0.0
    %1386 = vmatpush1.msra.mxu0 0.0
    %1387 = vmatprep.subr.mxu0 0.0
    %1388 = vmatpush1.msra.mxu0 0.0
    %1389 = vmatprep.subr.mxu0 0.0
    %1390 = vmatpush1.msra.mxu0 0.0
    %1391 = vmatprep.subr.mxu0 0.0
    %1392 = vmatpush1.msra.mxu0 0.0
    %1393 = vmatprep.subr.mxu0 0.0
    %1394 = vmatpush1.msra.mxu0 0.0
    %1395 = vmatprep.subr.mxu0 0.0
    %1396 = vmatpush1.msra.mxu0 0.0
    %1397 = vmatprep.subr.mxu0 0.0
    %1398 = vmatpush1.msra.mxu0 0.0
    %1399 = vmatprep.subr.mxu0 0.0
    %1400 = vmatpush1.msra.mxu0 0.0
    %1401 = vmatprep.subr.mxu0 0.0
    %1402 = vmatpush1.msra.mxu0 0.0
    %1403 = vmatprep.subr.mxu0 0.0
    %1404 = vmatpush1.msra.mxu0 0.0
    %1405 = vmatprep.subr.mxu0 0.0
    %1406 = vmatpush1.msra.mxu0 0.0
    %1407 = vmatprep.subr.mxu0 0.0
    %1408 = vmatpush1.msra.mxu0 0.0
    %1409 = vmatprep.subr.mxu0 0.0
    %1410 = vmatpush1.msra.mxu0 0.0
    %1411 = vmatprep.subr.mxu0 0.0
    %1412 = vmatpush1.msra.mxu0 0.0
    %1413 = vmatprep.subr.mxu0 0.0
    %1414 = vmatpush1.msra.mxu0 0.0
    %1415 = vmatprep.subr.mxu0 0.0
    %1416 = vmatpush1.msra.mxu0 0.0
    %1417 = vmatprep.subr.mxu0 0.0
    %1418 = vmatpush1.msra.mxu0 0.0
    %1419 = vmatprep.subr.mxu0 0.0
    %1420 = vmatpush1.msra.mxu0 0.0
    %1421 = vmatprep.subr.mxu0 0.0
    %1422 = vmatpush1.msra.mxu0 0.0
    %1423 = vmatprep.mubr.f32.mxu0 0.0
    %1424 = vmatmul.mubr.f32.gmra.mrb[0].mxu0 %v1286
    %v1425 = vpop.f32.mrb[0].mxu0
    %v1426 = vadd.f32 %v1283, %v1425
    %v1427 = vpop.f32.mrb[0].mxu0
    %v1428 = vadd.f32 %v1283, %v1427
    %1429 = vdwg.mxu0
    %v1430 = vadd.f32 %v1040, %v1355
    %v1431 = vadd.f32 %v1041, %v1357
    %v1432 = vadd.f32 %v1042, %v1426
    %v1433 = vadd.f32 %v1043, %v1428
    %v1434 = vld [vmem:[%s7] sm:$0xff]
    %v1435 = vld [vmem:[%s8] sm:$0xff]
    %1437 = vset.pattern.permute.xlu0 0
    %1438 = vperm.xlu0 %1437, %v1435
    %v1439 = vpop.permute.xlu0 %1438
    %v1442 = vsel %vm121, %v1434, 0
    %1444 = vmatprep.subr.mxu0 %v1431
    %1445 = vmatpush1.msra.mxu0 %v1430
    %1446 = vmatprep.subr.mxu0 0.0
    %1447 = vmatpush1.msra.mxu0 0.0
    %1448 = vmatprep.subr.mxu0 0.0
    %1449 = vmatpush1.msra.mxu0 0.0
    %1450 = vmatprep.subr.mxu0 0.0
    %1451 = vmatpush1.msra.mxu0 0.0
    %1452 = vmatprep.subr.mxu0 0.0
    %1453 = vmatpush1.msra.mxu0 0.0
    %1454 = vmatprep.subr.mxu0 0.0
    %1455 = vmatpush1.msra.mxu0 0.0
    %1456 = vmatprep.subr.mxu0 0.0
    %1457 = vmatpush1.msra.mxu0 0.0
    %1458 = vmatprep.subr.mxu0 0.0
    %1459 = vmatpush1.msra.mxu0 0.0
    %1460 = vmatprep.subr.mxu0 0.0
    %1461 = vmatpush1.msra.mxu0 0.0
    %1462 = vmatprep.subr.mxu0 0.0
    %1463 = vmatpush1.msra.mxu0 0.0
    %1464 = vmatprep.subr.mxu0 0.0
    %1465 = vmatpush1.msra.mxu0 0.0
    %1466 = vmatprep.subr.mxu0 0.0
    %1467 = vmatpush1.msra.mxu0 0.0
    %1468 = vmatprep.subr.mxu0 0.0
    %1469 = vmatpush1.msra.mxu0 0.0
    %1470 = vmatprep.subr.mxu0 0.0
    %1471 = vmatpush1.msra.mxu0 0.0
    %1472 = vmatprep.subr.mxu0 0.0
    %1473 = vmatpush1.msra.mxu0 0.0
    %1474 = vmatprep.subr.mxu0 0.0
    %1475 = vmatpush1.msra.mxu0 0.0
    %1476 = vmatprep.subr.mxu0 0.0
    %1477 = vmatpush1.msra.mxu0 0.0
    %1478 = vmatprep.subr.mxu0 0.0
    %1479 = vmatpush1.msra.mxu0 0.0
    %1480 = vmatprep.subr.mxu0 0.0
    %1481 = vmatpush1.msra.mxu0 0.0
    %1482 = vmatprep.subr.mxu0 0.0
    %1483 = vmatpush1.msra.mxu0 0.0
    %1484 = vmatprep.subr.mxu0 0.0
    %1485 = vmatpush1.msra.mxu0 0.0
    %1486 = vmatprep.subr.mxu0 0.0
    %1487 = vmatpush1.msra.mxu0 0.0
    %1488 = vmatprep.subr.mxu0 0.0
    %1489 = vmatpush1.msra.mxu0 0.0
    %1490 = vmatprep.subr.mxu0 0.0
    %1491 = vmatpush1.msra.mxu0 0.0
    %1492 = vmatprep.subr.mxu0 0.0
    %1493 = vmatpush1.msra.mxu0 0.0
    %1494 = vmatprep.subr.mxu0 0.0
    %1495 = vmatpush1.msra.mxu0 0.0
    %1496 = vmatprep.subr.mxu0 0.0
    %1497 = vmatpush1.msra.mxu0 0.0
    %1498 = vmatprep.subr.mxu0 0.0
    %1499 = vmatpush1.msra.mxu0 0.0
    %1500 = vmatprep.subr.mxu0 0.0
    %1501 = vmatpush1.msra.mxu0 0.0
    %1502 = vmatprep.subr.mxu0 0.0
    %1503 = vmatpush1.msra.mxu0 0.0
    %1504 = vmatprep.subr.mxu0 0.0
    %1505 = vmatpush1.msra.mxu0 0.0
    %1506 = vmatprep.subr.mxu0 0.0
    %1507 = vmatpush1.msra.mxu0 0.0
    %1508 = vmatprep.mubr.f32.mxu0 0.0
    %1509 = vmatmul.mubr.f32.gmra.mrb[0].mxu0 %v1442
    %v1510 = vpop.f32.mrb[0].mxu0
    %v1511 = vadd.f32 %v1439, %v1510
    %v1512 = vpop.f32.mrb[0].mxu0
    %v1513 = vadd.f32 %v1439, %v1512
    %1514 = vdwg.mxu0
    %1515 = vmatprep.subr.mxu0 %v1433
    %1516 = vmatpush1.msra.mxu0 %v1432
    %1517 = vmatprep.subr.mxu0 0.0
    %1518 = vmatpush1.msra.mxu0 0.0
    %1519 = vmatprep.subr.mxu0 0.0
    %1520 = vmatpush1.msra.mxu0 0.0
    %1521 = vmatprep.subr.mxu0 0.0
    %1522 = vmatpush1.msra.mxu0 0.0
    %1523 = vmatprep.subr.mxu0 0.0
    %1524 = vmatpush1.msra.mxu0 0.0
    %1525 = vmatprep.subr.mxu0 0.0
    %1526 = vmatpush1.msra.mxu0 0.0
    %1527 = vmatprep.subr.mxu0 0.0
    %1528 = vmatpush1.msra.mxu0 0.0
    %1529 = vmatprep.subr.mxu0 0.0
    %1530 = vmatpush1.msra.mxu0 0.0
    %1531 = vmatprep.subr.mxu0 0.0
    %1532 = vmatpush1.msra.mxu0 0.0
    %1533 = vmatprep.subr.mxu0 0.0
    %1534 = vmatpush1.msra.mxu0 0.0
    %1535 = vmatprep.subr.mxu0 0.0
    %1536 = vmatpush1.msra.mxu0 0.0
    %1537 = vmatprep.subr.mxu0 0.0
    %1538 = vmatpush1.msra.mxu0 0.0
    %1539 = vmatprep.subr.mxu0 0.0
    %1540 = vmatpush1.msra.mxu0 0.0
    %1541 = vmatprep.subr.mxu0 0.0
    %1542 = vmatpush1.msra.mxu0 0.0
    %1543 = vmatprep.subr.mxu0 0.0
    %1544 = vmatpush1.msra.mxu0 0.0
    %1545 = vmatprep.subr.mxu0 0.0
    %1546 = vmatpush1.msra.mxu0 0.0
    %1547 = vmatprep.subr.mxu0 0.0
    %1548 = vmatpush1.msra.mxu0 0.0
    %1549 = vmatprep.subr.mxu0 0.0
    %1550 = vmatpush1.msra.mxu0 0.0
    %1551 = vmatprep.subr.mxu0 0.0
    %1552 = vmatpush1.msra.mxu0 0.0
    %1553 = vmatprep.subr.mxu0 0.0
    %1554 = vmatpush1.msra.mxu0 0.0
    %1555 = vmatprep.subr.mxu0 0.0
    %1556 = vmatpush1.msra.mxu0 0.0
    %1557 = vmatprep.subr.mxu0 0.0
    %1558 = vmatpush1.msra.mxu0 0.0
    %1559 = vmatprep.subr.mxu0 0.0
    %1560 = vmatpush1.msra.mxu0 0.0
    %1561 = vmatprep.subr.mxu0 0.0
    %1562 = vmatpush1.msra.mxu0 0.0
    %1563 = vmatprep.subr.mxu0 0.0
    %1564 = vmatpush1.msra.mxu0 0.0
    %1565 = vmatprep.subr.mxu0 0.0
    %1566 = vmatpush1.msra.mxu0 0.0
    %1567 = vmatprep.subr.mxu0 0.0
    %1568 = vmatpush1.msra.mxu0 0.0
    %1569 = vmatprep.subr.mxu0 0.0
    %1570 = vmatpush1.msra.mxu0 0.0
    %1571 = vmatprep.subr.mxu0 0.0
    %1572 = vmatpush1.msra.mxu0 0.0
    %1573 = vmatprep.subr.mxu0 0.0
    %1574 = vmatpush1.msra.mxu0 0.0
    %1575 = vmatprep.subr.mxu0 0.0
    %1576 = vmatpush1.msra.mxu0 0.0
    %1577 = vmatprep.subr.mxu0 0.0
    %1578 = vmatpush1.msra.mxu0 0.0
    %1579 = vmatprep.mubr.f32.mxu0 0.0
    %1580 = vmatmul.mubr.f32.gmra.mrb[0].mxu0 %v1442
    %v1581 = vpop.f32.mrb[0].mxu0
    %v1582 = vadd.f32 %v1439, %v1581
    %v1583 = vpop.f32.mrb[0].mxu0
    %v1584 = vadd.f32 %v1439, %v1583
    %1585 = vdwg.mxu0
    %1586 = vst [vmem:[#allocation3] sm:$0xff] %v1511
    %1587 = vst [vmem:[#allocation3 + $0x8] sm:$0xff] %v1513
    %1588 = vst [vmem:[#allocation3 + $0x10] sm:$0xff] %v1582
    %1589 = vst [vmem:[#allocation3 + $0x18] sm:$0xff] %v1584
    %s1590 = scalar_lea.vmem %s1, 8
    %v1591 = vld [vmem:[%s1590] sm:$0xff]
    %s1592 = scalar_lea.vmem %s2, 8
    %v1593 = vld [vmem:[%s1592] sm:$0xff]
    %1595 = vset.pattern.permute.xlu0 0
    %1596 = vperm.xlu0 %1595, %v1593
    %v1597 = vpop.permute.xlu0 %1596
    %v1600 = vsel %vm121, %v1591, 0
    %1602 = vmatprep.subr.mxu0 %v1513
    %1603 = vmatpush1.msra.mxu0 %v1511
    %1604 = vmatprep.subr.mxu0 0.0
    %1605 = vmatpush1.msra.mxu0 0.0
    %1606 = vmatprep.subr.mxu0 0.0
    %1607 = vmatpush1.msra.mxu0 0.0
    %1608 = vmatprep.subr.mxu0 0.0
    %1609 = vmatpush1.msra.mxu0 0.0
    %1610 = vmatprep.subr.mxu0 0.0
    %1611 = vmatpush1.msra.mxu0 0.0
    %1612 = vmatprep.subr.mxu0 0.0
    %1613 = vmatpush1.msra.mxu0 0.0
    %1614 = vmatprep.subr.mxu0 0.0
    %1615 = vmatpush1.msra.mxu0 0.0
    %1616 = vmatprep.subr.mxu0 0.0
    %1617 = vmatpush1.msra.mxu0 0.0
    %1618 = vmatprep.subr.mxu0 0.0
    %1619 = vmatpush1.msra.mxu0 0.0
    %1620 = vmatprep.subr.mxu0 0.0
    %1621 = vmatpush1.msra.mxu0 0.0
    %1622 = vmatprep.subr.mxu0 0.0
    %1623 = vmatpush1.msra.mxu0 0.0
    %1624 = vmatprep.subr.mxu0 0.0
    %1625 = vmatpush1.msra.mxu0 0.0
    %1626 = vmatprep.subr.mxu0 0.0
    %1627 = vmatpush1.msra.mxu0 0.0
    %1628 = vmatprep.subr.mxu0 0.0
    %1629 = vmatpush1.msra.mxu0 0.0
    %1630 = vmatprep.subr.mxu0 0.0
    %1631 = vmatpush1.msra.mxu0 0.0
    %1632 = vmatprep.subr.mxu0 0.0
    %1633 = vmatpush1.msra.mxu0 0.0
    %1634 = vmatprep.subr.mxu0 0.0
    %1635 = vmatpush1.msra.mxu0 0.0
    %1636 = vmatprep.subr.mxu0 0.0
    %1637 = vmatpush1.msra.mxu0 0.0
    %1638 = vmatprep.subr.mxu0 0.0
    %1639 = vmatpush1.msra.mxu0 0.0
    %1640 = vmatprep.subr.mxu0 0.0
    %1641 = vmatpush1.msra.mxu0 0.0
    %1642 = vmatprep.subr.mxu0 0.0
    %1643 = vmatpush1.msra.mxu0 0.0
    %1644 = vmatprep.subr.mxu0 0.0
    %1645 = vmatpush1.msra.mxu0 0.0
    %1646 = vmatprep.subr.mxu0 0.0
    %1647 = vmatpush1.msra.mxu0 0.0
    %1648 = vmatprep.subr.mxu0 0.0
    %1649 = vmatpush1.msra.mxu0 0.0
    %1650 = vmatprep.subr.mxu0 0.0
    %1651 = vmatpush1.msra.mxu0 0.0
    %1652 = vmatprep.subr.mxu0 0.0
    %1653 = vmatpush1.msra.mxu0 0.0
    %1654 = vmatprep.subr.mxu0 0.0
    %1655 = vmatpush1.msra.mxu0 0.0
    %1656 = vmatprep.subr.mxu0 0.0
    %1657 = vmatpush1.msra.mxu0 0.0
    %1658 = vmatprep.subr.mxu0 0.0
    %1659 = vmatpush1.msra.mxu0 0.0
    %1660 = vmatprep.subr.mxu0 0.0
    %1661 = vmatpush1.msra.mxu0 0.0
    %1662 = vmatprep.subr.mxu0 0.0
    %1663 = vmatpush1.msra.mxu0 0.0
    %1664 = vmatprep.subr.mxu0 0.0
    %1665 = vmatpush1.msra.mxu0 0.0
    %1666 = vmatprep.mubr.f32.mxu0 0.0
    %1667 = vmatmul.mubr.f32.gmra.mrb[0].mxu0 %v1600
    %v1668 = vpop.f32.mrb[0].mxu0
    %v1669 = vadd.f32 %v1597, %v1668
    %v1670 = vpop.f32.mrb[0].mxu0
    %v1671 = vadd.f32 %v1597, %v1670
    %1672 = vdwg.mxu0
    %1673 = vmatprep.subr.mxu0 %v1584
    %1674 = vmatpush1.msra.mxu0 %v1582
    %1675 = vmatprep.subr.mxu0 0.0
    %1676 = vmatpush1.msra.mxu0 0.0
    %1677 = vmatprep.subr.mxu0 0.0
    %1678 = vmatpush1.msra.mxu0 0.0
    %1679 = vmatprep.subr.mxu0 0.0
    %1680 = vmatpush1.msra.mxu0 0.0
    %1681 = vmatprep.subr.mxu0 0.0
    %1682 = vmatpush1.msra.mxu0 0.0
    %1683 = vmatprep.subr.mxu0 0.0
    %1684 = vmatpush1.msra.mxu0 0.0
    %1685 = vmatprep.subr.mxu0 0.0
    %1686 = vmatpush1.msra.mxu0 0.0
    %1687 = vmatprep.subr.mxu0 0.0
    %1688 = vmatpush1.msra.mxu0 0.0
    %1689 = vmatprep.subr.mxu0 0.0
    %1690 = vmatpush1.msra.mxu0 0.0
    %1691 = vmatprep.subr.mxu0 0.0
    %1692 = vmatpush1.msra.mxu0 0.0
    %1693 = vmatprep.subr.mxu0 0.0
    %1694 = vmatpush1.msra.mxu0 0.0
    %1695 = vmatprep.subr.mxu0 0.0
    %1696 = vmatpush1.msra.mxu0 0.0
    %1697 = vmatprep.subr.mxu0 0.0
    %1698 = vmatpush1.msra.mxu0 0.0
    %1699 = vmatprep.subr.mxu0 0.0
    %1700 = vmatpush1.msra.mxu0 0.0
    %1701 = vmatprep.subr.mxu0 0.0
    %1702 = vmatpush1.msra.mxu0 0.0
    %1703 = vmatprep.subr.mxu0 0.0
    %1704 = vmatpush1.msra.mxu0 0.0
    %1705 = vmatprep.subr.mxu0 0.0
    %1706 = vmatpush1.msra.mxu0 0.0
    %1707 = vmatprep.subr.mxu0 0.0
    %1708 = vmatpush1.msra.mxu0 0.0
    %1709 = vmatprep.subr.mxu0 0.0
    %1710 = vmatpush1.msra.mxu0 0.0
    %1711 = vmatprep.subr.mxu0 0.0
    %1712 = vmatpush1.msra.mxu0 0.0
    %1713 = vmatprep.subr.mxu0 0.0
    %1714 = vmatpush1.msra.mxu0 0.0
    %1715 = vmatprep.subr.mxu0 0.0
    %1716 = vmatpush1.msra.mxu0 0.0
    %1717 = vmatprep.subr.mxu0 0.0
    %1718 = vmatpush1.msra.mxu0 0.0
    %1719 = vmatprep.subr.mxu0 0.0
    %1720 = vmatpush1.msra.mxu0 0.0
    %1721 = vmatprep.subr.mxu0 0.0
    %1722 = vmatpush1.msra.mxu0 0.0
    %1723 = vmatprep.subr.mxu0 0.0
    %1724 = vmatpush1.msra.mxu0 0.0
    %1725 = vmatprep.subr.mxu0 0.0
    %1726 = vmatpush1.msra.mxu0 0.0
    %1727 = vmatprep.subr.mxu0 0.0
    %1728 = vmatpush1.msra.mxu0 0.0
    %1729 = vmatprep.subr.mxu0 0.0
    %1730 = vmatpush1.msra.mxu0 0.0
    %1731 = vmatprep.subr.mxu0 0.0
    %1732 = vmatpush1.msra.mxu0 0.0
    %1733 = vmatprep.subr.mxu0 0.0
    %1734 = vmatpush1.msra.mxu0 0.0
    %1735 = vmatprep.subr.mxu0 0.0
    %1736 = vmatpush1.msra.mxu0 0.0
    %1737 = vmatprep.mubr.f32.mxu0 0.0
    %1738 = vmatmul.mubr.f32.gmra.mrb[0].mxu0 %v1600
    %v1739 = vpop.f32.mrb[0].mxu0
    %v1740 = vadd.f32 %v1597, %v1739
    %v1741 = vpop.f32.mrb[0].mxu0
    %v1742 = vadd.f32 %v1597, %v1741
    %1743 = vdwg.mxu0
    %1744 = vrot.lane.b32.xlu0 %v1669, 1
    %v1745 = vpop.permute.xlu0 %1744
    %1746 = vrot.lane.b32.xlu0 %v1671, 1
    %v1747 = vpop.permute.xlu0 %1746
    %1748 = vrot.lane.b32.xlu0 %v1740, 1
    %v1749 = vpop.permute.xlu0 %1748
    %1750 = vrot.lane.b32.xlu0 %v1742, 1
    %v1751 = vpop.permute.xlu0 %1750
    %v1752 = vsel %vm275, %v1749, %v1751
    %v1753 = vsel %vm275, %v1747, %v1749
    %v1754 = vsel %vm275, %v1745, %v1747
    %v1755 = vsel %vm275, %v1751, %v1745
    %v1756 = vsel %vm284, %v1755, 0.0
    %v1757 = vsel %vm285, %v1754, 0.0
    %v1758 = vsel %vm286, %v1753, 0.0
    %v1759 = vsel %vm287, %v1752, 0.0
    %1760 = vrot.lane.b32.xlu0 %v1669, 127
    %v1761 = vpop.permute.xlu0 %1760
    %1762 = vrot.lane.b32.xlu0 %v1671, 127
    %v1763 = vpop.permute.xlu0 %1762
    %1764 = vrot.lane.b32.xlu0 %v1740, 127
    %v1765 = vpop.permute.xlu0 %1764
    %1766 = vrot.lane.b32.xlu0 %v1742, 127
    %v1767 = vpop.permute.xlu0 %1766
    %v1768 = vsel %vm300, %v1765, %v1767
    %v1769 = vsel %vm300, %v1763, %v1765
    %v1770 = vsel %vm300, %v1761, %v1763
    %v1771 = vsel %vm300, %v1767, %v1761
    %v1772 = vsel %vm309, %v1770, 0.0
    %v1773 = vsel %vm310, %v1769, 0.0
    %v1774 = vsel %vm311, %v1768, 0.0
    %v1775 = vsel %vm312, %v1771, 0.0
    %1776 = vst [vmem:[#allocation2] sm:$0xff] %v1756
    %1777 = vst [vmem:[#allocation2 + $0x8] sm:$0xff] %v1757
    %1778 = vst [vmem:[#allocation2 + $0x10] sm:$0xff] %v1758
    %1779 = vst [vmem:[#allocation2 + $0x18] sm:$0xff] %v1759
    %1780 = vst [vmem:[#allocation2 + $0x20] sm:$0xff] %v1669
    %1781 = vst [vmem:[#allocation2 + $0x28] sm:$0xff] %v1671
    %1782 = vst [vmem:[#allocation2 + $0x30] sm:$0xff] %v1740
    %1783 = vst [vmem:[#allocation2 + $0x38] sm:$0xff] %v1742
    %1784 = vst [vmem:[#allocation2 + $0x40] sm:$0xff] %v1772
    %1785 = vst [vmem:[#allocation2 + $0x48] sm:$0xff] %v1773
    %1786 = vst [vmem:[#allocation2 + $0x50] sm:$0xff] %v1774
    %1787 = vst [vmem:[#allocation2 + $0x58] sm:$0xff] %v1775
    %s1788 = scalar_lea.vmem %s3, 24
    %v1789 = vld [vmem:[%s1788] sm:$0xff]
    %v1790 = vld [vmem:[#allocation2] sm:$0xff]
    %v1791 = vld [vmem:[#allocation2 + $0x8] sm:$0xff]
    %v1792 = vld [vmem:[#allocation2 + $0x10] sm:$0xff]
    %v1793 = vld [vmem:[#allocation2 + $0x18] sm:$0xff]
    %v1794 = vld [vmem:[#allocation2 + $0x20] sm:$0xff]
    %v1795 = vld [vmem:[#allocation2 + $0x28] sm:$0xff]
    %v1796 = vld [vmem:[#allocation2 + $0x30] sm:$0xff]
    %v1797 = vld [vmem:[#allocation2 + $0x38] sm:$0xff]
    %v1798 = vld [vmem:[#allocation2 + $0x40] sm:$0xff]
    %v1799 = vld [vmem:[#allocation2 + $0x48] sm:$0xff]
    %v1800 = vld [vmem:[#allocation2 + $0x50] sm:$0xff]
    %v1801 = vld [vmem:[#allocation2 + $0x58] sm:$0xff]
    %s1802 = scalar_lea.vmem %s4, 24
    %v1803 = vld [vmem:[%s1802] sm:$0xff]
    %1805 = vset.pattern.permute.xlu0 0
    %1806 = vperm.xlu0 %1805, %v1803
    %v1807 = vpop.permute.xlu0 %1806
    %v1810 = vsel %vm348, %v1789, 0
    %1812 = vmatprep.subr.mxu0 %v1791
    %1813 = vmatpush1.msra.mxu0 %v1790
    %1814 = vmatprep.subr.mxu0 %v1795
    %1815 = vmatpush1.msra.mxu0 %v1794
    %1816 = vmatprep.subr.mxu0 %v1799
    %1817 = vmatpush1.msra.mxu0 %v1798
    %1818 = vmatprep.subr.mxu0 0.0
    %1819 = vmatpush1.msra.mxu0 0.0
    %1820 = vmatprep.subr.mxu0 0.0
    %1821 = vmatpush1.msra.mxu0 0.0
    %1822 = vmatprep.subr.mxu0 0.0
    %1823 = vmatpush1.msra.mxu0 0.0
    %1824 = vmatprep.subr.mxu0 0.0
    %1825 = vmatpush1.msra.mxu0 0.0
    %1826 = vmatprep.subr.mxu0 0.0
    %1827 = vmatpush1.msra.mxu0 0.0
    %1828 = vmatprep.subr.mxu0 0.0
    %1829 = vmatpush1.msra.mxu0 0.0
    %1830 = vmatprep.subr.mxu0 0.0
    %1831 = vmatpush1.msra.mxu0 0.0
    %1832 = vmatprep.subr.mxu0 0.0
    %1833 = vmatpush1.msra.mxu0 0.0
    %1834 = vmatprep.subr.mxu0 0.0
    %1835 = vmatpush1.msra.mxu0 0.0
    %1836 = vmatprep.subr.mxu0 0.0
    %1837 = vmatpush1.msra.mxu0 0.0
    %1838 = vmatprep.subr.mxu0 0.0
    %1839 = vmatpush1.msra.mxu0 0.0
    %1840 = vmatprep.subr.mxu0 0.0
    %1841 = vmatpush1.msra.mxu0 0.0
    %1842 = vmatprep.subr.mxu0 0.0
    %1843 = vmatpush1.msra.mxu0 0.0
    %1844 = vmatprep.subr.mxu0 0.0
    %1845 = vmatpush1.msra.mxu0 0.0
    %1846 = vmatprep.subr.mxu0 0.0
    %1847 = vmatpush1.msra.mxu0 0.0
    %1848 = vmatprep.subr.mxu0 0.0
    %1849 = vmatpush1.msra.mxu0 0.0
    %1850 = vmatprep.subr.mxu0 0.0
    %1851 = vmatpush1.msra.mxu0 0.0
    %1852 = vmatprep.subr.mxu0 0.0
    %1853 = vmatpush1.msra.mxu0 0.0
    %1854 = vmatprep.subr.mxu0 0.0
    %1855 = vmatpush1.msra.mxu0 0.0
    %1856 = vmatprep.subr.mxu0 0.0
    %1857 = vmatpush1.msra.mxu0 0.0
    %1858 = vmatprep.subr.mxu0 0.0
    %1859 = vmatpush1.msra.mxu0 0.0
    %1860 = vmatprep.subr.mxu0 0.0
    %1861 = vmatpush1.msra.mxu0 0.0
    %1862 = vmatprep.subr.mxu0 0.0
    %1863 = vmatpush1.msra.mxu0 0.0
    %1864 = vmatprep.subr.mxu0 0.0
    %1865 = vmatpush1.msra.mxu0 0.0
    %1866 = vmatprep.subr.mxu0 0.0
    %1867 = vmatpush1.msra.mxu0 0.0
    %1868 = vmatprep.subr.mxu0 0.0
    %1869 = vmatpush1.msra.mxu0 0.0
    %1870 = vmatprep.subr.mxu0 0.0
    %1871 = vmatpush1.msra.mxu0 0.0
    %1872 = vmatprep.subr.mxu0 0.0
    %1873 = vmatpush1.msra.mxu0 0.0
    %1874 = vmatprep.subr.mxu0 0.0
    %1875 = vmatpush1.msra.mxu0 0.0
    %1876 = vmatprep.mubr.f32.mxu0 0.0
    %1877 = vmatmul.mubr.f32.gmra.mrb[0].mxu0 %v1810
    %v1878 = vpop.f32.mrb[0].mxu0
    %v1879 = vadd.f32 %v1807, %v1878
    %v1880 = vpop.f32.mrb[0].mxu0
    %v1881 = vadd.f32 %v1807, %v1880
    %1882 = vdwg.mxu0
    %1883 = vmatprep.subr.mxu0 %v1793
    %1884 = vmatpush1.msra.mxu0 %v1792
    %1885 = vmatprep.subr.mxu0 %v1797
    %1886 = vmatpush1.msra.mxu0 %v1796
    %1887 = vmatprep.subr.mxu0 %v1801
    %1888 = vmatpush1.msra.mxu0 %v1800
    %1889 = vmatprep.subr.mxu0 0.0
    %1890 = vmatpush1.msra.mxu0 0.0
    %1891 = vmatprep.subr.mxu0 0.0
    %1892 = vmatpush1.msra.mxu0 0.0
    %1893 = vmatprep.subr.mxu0 0.0
    %1894 = vmatpush1.msra.mxu0 0.0
    %1895 = vmatprep.subr.mxu0 0.0
    %1896 = vmatpush1.msra.mxu0 0.0
    %1897 = vmatprep.subr.mxu0 0.0
    %1898 = vmatpush1.msra.mxu0 0.0
    %1899 = vmatprep.subr.mxu0 0.0
    %1900 = vmatpush1.msra.mxu0 0.0
    %1901 = vmatprep.subr.mxu0 0.0
    %1902 = vmatpush1.msra.mxu0 0.0
    %1903 = vmatprep.subr.mxu0 0.0
    %1904 = vmatpush1.msra.mxu0 0.0
    %1905 = vmatprep.subr.mxu0 0.0
    %1906 = vmatpush1.msra.mxu0 0.0
    %1907 = vmatprep.subr.mxu0 0.0
    %1908 = vmatpush1.msra.mxu0 0.0
    %1909 = vmatprep.subr.mxu0 0.0
    %1910 = vmatpush1.msra.mxu0 0.0
    %1911 = vmatprep.subr.mxu0 0.0
    %1912 = vmatpush1.msra.mxu0 0.0
    %1913 = vmatprep.subr.mxu0 0.0
    %1914 = vmatpush1.msra.mxu0 0.0
    %1915 = vmatprep.subr.mxu0 0.0
    %1916 = vmatpush1.msra.mxu0 0.0
    %1917 = vmatprep.subr.mxu0 0.0
    %1918 = vmatpush1.msra.mxu0 0.0
    %1919 = vmatprep.subr.mxu0 0.0
    %1920 = vmatpush1.msra.mxu0 0.0
    %1921 = vmatprep.subr.mxu0 0.0
    %1922 = vmatpush1.msra.mxu0 0.0
    %1923 = vmatprep.subr.mxu0 0.0
    %1924 = vmatpush1.msra.mxu0 0.0
    %1925 = vmatprep.subr.mxu0 0.0
    %1926 = vmatpush1.msra.mxu0 0.0
    %1927 = vmatprep.subr.mxu0 0.0
    %1928 = vmatpush1.msra.mxu0 0.0
    %1929 = vmatprep.subr.mxu0 0.0
    %1930 = vmatpush1.msra.mxu0 0.0
    %1931 = vmatprep.subr.mxu0 0.0
    %1932 = vmatpush1.msra.mxu0 0.0
    %1933 = vmatprep.subr.mxu0 0.0
    %1934 = vmatpush1.msra.mxu0 0.0
    %1935 = vmatprep.subr.mxu0 0.0
    %1936 = vmatpush1.msra.mxu0 0.0
    %1937 = vmatprep.subr.mxu0 0.0
    %1938 = vmatpush1.msra.mxu0 0.0
    %1939 = vmatprep.subr.mxu0 0.0
    %1940 = vmatpush1.msra.mxu0 0.0
    %1941 = vmatprep.subr.mxu0 0.0
    %1942 = vmatpush1.msra.mxu0 0.0
    %1943 = vmatprep.subr.mxu0 0.0
    %1944 = vmatpush1.msra.mxu0 0.0
    %1945 = vmatprep.subr.mxu0 0.0
    %1946 = vmatpush1.msra.mxu0 0.0
    %1947 = vmatprep.mubr.f32.mxu0 0.0
    %1948 = vmatmul.mubr.f32.gmra.mrb[0].mxu0 %v1810
    %v1949 = vpop.f32.mrb[0].mxu0
    %v1950 = vadd.f32 %v1807, %v1949
    %v1951 = vpop.f32.mrb[0].mxu0
    %v1952 = vadd.f32 %v1807, %v1951
    %1953 = vdwg.mxu0
    %v1954 = vmax.f32 %v1879, 0.0
    %v1955 = vmax.f32 %v1881, 0.0
    %v1956 = vmax.f32 %v1950, 0.0
    %v1957 = vmax.f32 %v1952, 0.0
    %s1958 = scalar_lea.vmem %s5, 24
    %v1959 = vld [vmem:[%s1958] sm:$0xff]
    %s1960 = scalar_lea.vmem %s6, 24
    %v1961 = vld [vmem:[%s1960] sm:$0xff]
    %1963 = vset.pattern.permute.xlu0 0
    %1964 = vperm.xlu0 %1963, %v1961
    %v1965 = vpop.permute.xlu0 %1964
    %v1968 = vsel %vm121, %v1959, 0
    %1970 = vmatprep.subr.mxu0 %v1955
    %1971 = vmatpush1.msra.mxu0 %v1954
    %1972 = vmatprep.subr.mxu0 0.0
    %1973 = vmatpush1.msra.mxu0 0.0
    %1974 = vmatprep.subr.mxu0 0.0
    %1975 = vmatpush1.msra.mxu0 0.0
    %1976 = vmatprep.subr.mxu0 0.0
    %1977 = vmatpush1.msra.mxu0 0.0
    %1978 = vmatprep.subr.mxu0 0.0
    %1979 = vmatpush1.msra.mxu0 0.0
    %1980 = vmatprep.subr.mxu0 0.0
    %1981 = vmatpush1.msra.mxu0 0.0
    %1982 = vmatprep.subr.mxu0 0.0
    %1983 = vmatpush1.msra.mxu0 0.0
    %1984 = vmatprep.subr.mxu0 0.0
    %1985 = vmatpush1.msra.mxu0 0.0
    %1986 = vmatprep.subr.mxu0 0.0
    %1987 = vmatpush1.msra.mxu0 0.0
    %1988 = vmatprep.subr.mxu0 0.0
    %1989 = vmatpush1.msra.mxu0 0.0
    %1990 = vmatprep.subr.mxu0 0.0
    %1991 = vmatpush1.msra.mxu0 0.0
    %1992 = vmatprep.subr.mxu0 0.0
    %1993 = vmatpush1.msra.mxu0 0.0
    %1994 = vmatprep.subr.mxu0 0.0
    %1995 = vmatpush1.msra.mxu0 0.0
    %1996 = vmatprep.subr.mxu0 0.0
    %1997 = vmatpush1.msra.mxu0 0.0
    %1998 = vmatprep.subr.mxu0 0.0
    %1999 = vmatpush1.msra.mxu0 0.0
    %2000 = vmatprep.subr.mxu0 0.0
    %2001 = vmatpush1.msra.mxu0 0.0
    %2002 = vmatprep.subr.mxu0 0.0
    %2003 = vmatpush1.msra.mxu0 0.0
    %2004 = vmatprep.subr.mxu0 0.0
    %2005 = vmatpush1.msra.mxu0 0.0
    %2006 = vmatprep.subr.mxu0 0.0
    %2007 = vmatpush1.msra.mxu0 0.0
    %2008 = vmatprep.subr.mxu0 0.0
    %2009 = vmatpush1.msra.mxu0 0.0
    %2010 = vmatprep.subr.mxu0 0.0
    %2011 = vmatpush1.msra.mxu0 0.0
    %2012 = vmatprep.subr.mxu0 0.0
    %2013 = vmatpush1.msra.mxu0 0.0
    %2014 = vmatprep.subr.mxu0 0.0
    %2015 = vmatpush1.msra.mxu0 0.0
    %2016 = vmatprep.subr.mxu0 0.0
    %2017 = vmatpush1.msra.mxu0 0.0
    %2018 = vmatprep.subr.mxu0 0.0
    %2019 = vmatpush1.msra.mxu0 0.0
    %2020 = vmatprep.subr.mxu0 0.0
    %2021 = vmatpush1.msra.mxu0 0.0
    %2022 = vmatprep.subr.mxu0 0.0
    %2023 = vmatpush1.msra.mxu0 0.0
    %2024 = vmatprep.subr.mxu0 0.0
    %2025 = vmatpush1.msra.mxu0 0.0
    %2026 = vmatprep.subr.mxu0 0.0
    %2027 = vmatpush1.msra.mxu0 0.0
    %2028 = vmatprep.subr.mxu0 0.0
    %2029 = vmatpush1.msra.mxu0 0.0
    %2030 = vmatprep.subr.mxu0 0.0
    %2031 = vmatpush1.msra.mxu0 0.0
    %2032 = vmatprep.subr.mxu0 0.0
    %2033 = vmatpush1.msra.mxu0 0.0
    %2034 = vmatprep.mubr.f32.mxu0 0.0
    %2035 = vmatmul.mubr.f32.gmra.mrb[0].mxu0 %v1968
    %v2036 = vpop.f32.mrb[0].mxu0
    %v2037 = vadd.f32 %v1965, %v2036
    %v2038 = vpop.f32.mrb[0].mxu0
    %v2039 = vadd.f32 %v1965, %v2038
    %2040 = vdwg.mxu0
    %2041 = vmatprep.subr.mxu0 %v1957
    %2042 = vmatpush1.msra.mxu0 %v1956
    %2043 = vmatprep.subr.mxu0 0.0
    %2044 = vmatpush1.msra.mxu0 0.0
    %2045 = vmatprep.subr.mxu0 0.0
    %2046 = vmatpush1.msra.mxu0 0.0
    %2047 = vmatprep.subr.mxu0 0.0
    %2048 = vmatpush1.msra.mxu0 0.0
    %2049 = vmatprep.subr.mxu0 0.0
    %2050 = vmatpush1.msra.mxu0 0.0
    %2051 = vmatprep.subr.mxu0 0.0
    %2052 = vmatpush1.msra.mxu0 0.0
    %2053 = vmatprep.subr.mxu0 0.0
    %2054 = vmatpush1.msra.mxu0 0.0
    %2055 = vmatprep.subr.mxu0 0.0
    %2056 = vmatpush1.msra.mxu0 0.0
    %2057 = vmatprep.subr.mxu0 0.0
    %2058 = vmatpush1.msra.mxu0 0.0
    %2059 = vmatprep.subr.mxu0 0.0
    %2060 = vmatpush1.msra.mxu0 0.0
    %2061 = vmatprep.subr.mxu0 0.0
    %2062 = vmatpush1.msra.mxu0 0.0
    %2063 = vmatprep.subr.mxu0 0.0
    %2064 = vmatpush1.msra.mxu0 0.0
    %2065 = vmatprep.subr.mxu0 0.0
    %2066 = vmatpush1.msra.mxu0 0.0
    %2067 = vmatprep.subr.mxu0 0.0
    %2068 = vmatpush1.msra.mxu0 0.0
    %2069 = vmatprep.subr.mxu0 0.0
    %2070 = vmatpush1.msra.mxu0 0.0
    %2071 = vmatprep.subr.mxu0 0.0
    %2072 = vmatpush1.msra.mxu0 0.0
    %2073 = vmatprep.subr.mxu0 0.0
    %2074 = vmatpush1.msra.mxu0 0.0
    %2075 = vmatprep.subr.mxu0 0.0
    %2076 = vmatpush1.msra.mxu0 0.0
    %2077 = vmatprep.subr.mxu0 0.0
    %2078 = vmatpush1.msra.mxu0 0.0
    %2079 = vmatprep.subr.mxu0 0.0
    %2080 = vmatpush1.msra.mxu0 0.0
    %2081 = vmatprep.subr.mxu0 0.0
    %2082 = vmatpush1.msra.mxu0 0.0
    %2083 = vmatprep.subr.mxu0 0.0
    %2084 = vmatpush1.msra.mxu0 0.0
    %2085 = vmatprep.subr.mxu0 0.0
    %2086 = vmatpush1.msra.mxu0 0.0
    %2087 = vmatprep.subr.mxu0 0.0
    %2088 = vmatpush1.msra.mxu0 0.0
    %2089 = vmatprep.subr.mxu0 0.0
    %2090 = vmatpush1.msra.mxu0 0.0
    %2091 = vmatprep.subr.mxu0 0.0
    %2092 = vmatpush1.msra.mxu0 0.0
    %2093 = vmatprep.subr.mxu0 0.0
    %2094 = vmatpush1.msra.mxu0 0.0
    %2095 = vmatprep.subr.mxu0 0.0
    %2096 = vmatpush1.msra.mxu0 0.0
    %2097 = vmatprep.subr.mxu0 0.0
    %2098 = vmatpush1.msra.mxu0 0.0
    %2099 = vmatprep.subr.mxu0 0.0
    %2100 = vmatpush1.msra.mxu0 0.0
    %2101 = vmatprep.subr.mxu0 0.0
    %2102 = vmatpush1.msra.mxu0 0.0
    %2103 = vmatprep.subr.mxu0 0.0
    %2104 = vmatpush1.msra.mxu0 0.0
    %2105 = vmatprep.mubr.f32.mxu0 0.0
    %2106 = vmatmul.mubr.f32.gmra.mrb[0].mxu0 %v1968
    %v2107 = vpop.f32.mrb[0].mxu0
    %v2108 = vadd.f32 %v1965, %v2107
    %v2109 = vpop.f32.mrb[0].mxu0
    %v2110 = vadd.f32 %v1965, %v2109
    %2111 = vdwg.mxu0
    %v2112 = vadd.f32 %v1669, %v2037
    %v2113 = vadd.f32 %v1671, %v2039
    %v2114 = vadd.f32 %v1740, %v2108
    %v2115 = vadd.f32 %v1742, %v2110
    %2116 = vrot.lane.b32.xlu0 %v2112, 2
    %v2117 = vpop.permute.xlu0 %2116
    %2118 = vrot.lane.b32.xlu0 %v2113, 2
    %v2119 = vpop.permute.xlu0 %2118
    %2120 = vrot.lane.b32.xlu0 %v2114, 2
    %v2121 = vpop.permute.xlu0 %2120
    %2122 = vrot.lane.b32.xlu0 %v2115, 2
    %v2123 = vpop.permute.xlu0 %2122
    %v2124 = vsel %vm662, %v2121, %v2123
    %v2125 = vsel %vm662, %v2119, %v2121
    %v2126 = vsel %vm662, %v2117, %v2119
    %v2127 = vsel %vm662, %v2123, %v2117
    %v2128 = vsel %vm671, %v2127, 0.0
    %v2129 = vsel %vm672, %v2126, 0.0
    %v2130 = vsel %vm673, %v2125, 0.0
    %v2131 = vsel %vm674, %v2124, 0.0
    %2132 = vrot.lane.b32.xlu0 %v2112, 126
    %v2133 = vpop.permute.xlu0 %2132
    %2134 = vrot.lane.b32.xlu0 %v2113, 126
    %v2135 = vpop.permute.xlu0 %2134
    %2136 = vrot.lane.b32.xlu0 %v2114, 126
    %v2137 = vpop.permute.xlu0 %2136
    %2138 = vrot.lane.b32.xlu0 %v2115, 126
    %v2139 = vpop.permute.xlu0 %2138
    %v2140 = vsel %vm687, %v2137, %v2139
    %v2141 = vsel %vm687, %v2135, %v2137
    %v2142 = vsel %vm687, %v2133, %v2135
    %v2143 = vsel %vm687, %v2139, %v2133
    %v2144 = vsel %vm696, %v2142, 0.0
    %v2145 = vsel %vm697, %v2141, 0.0
    %v2146 = vsel %vm698, %v2140, 0.0
    %v2147 = vsel %vm699, %v2143, 0.0
    %2148 = vst [vmem:[#allocation2] sm:$0xff] %v2128
    %2149 = vst [vmem:[#allocation2 + $0x8] sm:$0xff] %v2129
    %2150 = vst [vmem:[#allocation2 + $0x10] sm:$0xff] %v2130
    %2151 = vst [vmem:[#allocation2 + $0x18] sm:$0xff] %v2131
    %2152 = vst [vmem:[#allocation2 + $0x20] sm:$0xff] %v2112
    %2153 = vst [vmem:[#allocation2 + $0x28] sm:$0xff] %v2113
    %2154 = vst [vmem:[#allocation2 + $0x30] sm:$0xff] %v2114
    %2155 = vst [vmem:[#allocation2 + $0x38] sm:$0xff] %v2115
    %2156 = vst [vmem:[#allocation2 + $0x40] sm:$0xff] %v2144
    %2157 = vst [vmem:[#allocation2 + $0x48] sm:$0xff] %v2145
    %2158 = vst [vmem:[#allocation2 + $0x50] sm:$0xff] %v2146
    %2159 = vst [vmem:[#allocation2 + $0x58] sm:$0xff] %v2147
    %s2160 = scalar_lea.vmem %s3, 32
    %v2161 = vld [vmem:[%s2160] sm:$0xff]
    %v2162 = vld [vmem:[#allocation2] sm:$0xff]
    %v2163 = vld [vmem:[#allocation2 + $0x8] sm:$0xff]
    %v2164 = vld [vmem:[#allocation2 + $0x10] sm:$0xff]
    %v2165 = vld [vmem:[#allocation2 + $0x18] sm:$0xff]
    %v2166 = vld [vmem:[#allocation2 + $0x20] sm:$0xff]
    %v2167 = vld [vmem:[#allocation2 + $0x28] sm:$0xff]
    %v2168 = vld [vmem:[#allocation2 + $0x30] sm:$0xff]
    %v2169 = vld [vmem:[#allocation2 + $0x38] sm:$0xff]
    %v2170 = vld [vmem:[#allocation2 + $0x40] sm:$0xff]
    %v2171 = vld [vmem:[#allocation2 + $0x48] sm:$0xff]
    %v2172 = vld [vmem:[#allocation2 + $0x50] sm:$0xff]
    %v2173 = vld [vmem:[#allocation2 + $0x58] sm:$0xff]
    %s2174 = scalar_lea.vmem %s4, 32
    %v2175 = vld [vmem:[%s2174] sm:$0xff]
    %2177 = vset.pattern.permute.xlu0 0
    %2178 = vperm.xlu0 %2177, %v2175
    %v2179 = vpop.permute.xlu0 %2178
    %v2182 = vsel %vm348, %v2161, 0
    %2184 = vmatprep.subr.mxu0 %v2163
    %2185 = vmatpush1.msra.mxu0 %v2162
    %2186 = vmatprep.subr.mxu0 %v2167
    %2187 = vmatpush1.msra.mxu0 %v2166
    %2188 = vmatprep.subr.mxu0 %v2171
    %2189 = vmatpush1.msra.mxu0 %v2170
    %2190 = vmatprep.subr.mxu0 0.0
    %2191 = vmatpush1.msra.mxu0 0.0
    %2192 = vmatprep.subr.mxu0 0.0
    %2193 = vmatpush1.msra.mxu0 0.0
    %2194 = vmatprep.subr.mxu0 0.0
    %2195 = vmatpush1.msra.mxu0 0.0
    %2196 = vmatprep.subr.mxu0 0.0
    %2197 = vmatpush1.msra.mxu0 0.0
    %2198 = vmatprep.subr.mxu0 0.0
    %2199 = vmatpush1.msra.mxu0 0.0
    %2200 = vmatprep.subr.mxu0 0.0
    %2201 = vmatpush1.msra.mxu0 0.0
    %2202 = vmatprep.subr.mxu0 0.0
    %2203 = vmatpush1.msra.mxu0 0.0
    %2204 = vmatprep.subr.mxu0 0.0
    %2205 = vmatpush1.msra.mxu0 0.0
    %2206 = vmatprep.subr.mxu0 0.0
    %2207 = vmatpush1.msra.mxu0 0.0
    %2208 = vmatprep.subr.mxu0 0.0
    %2209 = vmatpush1.msra.mxu0 0.0
    %2210 = vmatprep.subr.mxu0 0.0
    %2211 = vmatpush1.msra.mxu0 0.0
    %2212 = vmatprep.subr.mxu0 0.0
    %2213 = vmatpush1.msra.mxu0 0.0
    %2214 = vmatprep.subr.mxu0 0.0
    %2215 = vmatpush1.msra.mxu0 0.0
    %2216 = vmatprep.subr.mxu0 0.0
    %2217 = vmatpush1.msra.mxu0 0.0
    %2218 = vmatprep.subr.mxu0 0.0
    %2219 = vmatpush1.msra.mxu0 0.0
    %2220 = vmatprep.subr.mxu0 0.0
    %2221 = vmatpush1.msra.mxu0 0.0
    %2222 = vmatprep.subr.mxu0 0.0
    %2223 = vmatpush1.msra.mxu0 0.0
    %2224 = vmatprep.subr.mxu0 0.0
    %2225 = vmatpush1.msra.mxu0 0.0
    %2226 = vmatprep.subr.mxu0 0.0
    %2227 = vmatpush1.msra.mxu0 0.0
    %2228 = vmatprep.subr.mxu0 0.0
    %2229 = vmatpush1.msra.mxu0 0.0
    %2230 = vmatprep.subr.mxu0 0.0
    %2231 = vmatpush1.msra.mxu0 0.0
    %2232 = vmatprep.subr.mxu0 0.0
    %2233 = vmatpush1.msra.mxu0 0.0
    %2234 = vmatprep.subr.mxu0 0.0
    %2235 = vmatpush1.msra.mxu0 0.0
    %2236 = vmatprep.subr.mxu0 0.0
    %2237 = vmatpush1.msra.mxu0 0.0
    %2238 = vmatprep.subr.mxu0 0.0
    %2239 = vmatpush1.msra.mxu0 0.0
    %2240 = vmatprep.subr.mxu0 0.0
    %2241 = vmatpush1.msra.mxu0 0.0
    %2242 = vmatprep.subr.mxu0 0.0
    %2243 = vmatpush1.msra.mxu0 0.0
    %2244 = vmatprep.subr.mxu0 0.0
    %2245 = vmatpush1.msra.mxu0 0.0
    %2246 = vmatprep.subr.mxu0 0.0
    %2247 = vmatpush1.msra.mxu0 0.0
    %2248 = vmatprep.mubr.f32.mxu0 0.0
    %2249 = vmatmul.mubr.f32.gmra.mrb[0].mxu0 %v2182
    %v2250 = vpop.f32.mrb[0].mxu0
    %v2251 = vadd.f32 %v2179, %v2250
    %v2252 = vpop.f32.mrb[0].mxu0
    %v2253 = vadd.f32 %v2179, %v2252
    %2254 = vdwg.mxu0
    %2255 = vmatprep.subr.mxu0 %v2165
    %2256 = vmatpush1.msra.mxu0 %v2164
    %2257 = vmatprep.subr.mxu0 %v2169
    %2258 = vmatpush1.msra.mxu0 %v2168
    %2259 = vmatprep.subr.mxu0 %v2173
    %2260 = vmatpush1.msra.mxu0 %v2172
    %2261 = vmatprep.subr.mxu0 0.0
    %2262 = vmatpush1.msra.mxu0 0.0
    %2263 = vmatprep.subr.mxu0 0.0
    %2264 = vmatpush1.msra.mxu0 0.0
    %2265 = vmatprep.subr.mxu0 0.0
    %2266 = vmatpush1.msra.mxu0 0.0
    %2267 = vmatprep.subr.mxu0 0.0
    %2268 = vmatpush1.msra.mxu0 0.0
    %2269 = vmatprep.subr.mxu0 0.0
    %2270 = vmatpush1.msra.mxu0 0.0
    %2271 = vmatprep.subr.mxu0 0.0
    %2272 = vmatpush1.msra.mxu0 0.0
    %2273 = vmatprep.subr.mxu0 0.0
    %2274 = vmatpush1.msra.mxu0 0.0
    %2275 = vmatprep.subr.mxu0 0.0
    %2276 = vmatpush1.msra.mxu0 0.0
    %2277 = vmatprep.subr.mxu0 0.0
    %2278 = vmatpush1.msra.mxu0 0.0
    %2279 = vmatprep.subr.mxu0 0.0
    %2280 = vmatpush1.msra.mxu0 0.0
    %2281 = vmatprep.subr.mxu0 0.0
    %2282 = vmatpush1.msra.mxu0 0.0
    %2283 = vmatprep.subr.mxu0 0.0
    %2284 = vmatpush1.msra.mxu0 0.0
    %2285 = vmatprep.subr.mxu0 0.0
    %2286 = vmatpush1.msra.mxu0 0.0
    %2287 = vmatprep.subr.mxu0 0.0
    %2288 = vmatpush1.msra.mxu0 0.0
    %2289 = vmatprep.subr.mxu0 0.0
    %2290 = vmatpush1.msra.mxu0 0.0
    %2291 = vmatprep.subr.mxu0 0.0
    %2292 = vmatpush1.msra.mxu0 0.0
    %2293 = vmatprep.subr.mxu0 0.0
    %2294 = vmatpush1.msra.mxu0 0.0
    %2295 = vmatprep.subr.mxu0 0.0
    %2296 = vmatpush1.msra.mxu0 0.0
    %2297 = vmatprep.subr.mxu0 0.0
    %2298 = vmatpush1.msra.mxu0 0.0
    %2299 = vmatprep.subr.mxu0 0.0
    %2300 = vmatpush1.msra.mxu0 0.0
    %2301 = vmatprep.subr.mxu0 0.0
    %2302 = vmatpush1.msra.mxu0 0.0
    %2303 = vmatprep.subr.mxu0 0.0
    %2304 = vmatpush1.msra.mxu0 0.0
    %2305 = vmatprep.subr.mxu0 0.0
    %2306 = vmatpush1.msra.mxu0 0.0
    %2307 = vmatprep.subr.mxu0 0.0
    %2308 = vmatpush1.msra.mxu0 0.0
    %2309 = vmatprep.subr.mxu0 0.0
    %2310 = vmatpush1.msra.mxu0 0.0
    %2311 = vmatprep.subr.mxu0 0.0
    %2312 = vmatpush1.msra.mxu0 0.0
    %2313 = vmatprep.subr.mxu0 0.0
    %2314 = vmatpush1.msra.mxu0 0.0
    %2315 = vmatprep.subr.mxu0 0.0
    %2316 = vmatpush1.msra.mxu0 0.0
    %2317 = vmatprep.subr.mxu0 0.0
    %2318 = vmatpush1.msra.mxu0 0.0
    %2319 = vmatprep.mubr.f32.mxu0 0.0
    %2320 = vmatmul.mubr.f32.gmra.mrb[0].mxu0 %v2182
    %v2321 = vpop.f32.mrb[0].mxu0
    %v2322 = vadd.f32 %v2179, %v2321
    %v2323 = vpop.f32.mrb[0].mxu0
    %v2324 = vadd.f32 %v2179, %v2323
    %2325 = vdwg.mxu0
    %v2326 = vmax.f32 %v2251, 0.0
    %v2327 = vmax.f32 %v2253, 0.0
    %v2328 = vmax.f32 %v2322, 0.0
    %v2329 = vmax.f32 %v2324, 0.0
    %s2330 = scalar_lea.vmem %s5, 32
    %v2331 = vld [vmem:[%s2330] sm:$0xff]
    %s2332 = scalar_lea.vmem %s6, 32
    %v2333 = vld [vmem:[%s2332] sm:$0xff]
    %2335 = vset.pattern.permute.xlu0 0
    %2336 = vperm.xlu0 %2335, %v2333
    %v2337 = vpop.permute.xlu0 %2336
    %v2340 = vsel %vm121, %v2331, 0
    %2342 = vmatprep.subr.mxu0 %v2327
    %2343 = vmatpush1.msra.mxu0 %v2326
    %2344 = vmatprep.subr.mxu0 0.0
    %2345 = vmatpush1.msra.mxu0 0.0
    %2346 = vmatprep.subr.mxu0 0.0
    %2347 = vmatpush1.msra.mxu0 0.0
    %2348 = vmatprep.subr.mxu0 0.0
    %2349 = vmatpush1.msra.mxu0 0.0
    %2350 = vmatprep.subr.mxu0 0.0
    %2351 = vmatpush1.msra.mxu0 0.0
    %2352 = vmatprep.subr.mxu0 0.0
    %2353 = vmatpush1.msra.mxu0 0.0
    %2354 = vmatprep.subr.mxu0 0.0
    %2355 = vmatpush1.msra.mxu0 0.0
    %2356 = vmatprep.subr.mxu0 0.0
    %2357 = vmatpush1.msra.mxu0 0.0
    %2358 = vmatprep.subr.mxu0 0.0
    %2359 = vmatpush1.msra.mxu0 0.0
    %2360 = vmatprep.subr.mxu0 0.0
    %2361 = vmatpush1.msra.mxu0 0.0
    %2362 = vmatprep.subr.mxu0 0.0
    %2363 = vmatpush1.msra.mxu0 0.0
    %2364 = vmatprep.subr.mxu0 0.0
    %2365 = vmatpush1.msra.mxu0 0.0
    %2366 = vmatprep.subr.mxu0 0.0
    %2367 = vmatpush1.msra.mxu0 0.0
    %2368 = vmatprep.subr.mxu0 0.0
    %2369 = vmatpush1.msra.mxu0 0.0
    %2370 = vmatprep.subr.mxu0 0.0
    %2371 = vmatpush1.msra.mxu0 0.0
    %2372 = vmatprep.subr.mxu0 0.0
    %2373 = vmatpush1.msra.mxu0 0.0
    %2374 = vmatprep.subr.mxu0 0.0
    %2375 = vmatpush1.msra.mxu0 0.0
    %2376 = vmatprep.subr.mxu0 0.0
    %2377 = vmatpush1.msra.mxu0 0.0
    %2378 = vmatprep.subr.mxu0 0.0
    %2379 = vmatpush1.msra.mxu0 0.0
    %2380 = vmatprep.subr.mxu0 0.0
    %2381 = vmatpush1.msra.mxu0 0.0
    %2382 = vmatprep.subr.mxu0 0.0
    %2383 = vmatpush1.msra.mxu0 0.0
    %2384 = vmatprep.subr.mxu0 0.0
    %2385 = vmatpush1.msra.mxu0 0.0
    %2386 = vmatprep.subr.mxu0 0.0
    %2387 = vmatpush1.msra.mxu0 0.0
    %2388 = vmatprep.subr.mxu0 0.0
    %2389 = vmatpush1.msra.mxu0 0.0
    %2390 = vmatprep.subr.mxu0 0.0
    %2391 = vmatpush1.msra.mxu0 0.0
    %2392 = vmatprep.subr.mxu0 0.0
    %2393 = vmatpush1.msra.mxu0 0.0
    %2394 = vmatprep.subr.mxu0 0.0
    %2395 = vmatpush1.msra.mxu0 0.0
    %2396 = vmatprep.subr.mxu0 0.0
    %2397 = vmatpush1.msra.mxu0 0.0
    %2398 = vmatprep.subr.mxu0 0.0
    %2399 = vmatpush1.msra.mxu0 0.0
    %2400 = vmatprep.subr.mxu0 0.0
    %2401 = vmatpush1.msra.mxu0 0.0
    %2402 = vmatprep.subr.mxu0 0.0
    %2403 = vmatpush1.msra.mxu0 0.0
    %2404 = vmatprep.subr.mxu0 0.0
    %2405 = vmatpush1.msra.mxu0 0.0
    %2406 = vmatprep.mubr.f32.mxu0 0.0
    %2407 = vmatmul.mubr.f32.gmra.mrb[0].mxu0 %v2340
    %v2408 = vpop.f32.mrb[0].mxu0
    %v2409 = vadd.f32 %v2337, %v2408
    %v2410 = vpop.f32.mrb[0].mxu0
    %v2411 = vadd.f32 %v2337, %v2410
    %2412 = vdwg.mxu0
    %2413 = vmatprep.subr.mxu0 %v2329
    %2414 = vmatpush1.msra.mxu0 %v2328
    %2415 = vmatprep.subr.mxu0 0.0
    %2416 = vmatpush1.msra.mxu0 0.0
    %2417 = vmatprep.subr.mxu0 0.0
    %2418 = vmatpush1.msra.mxu0 0.0
    %2419 = vmatprep.subr.mxu0 0.0
    %2420 = vmatpush1.msra.mxu0 0.0
    %2421 = vmatprep.subr.mxu0 0.0
    %2422 = vmatpush1.msra.mxu0 0.0
    %2423 = vmatprep.subr.mxu0 0.0
    %2424 = vmatpush1.msra.mxu0 0.0
    %2425 = vmatprep.subr.mxu0 0.0
    %2426 = vmatpush1.msra.mxu0 0.0
    %2427 = vmatprep.subr.mxu0 0.0
    %2428 = vmatpush1.msra.mxu0 0.0
    %2429 = vmatprep.subr.mxu0 0.0
    %2430 = vmatpush1.msra.mxu0 0.0
    %2431 = vmatprep.subr.mxu0 0.0
    %2432 = vmatpush1.msra.mxu0 0.0
    %2433 = vmatprep.subr.mxu0 0.0
    %2434 = vmatpush1.msra.mxu0 0.0
    %2435 = vmatprep.subr.mxu0 0.0
    %2436 = vmatpush1.msra.mxu0 0.0
    %2437 = vmatprep.subr.mxu0 0.0
    %2438 = vmatpush1.msra.mxu0 0.0
    %2439 = vmatprep.subr.mxu0 0.0
    %2440 = vmatpush1.msra.mxu0 0.0
    %2441 = vmatprep.subr.mxu0 0.0
    %2442 = vmatpush1.msra.mxu0 0.0
    %2443 = vmatprep.subr.mxu0 0.0
    %2444 = vmatpush1.msra.mxu0 0.0
    %2445 = vmatprep.subr.mxu0 0.0
    %2446 = vmatpush1.msra.mxu0 0.0
    %2447 = vmatprep.subr.mxu0 0.0
    %2448 = vmatpush1.msra.mxu0 0.0
    %2449 = vmatprep.subr.mxu0 0.0
    %2450 = vmatpush1.msra.mxu0 0.0
    %2451 = vmatprep.subr.mxu0 0.0
    %2452 = vmatpush1.msra.mxu0 0.0
    %2453 = vmatprep.subr.mxu0 0.0
    %2454 = vmatpush1.msra.mxu0 0.0
    %2455 = vmatprep.subr.mxu0 0.0
    %2456 = vmatpush1.msra.mxu0 0.0
    %2457 = vmatprep.subr.mxu0 0.0
    %2458 = vmatpush1.msra.mxu0 0.0
    %2459 = vmatprep.subr.mxu0 0.0
    %2460 = vmatpush1.msra.mxu0 0.0
    %2461 = vmatprep.subr.mxu0 0.0
    %2462 = vmatpush1.msra.mxu0 0.0
    %2463 = vmatprep.subr.mxu0 0.0
    %2464 = vmatpush1.msra.mxu0 0.0
    %2465 = vmatprep.subr.mxu0 0.0
    %2466 = vmatpush1.msra.mxu0 0.0
    %2467 = vmatprep.subr.mxu0 0.0
    %2468 = vmatpush1.msra.mxu0 0.0
    %2469 = vmatprep.subr.mxu0 0.0
    %2470 = vmatpush1.msra.mxu0 0.0
    %2471 = vmatprep.subr.mxu0 0.0
    %2472 = vmatpush1.msra.mxu0 0.0
    %2473 = vmatprep.subr.mxu0 0.0
    %2474 = vmatpush1.msra.mxu0 0.0
    %2475 = vmatprep.subr.mxu0 0.0
    %2476 = vmatpush1.msra.mxu0 0.0
    %2477 = vmatprep.mubr.f32.mxu0 0.0
    %2478 = vmatmul.mubr.f32.gmra.mrb[0].mxu0 %v2340
    %v2479 = vpop.f32.mrb[0].mxu0
    %v2480 = vadd.f32 %v2337, %v2479
    %v2481 = vpop.f32.mrb[0].mxu0
    %v2482 = vadd.f32 %v2337, %v2481
    %2483 = vdwg.mxu0
    %v2484 = vadd.f32 %v2112, %v2409
    %v2485 = vadd.f32 %v2113, %v2411
    %v2486 = vadd.f32 %v2114, %v2480
    %v2487 = vadd.f32 %v2115, %v2482
    %2488 = vrot.lane.b32.xlu0 %v2484, 4
    %v2489 = vpop.permute.xlu0 %2488
    %2490 = vrot.lane.b32.xlu0 %v2485, 4
    %v2491 = vpop.permute.xlu0 %2490
    %2492 = vrot.lane.b32.xlu0 %v2486, 4
    %v2493 = vpop.permute.xlu0 %2492
    %2494 = vrot.lane.b32.xlu0 %v2487, 4
    %v2495 = vpop.permute.xlu0 %2494
    %v2496 = vsel %vm1052, %v2493, %v2495
    %v2497 = vsel %vm1052, %v2491, %v2493
    %v2498 = vsel %vm1052, %v2489, %v2491
    %v2499 = vsel %vm1052, %v2495, %v2489
    %v2500 = vsel %vm1061, %v2499, 0.0
    %v2501 = vsel %vm1062, %v2498, 0.0
    %v2502 = vsel %vm1063, %v2497, 0.0
    %v2503 = vsel %vm1064, %v2496, 0.0
    %2504 = vrot.lane.b32.xlu0 %v2484, 124
    %v2505 = vpop.permute.xlu0 %2504
    %2506 = vrot.lane.b32.xlu0 %v2485, 124
    %v2507 = vpop.permute.xlu0 %2506
    %2508 = vrot.lane.b32.xlu0 %v2486, 124
    %v2509 = vpop.permute.xlu0 %2508
    %2510 = vrot.lane.b32.xlu0 %v2487, 124
    %v2511 = vpop.permute.xlu0 %2510
    %v2512 = vsel %vm1077, %v2509, %v2511
    %v2513 = vsel %vm1077, %v2507, %v2509
    %v2514 = vsel %vm1077, %v2505, %v2507
    %v2515 = vsel %vm1077, %v2511, %v2505
    %v2516 = vsel %vm1086, %v2514, 0.0
    %v2517 = vsel %vm1087, %v2513, 0.0
    %v2518 = vsel %vm1088, %v2512, 0.0
    %v2519 = vsel %vm1089, %v2515, 0.0
    %2520 = vst [vmem:[#allocation2] sm:$0xff] %v2500
    %2521 = vst [vmem:[#allocation2 + $0x8] sm:$0xff] %v2501
    %2522 = vst [vmem:[#allocation2 + $0x10] sm:$0xff] %v2502
    %2523 = vst [vmem:[#allocation2 + $0x18] sm:$0xff] %v2503
    %2524 = vst [vmem:[#allocation2 + $0x20] sm:$0xff] %v2484
    %2525 = vst [vmem:[#allocation2 + $0x28] sm:$0xff] %v2485
    %2526 = vst [vmem:[#allocation2 + $0x30] sm:$0xff] %v2486
    %2527 = vst [vmem:[#allocation2 + $0x38] sm:$0xff] %v2487
    %2528 = vst [vmem:[#allocation2 + $0x40] sm:$0xff] %v2516
    %2529 = vst [vmem:[#allocation2 + $0x48] sm:$0xff] %v2517
    %2530 = vst [vmem:[#allocation2 + $0x50] sm:$0xff] %v2518
    %2531 = vst [vmem:[#allocation2 + $0x58] sm:$0xff] %v2519
    %s2532 = scalar_lea.vmem %s3, 40
    %v2533 = vld [vmem:[%s2532] sm:$0xff]
    %v2534 = vld [vmem:[#allocation2] sm:$0xff]
    %v2535 = vld [vmem:[#allocation2 + $0x8] sm:$0xff]
    %v2536 = vld [vmem:[#allocation2 + $0x10] sm:$0xff]
    %v2537 = vld [vmem:[#allocation2 + $0x18] sm:$0xff]
    %v2538 = vld [vmem:[#allocation2 + $0x20] sm:$0xff]
    %v2539 = vld [vmem:[#allocation2 + $0x28] sm:$0xff]
    %v2540 = vld [vmem:[#allocation2 + $0x30] sm:$0xff]
    %v2541 = vld [vmem:[#allocation2 + $0x38] sm:$0xff]
    %v2542 = vld [vmem:[#allocation2 + $0x40] sm:$0xff]
    %v2543 = vld [vmem:[#allocation2 + $0x48] sm:$0xff]
    %v2544 = vld [vmem:[#allocation2 + $0x50] sm:$0xff]
    %v2545 = vld [vmem:[#allocation2 + $0x58] sm:$0xff]
    %s2546 = scalar_lea.vmem %s4, 40
    %v2547 = vld [vmem:[%s2546] sm:$0xff]
    %2549 = vset.pattern.permute.xlu0 0
    %2550 = vperm.xlu0 %2549, %v2547
    %v2551 = vpop.permute.xlu0 %2550
    %v2554 = vsel %vm348, %v2533, 0
    %2556 = vmatprep.subr.mxu0 %v2535
    %2557 = vmatpush1.msra.mxu0 %v2534
    %2558 = vmatprep.subr.mxu0 %v2539
    %2559 = vmatpush1.msra.mxu0 %v2538
    %2560 = vmatprep.subr.mxu0 %v2543
    %2561 = vmatpush1.msra.mxu0 %v2542
    %2562 = vmatprep.subr.mxu0 0.0
    %2563 = vmatpush1.msra.mxu0 0.0
    %2564 = vmatprep.subr.mxu0 0.0
    %2565 = vmatpush1.msra.mxu0 0.0
    %2566 = vmatprep.subr.mxu0 0.0
    %2567 = vmatpush1.msra.mxu0 0.0
    %2568 = vmatprep.subr.mxu0 0.0
    %2569 = vmatpush1.msra.mxu0 0.0
    %2570 = vmatprep.subr.mxu0 0.0
    %2571 = vmatpush1.msra.mxu0 0.0
    %2572 = vmatprep.subr.mxu0 0.0
    %2573 = vmatpush1.msra.mxu0 0.0
    %2574 = vmatprep.subr.mxu0 0.0
    %2575 = vmatpush1.msra.mxu0 0.0
    %2576 = vmatprep.subr.mxu0 0.0
    %2577 = vmatpush1.msra.mxu0 0.0
    %2578 = vmatprep.subr.mxu0 0.0
    %2579 = vmatpush1.msra.mxu0 0.0
    %2580 = vmatprep.subr.mxu0 0.0
    %2581 = vmatpush1.msra.mxu0 0.0
    %2582 = vmatprep.subr.mxu0 0.0
    %2583 = vmatpush1.msra.mxu0 0.0
    %2584 = vmatprep.subr.mxu0 0.0
    %2585 = vmatpush1.msra.mxu0 0.0
    %2586 = vmatprep.subr.mxu0 0.0
    %2587 = vmatpush1.msra.mxu0 0.0
    %2588 = vmatprep.subr.mxu0 0.0
    %2589 = vmatpush1.msra.mxu0 0.0
    %2590 = vmatprep.subr.mxu0 0.0
    %2591 = vmatpush1.msra.mxu0 0.0
    %2592 = vmatprep.subr.mxu0 0.0
    %2593 = vmatpush1.msra.mxu0 0.0
    %2594 = vmatprep.subr.mxu0 0.0
    %2595 = vmatpush1.msra.mxu0 0.0
    %2596 = vmatprep.subr.mxu0 0.0
    %2597 = vmatpush1.msra.mxu0 0.0
    %2598 = vmatprep.subr.mxu0 0.0
    %2599 = vmatpush1.msra.mxu0 0.0
    %2600 = vmatprep.subr.mxu0 0.0
    %2601 = vmatpush1.msra.mxu0 0.0
    %2602 = vmatprep.subr.mxu0 0.0
    %2603 = vmatpush1.msra.mxu0 0.0
    %2604 = vmatprep.subr.mxu0 0.0
    %2605 = vmatpush1.msra.mxu0 0.0
    %2606 = vmatprep.subr.mxu0 0.0
    %2607 = vmatpush1.msra.mxu0 0.0
    %2608 = vmatprep.subr.mxu0 0.0
    %2609 = vmatpush1.msra.mxu0 0.0
    %2610 = vmatprep.subr.mxu0 0.0
    %2611 = vmatpush1.msra.mxu0 0.0
    %2612 = vmatprep.subr.mxu0 0.0
    %2613 = vmatpush1.msra.mxu0 0.0
    %2614 = vmatprep.subr.mxu0 0.0
    %2615 = vmatpush1.msra.mxu0 0.0
    %2616 = vmatprep.subr.mxu0 0.0
    %2617 = vmatpush1.msra.mxu0 0.0
    %2618 = vmatprep.subr.mxu0 0.0
    %2619 = vmatpush1.msra.mxu0 0.0
    %2620 = vmatprep.mubr.f32.mxu0 0.0
    %2621 = vmatmul.mubr.f32.gmra.mrb[0].mxu0 %v2554
    %v2622 = vpop.f32.mrb[0].mxu0
    %v2623 = vadd.f32 %v2551, %v2622
    %v2624 = vpop.f32.mrb[0].mxu0
    %v2625 = vadd.f32 %v2551, %v2624
    %2626 = vdwg.mxu0
    %2627 = vmatprep.subr.mxu0 %v2537
    %2628 = vmatpush1.msra.mxu0 %v2536
    %2629 = vmatprep.subr.mxu0 %v2541
    %2630 = vmatpush1.msra.mxu0 %v2540
    %2631 = vmatprep.subr.mxu0 %v2545
    %2632 = vmatpush1.msra.mxu0 %v2544
    %2633 = vmatprep.subr.mxu0 0.0
    %2634 = vmatpush1.msra.mxu0 0.0
    %2635 = vmatprep.subr.mxu0 0.0
    %2636 = vmatpush1.msra.mxu0 0.0
    %2637 = vmatprep.subr.mxu0 0.0
    %2638 = vmatpush1.msra.mxu0 0.0
    %2639 = vmatprep.subr.mxu0 0.0
    %2640 = vmatpush1.msra.mxu0 0.0
    %2641 = vmatprep.subr.mxu0 0.0
    %2642 = vmatpush1.msra.mxu0 0.0
    %2643 = vmatprep.subr.mxu0 0.0
    %2644 = vmatpush1.msra.mxu0 0.0
    %2645 = vmatprep.subr.mxu0 0.0
    %2646 = vmatpush1.msra.mxu0 0.0
    %2647 = vmatprep.subr.mxu0 0.0
    %2648 = vmatpush1.msra.mxu0 0.0
    %2649 = vmatprep.subr.mxu0 0.0
    %2650 = vmatpush1.msra.mxu0 0.0
    %2651 = vmatprep.subr.mxu0 0.0
    %2652 = vmatpush1.msra.mxu0 0.0
    %2653 = vmatprep.subr.mxu0 0.0
    %2654 = vmatpush1.msra.mxu0 0.0
    %2655 = vmatprep.subr.mxu0 0.0
    %2656 = vmatpush1.msra.mxu0 0.0
    %2657 = vmatprep.subr.mxu0 0.0
    %2658 = vmatpush1.msra.mxu0 0.0
    %2659 = vmatprep.subr.mxu0 0.0
    %2660 = vmatpush1.msra.mxu0 0.0
    %2661 = vmatprep.subr.mxu0 0.0
    %2662 = vmatpush1.msra.mxu0 0.0
    %2663 = vmatprep.subr.mxu0 0.0
    %2664 = vmatpush1.msra.mxu0 0.0
    %2665 = vmatprep.subr.mxu0 0.0
    %2666 = vmatpush1.msra.mxu0 0.0
    %2667 = vmatprep.subr.mxu0 0.0
    %2668 = vmatpush1.msra.mxu0 0.0
    %2669 = vmatprep.subr.mxu0 0.0
    %2670 = vmatpush1.msra.mxu0 0.0
    %2671 = vmatprep.subr.mxu0 0.0
    %2672 = vmatpush1.msra.mxu0 0.0
    %2673 = vmatprep.subr.mxu0 0.0
    %2674 = vmatpush1.msra.mxu0 0.0
    %2675 = vmatprep.subr.mxu0 0.0
    %2676 = vmatpush1.msra.mxu0 0.0
    %2677 = vmatprep.subr.mxu0 0.0
    %2678 = vmatpush1.msra.mxu0 0.0
    %2679 = vmatprep.subr.mxu0 0.0
    %2680 = vmatpush1.msra.mxu0 0.0
    %2681 = vmatprep.subr.mxu0 0.0
    %2682 = vmatpush1.msra.mxu0 0.0
    %2683 = vmatprep.subr.mxu0 0.0
    %2684 = vmatpush1.msra.mxu0 0.0
    %2685 = vmatprep.subr.mxu0 0.0
    %2686 = vmatpush1.msra.mxu0 0.0
    %2687 = vmatprep.subr.mxu0 0.0
    %2688 = vmatpush1.msra.mxu0 0.0
    %2689 = vmatprep.subr.mxu0 0.0
    %2690 = vmatpush1.msra.mxu0 0.0
    %2691 = vmatprep.mubr.f32.mxu0 0.0
    %2692 = vmatmul.mubr.f32.gmra.mrb[0].mxu0 %v2554
    %v2693 = vpop.f32.mrb[0].mxu0
    %v2694 = vadd.f32 %v2551, %v2693
    %v2695 = vpop.f32.mrb[0].mxu0
    %v2696 = vadd.f32 %v2551, %v2695
    %2697 = vdwg.mxu0
    %v2698 = vmax.f32 %v2623, 0.0
    %v2699 = vmax.f32 %v2625, 0.0
    %v2700 = vmax.f32 %v2694, 0.0
    %v2701 = vmax.f32 %v2696, 0.0
    %s2702 = scalar_lea.vmem %s5, 40
    %v2703 = vld [vmem:[%s2702] sm:$0xff]
    %s2704 = scalar_lea.vmem %s6, 40
    %v2705 = vld [vmem:[%s2704] sm:$0xff]
    %2707 = vset.pattern.permute.xlu0 0
    %2708 = vperm.xlu0 %2707, %v2705
    %v2709 = vpop.permute.xlu0 %2708
    %v2712 = vsel %vm121, %v2703, 0
    %2714 = vmatprep.subr.mxu0 %v2699
    %2715 = vmatpush1.msra.mxu0 %v2698
    %2716 = vmatprep.subr.mxu0 0.0
    %2717 = vmatpush1.msra.mxu0 0.0
    %2718 = vmatprep.subr.mxu0 0.0
    %2719 = vmatpush1.msra.mxu0 0.0
    %2720 = vmatprep.subr.mxu0 0.0
    %2721 = vmatpush1.msra.mxu0 0.0
    %2722 = vmatprep.subr.mxu0 0.0
    %2723 = vmatpush1.msra.mxu0 0.0
    %2724 = vmatprep.subr.mxu0 0.0
    %2725 = vmatpush1.msra.mxu0 0.0
    %2726 = vmatprep.subr.mxu0 0.0
    %2727 = vmatpush1.msra.mxu0 0.0
    %2728 = vmatprep.subr.mxu0 0.0
    %2729 = vmatpush1.msra.mxu0 0.0
    %2730 = vmatprep.subr.mxu0 0.0
    %2731 = vmatpush1.msra.mxu0 0.0
    %2732 = vmatprep.subr.mxu0 0.0
    %2733 = vmatpush1.msra.mxu0 0.0
    %2734 = vmatprep.subr.mxu0 0.0
    %2735 = vmatpush1.msra.mxu0 0.0
    %2736 = vmatprep.subr.mxu0 0.0
    %2737 = vmatpush1.msra.mxu0 0.0
    %2738 = vmatprep.subr.mxu0 0.0
    %2739 = vmatpush1.msra.mxu0 0.0
    %2740 = vmatprep.subr.mxu0 0.0
    %2741 = vmatpush1.msra.mxu0 0.0
    %2742 = vmatprep.subr.mxu0 0.0
    %2743 = vmatpush1.msra.mxu0 0.0
    %2744 = vmatprep.subr.mxu0 0.0
    %2745 = vmatpush1.msra.mxu0 0.0
    %2746 = vmatprep.subr.mxu0 0.0
    %2747 = vmatpush1.msra.mxu0 0.0
    %2748 = vmatprep.subr.mxu0 0.0
    %2749 = vmatpush1.msra.mxu0 0.0
    %2750 = vmatprep.subr.mxu0 0.0
    %2751 = vmatpush1.msra.mxu0 0.0
    %2752 = vmatprep.subr.mxu0 0.0
    %2753 = vmatpush1.msra.mxu0 0.0
    %2754 = vmatprep.subr.mxu0 0.0
    %2755 = vmatpush1.msra.mxu0 0.0
    %2756 = vmatprep.subr.mxu0 0.0
    %2757 = vmatpush1.msra.mxu0 0.0
    %2758 = vmatprep.subr.mxu0 0.0
    %2759 = vmatpush1.msra.mxu0 0.0
    %2760 = vmatprep.subr.mxu0 0.0
    %2761 = vmatpush1.msra.mxu0 0.0
    %2762 = vmatprep.subr.mxu0 0.0
    %2763 = vmatpush1.msra.mxu0 0.0
    %2764 = vmatprep.subr.mxu0 0.0
    %2765 = vmatpush1.msra.mxu0 0.0
    %2766 = vmatprep.subr.mxu0 0.0
    %2767 = vmatpush1.msra.mxu0 0.0
    %2768 = vmatprep.subr.mxu0 0.0
    %2769 = vmatpush1.msra.mxu0 0.0
    %2770 = vmatprep.subr.mxu0 0.0
    %2771 = vmatpush1.msra.mxu0 0.0
    %2772 = vmatprep.subr.mxu0 0.0
    %2773 = vmatpush1.msra.mxu0 0.0
    %2774 = vmatprep.subr.mxu0 0.0
    %2775 = vmatpush1.msra.mxu0 0.0
    %2776 = vmatprep.subr.mxu0 0.0
    %2777 = vmatpush1.msra.mxu0 0.0
    %2778 = vmatprep.mubr.f32.mxu0 0.0
    %2779 = vmatmul.mubr.f32.gmra.mrb[0].mxu0 %v2712
    %v2780 = vpop.f32.mrb[0].mxu0
    %v2781 = vadd.f32 %v2709, %v2780
    %v2782 = vpop.f32.mrb[0].mxu0
    %v2783 = vadd.f32 %v2709, %v2782
    %2784 = vdwg.mxu0
    %2785 = vmatprep.subr.mxu0 %v2701
    %2786 = vmatpush1.msra.mxu0 %v2700
    %2787 = vmatprep.subr.mxu0 0.0
    %2788 = vmatpush1.msra.mxu0 0.0
    %2789 = vmatprep.subr.mxu0 0.0
    %2790 = vmatpush1.msra.mxu0 0.0
    %2791 = vmatprep.subr.mxu0 0.0
    %2792 = vmatpush1.msra.mxu0 0.0
    %2793 = vmatprep.subr.mxu0 0.0
    %2794 = vmatpush1.msra.mxu0 0.0
    %2795 = vmatprep.subr.mxu0 0.0
    %2796 = vmatpush1.msra.mxu0 0.0
    %2797 = vmatprep.subr.mxu0 0.0
    %2798 = vmatpush1.msra.mxu0 0.0
    %2799 = vmatprep.subr.mxu0 0.0
    %2800 = vmatpush1.msra.mxu0 0.0
    %2801 = vmatprep.subr.mxu0 0.0
    %2802 = vmatpush1.msra.mxu0 0.0
    %2803 = vmatprep.subr.mxu0 0.0
    %2804 = vmatpush1.msra.mxu0 0.0
    %2805 = vmatprep.subr.mxu0 0.0
    %2806 = vmatpush1.msra.mxu0 0.0
    %2807 = vmatprep.subr.mxu0 0.0
    %2808 = vmatpush1.msra.mxu0 0.0
    %2809 = vmatprep.subr.mxu0 0.0
    %2810 = vmatpush1.msra.mxu0 0.0
    %2811 = vmatprep.subr.mxu0 0.0
    %2812 = vmatpush1.msra.mxu0 0.0
    %2813 = vmatprep.subr.mxu0 0.0
    %2814 = vmatpush1.msra.mxu0 0.0
    %2815 = vmatprep.subr.mxu0 0.0
    %2816 = vmatpush1.msra.mxu0 0.0
    %2817 = vmatprep.subr.mxu0 0.0
    %2818 = vmatpush1.msra.mxu0 0.0
    %2819 = vmatprep.subr.mxu0 0.0
    %2820 = vmatpush1.msra.mxu0 0.0
    %2821 = vmatprep.subr.mxu0 0.0
    %2822 = vmatpush1.msra.mxu0 0.0
    %2823 = vmatprep.subr.mxu0 0.0
    %2824 = vmatpush1.msra.mxu0 0.0
    %2825 = vmatprep.subr.mxu0 0.0
    %2826 = vmatpush1.msra.mxu0 0.0
    %2827 = vmatprep.subr.mxu0 0.0
    %2828 = vmatpush1.msra.mxu0 0.0
    %2829 = vmatprep.subr.mxu0 0.0
    %2830 = vmatpush1.msra.mxu0 0.0
    %2831 = vmatprep.subr.mxu0 0.0
    %2832 = vmatpush1.msra.mxu0 0.0
    %2833 = vmatprep.subr.mxu0 0.0
    %2834 = vmatpush1.msra.mxu0 0.0
    %2835 = vmatprep.subr.mxu0 0.0
    %2836 = vmatpush1.msra.mxu0 0.0
    %2837 = vmatprep.subr.mxu0 0.0
    %2838 = vmatpush1.msra.mxu0 0.0
    %2839 = vmatprep.subr.mxu0 0.0
    %2840 = vmatpush1.msra.mxu0 0.0
    %2841 = vmatprep.subr.mxu0 0.0
    %2842 = vmatpush1.msra.mxu0 0.0
    %2843 = vmatprep.subr.mxu0 0.0
    %2844 = vmatpush1.msra.mxu0 0.0
    %2845 = vmatprep.subr.mxu0 0.0
    %2846 = vmatpush1.msra.mxu0 0.0
    %2847 = vmatprep.subr.mxu0 0.0
    %2848 = vmatpush1.msra.mxu0 0.0
    %2849 = vmatprep.mubr.f32.mxu0 0.0
    %2850 = vmatmul.mubr.f32.gmra.mrb[0].mxu0 %v2712
    %v2851 = vpop.f32.mrb[0].mxu0
    %v2852 = vadd.f32 %v2709, %v2851
    %v2853 = vpop.f32.mrb[0].mxu0
    %v2854 = vadd.f32 %v2709, %v2853
    %2855 = vdwg.mxu0
    %v2856 = vadd.f32 %v2484, %v2781
    %v2857 = vadd.f32 %v2485, %v2783
    %v2858 = vadd.f32 %v2486, %v2852
    %v2859 = vadd.f32 %v2487, %v2854
    %s2860 = scalar_lea.vmem %s7, 8
    %v2861 = vld [vmem:[%s2860] sm:$0xff]
    %s2862 = scalar_lea.vmem %s8, 8
    %v2863 = vld [vmem:[%s2862] sm:$0xff]
    %2865 = vset.pattern.permute.xlu0 0
    %2866 = vperm.xlu0 %2865, %v2863
    %v2867 = vpop.permute.xlu0 %2866
    %v2870 = vsel %vm121, %v2861, 0
    %2872 = vmatprep.subr.mxu0 %v2857
    %2873 = vmatpush1.msra.mxu0 %v2856
    %2874 = vmatprep.subr.mxu0 0.0
    %2875 = vmatpush1.msra.mxu0 0.0
    %2876 = vmatprep.subr.mxu0 0.0
    %2877 = vmatpush1.msra.mxu0 0.0
    %2878 = vmatprep.subr.mxu0 0.0
    %2879 = vmatpush1.msra.mxu0 0.0
    %2880 = vmatprep.subr.mxu0 0.0
    %2881 = vmatpush1.msra.mxu0 0.0
    %2882 = vmatprep.subr.mxu0 0.0
    %2883 = vmatpush1.msra.mxu0 0.0
    %2884 = vmatprep.subr.mxu0 0.0
    %2885 = vmatpush1.msra.mxu0 0.0
    %2886 = vmatprep.subr.mxu0 0.0
    %2887 = vmatpush1.msra.mxu0 0.0
    %2888 = vmatprep.subr.mxu0 0.0
    %2889 = vmatpush1.msra.mxu0 0.0
    %2890 = vmatprep.subr.mxu0 0.0
    %2891 = vmatpush1.msra.mxu0 0.0
    %2892 = vmatprep.subr.mxu0 0.0
    %2893 = vmatpush1.msra.mxu0 0.0
    %2894 = vmatprep.subr.mxu0 0.0
    %2895 = vmatpush1.msra.mxu0 0.0
    %2896 = vmatprep.subr.mxu0 0.0
    %2897 = vmatpush1.msra.mxu0 0.0
    %2898 = vmatprep.subr.mxu0 0.0
    %2899 = vmatpush1.msra.mxu0 0.0
    %2900 = vmatprep.subr.mxu0 0.0
    %2901 = vmatpush1.msra.mxu0 0.0
    %2902 = vmatprep.subr.mxu0 0.0
    %2903 = vmatpush1.msra.mxu0 0.0
    %2904 = vmatprep.subr.mxu0 0.0
    %2905 = vmatpush1.msra.mxu0 0.0
    %2906 = vmatprep.subr.mxu0 0.0
    %2907 = vmatpush1.msra.mxu0 0.0
    %2908 = vmatprep.subr.mxu0 0.0
    %2909 = vmatpush1.msra.mxu0 0.0
    %2910 = vmatprep.subr.mxu0 0.0
    %2911 = vmatpush1.msra.mxu0 0.0
    %2912 = vmatprep.subr.mxu0 0.0
    %2913 = vmatpush1.msra.mxu0 0.0
    %2914 = vmatprep.subr.mxu0 0.0
    %2915 = vmatpush1.msra.mxu0 0.0
    %2916 = vmatprep.subr.mxu0 0.0
    %2917 = vmatpush1.msra.mxu0 0.0
    %2918 = vmatprep.subr.mxu0 0.0
    %2919 = vmatpush1.msra.mxu0 0.0
    %2920 = vmatprep.subr.mxu0 0.0
    %2921 = vmatpush1.msra.mxu0 0.0
    %2922 = vmatprep.subr.mxu0 0.0
    %2923 = vmatpush1.msra.mxu0 0.0
    %2924 = vmatprep.subr.mxu0 0.0
    %2925 = vmatpush1.msra.mxu0 0.0
    %2926 = vmatprep.subr.mxu0 0.0
    %2927 = vmatpush1.msra.mxu0 0.0
    %2928 = vmatprep.subr.mxu0 0.0
    %2929 = vmatpush1.msra.mxu0 0.0
    %2930 = vmatprep.subr.mxu0 0.0
    %2931 = vmatpush1.msra.mxu0 0.0
    %2932 = vmatprep.subr.mxu0 0.0
    %2933 = vmatpush1.msra.mxu0 0.0
    %2934 = vmatprep.subr.mxu0 0.0
    %2935 = vmatpush1.msra.mxu0 0.0
    %2936 = vmatprep.mubr.f32.mxu0 0.0
    %2937 = vmatmul.mubr.f32.gmra.mrb[0].mxu0 %v2870
    %v2938 = vpop.f32.mrb[0].mxu0
    %v2939 = vadd.f32 %v2867, %v2938
    %v2940 = vpop.f32.mrb[0].mxu0
    %v2941 = vadd.f32 %v2867, %v2940
    %2942 = vdwg.mxu0
    %2943 = vmatprep.subr.mxu0 %v2859
    %2944 = vmatpush1.msra.mxu0 %v2858
    %2945 = vmatprep.subr.mxu0 0.0
    %2946 = vmatpush1.msra.mxu0 0.0
    %2947 = vmatprep.subr.mxu0 0.0
    %2948 = vmatpush1.msra.mxu0 0.0
    %2949 = vmatprep.subr.mxu0 0.0
    %2950 = vmatpush1.msra.mxu0 0.0
    %2951 = vmatprep.subr.mxu0 0.0
    %2952 = vmatpush1.msra.mxu0 0.0
    %2953 = vmatprep.subr.mxu0 0.0
    %2954 = vmatpush1.msra.mxu0 0.0
    %2955 = vmatprep.subr.mxu0 0.0
    %2956 = vmatpush1.msra.mxu0 0.0
    %2957 = vmatprep.subr.mxu0 0.0
    %2958 = vmatpush1.msra.mxu0 0.0
    %2959 = vmatprep.subr.mxu0 0.0
    %2960 = vmatpush1.msra.mxu0 0.0
    %2961 = vmatprep.subr.mxu0 0.0
    %2962 = vmatpush1.msra.mxu0 0.0
    %2963 = vmatprep.subr.mxu0 0.0
    %2964 = vmatpush1.msra.mxu0 0.0
    %2965 = vmatprep.subr.mxu0 0.0
    %2966 = vmatpush1.msra.mxu0 0.0
    %2967 = vmatprep.subr.mxu0 0.0
    %2968 = vmatpush1.msra.mxu0 0.0
    %2969 = vmatprep.subr.mxu0 0.0
    %2970 = vmatpush1.msra.mxu0 0.0
    %2971 = vmatprep.subr.mxu0 0.0
    %2972 = vmatpush1.msra.mxu0 0.0
    %2973 = vmatprep.subr.mxu0 0.0
    %2974 = vmatpush1.msra.mxu0 0.0
    %2975 = vmatprep.subr.mxu0 0.0
    %2976 = vmatpush1.msra.mxu0 0.0
    %2977 = vmatprep.subr.mxu0 0.0
    %2978 = vmatpush1.msra.mxu0 0.0
    %2979 = vmatprep.subr.mxu0 0.0
    %2980 = vmatpush1.msra.mxu0 0.0
    %2981 = vmatprep.subr.mxu0 0.0
    %2982 = vmatpush1.msra.mxu0 0.0
    %2983 = vmatprep.subr.mxu0 0.0
    %2984 = vmatpush1.msra.mxu0 0.0
    %2985 = vmatprep.subr.mxu0 0.0
    %2986 = vmatpush1.msra.mxu0 0.0
    %2987 = vmatprep.subr.mxu0 0.0
    %2988 = vmatpush1.msra.mxu0 0.0
    %2989 = vmatprep.subr.mxu0 0.0
    %2990 = vmatpush1.msra.mxu0 0.0
    %2991 = vmatprep.subr.mxu0 0.0
    %2992 = vmatpush1.msra.mxu0 0.0
    %2993 = vmatprep.subr.mxu0 0.0
    %2994 = vmatpush1.msra.mxu0 0.0
    %2995 = vmatprep.subr.mxu0 0.0
    %2996 = vmatpush1.msra.mxu0 0.0
    %2997 = vmatprep.subr.mxu0 0.0
    %2998 = vmatpush1.msra.mxu0 0.0
    %2999 = vmatprep.subr.mxu0 0.0
    %3000 = vmatpush1.msra.mxu0 0.0
    %3001 = vmatprep.subr.mxu0 0.0
    %3002 = vmatpush1.msra.mxu0 0.0
    %3003 = vmatprep.subr.mxu0 0.0
    %3004 = vmatpush1.msra.mxu0 0.0
    %3005 = vmatprep.subr.mxu0 0.0
    %3006 = vmatpush1.msra.mxu0 0.0
    %3007 = vmatprep.mubr.f32.mxu0 0.0
    %3008 = vmatmul.mubr.f32.gmra.mrb[0].mxu0 %v2870
    %v3009 = vpop.f32.mrb[0].mxu0
    %v3010 = vadd.f32 %v2867, %v3009
    %v3011 = vpop.f32.mrb[0].mxu0
    %v3012 = vadd.f32 %v2867, %v3011
    %3013 = vdwg.mxu0
    %3014 = vst [vmem:[#allocation3 + $0x20] sm:$0xff] %v2939
    %3015 = vst [vmem:[#allocation3 + $0x28] sm:$0xff] %v2941
    %3016 = vst [vmem:[#allocation3 + $0x30] sm:$0xff] %v3010
    %3017 = vst [vmem:[#allocation3 + $0x38] sm:$0xff] %v3012
    %s3018 = scalar_lea.vmem %s1, 16
    %v3019 = vld [vmem:[%s3018] sm:$0xff]
    %s3020 = scalar_lea.vmem %s2, 16
    %v3021 = vld [vmem:[%s3020] sm:$0xff]
    %3023 = vset.pattern.permute.xlu0 0
    %3024 = vperm.xlu0 %3023, %v3021
    %v3025 = vpop.permute.xlu0 %3024
    %v3028 = vsel %vm121, %v3019, 0
    %3030 = vmatprep.subr.mxu0 %v2941
    %3031 = vmatpush1.msra.mxu0 %v2939
    %3032 = vmatprep.subr.mxu0 0.0
    %3033 = vmatpush1.msra.mxu0 0.0
    %3034 = vmatprep.subr.mxu0 0.0
    %3035 = vmatpush1.msra.mxu0 0.0
    %3036 = vmatprep.subr.mxu0 0.0
    %3037 = vmatpush1.msra.mxu0 0.0
    %3038 = vmatprep.subr.mxu0 0.0
    %3039 = vmatpush1.msra.mxu0 0.0
    %3040 = vmatprep.subr.mxu0 0.0
    %3041 = vmatpush1.msra.mxu0 0.0
    %3042 = vmatprep.subr.mxu0 0.0
    %3043 = vmatpush1.msra.mxu0 0.0
    %3044 = vmatprep.subr.mxu0 0.0
    %3045 = vmatpush1.msra.mxu0 0.0
    %3046 = vmatprep.subr.mxu0 0.0
    %3047 = vmatpush1.msra.mxu0 0.0
    %3048 = vmatprep.subr.mxu0 0.0
    %3049 = vmatpush1.msra.mxu0 0.0
    %3050 = vmatprep.subr.mxu0 0.0
    %3051 = vmatpush1.msra.mxu0 0.0
    %3052 = vmatprep.subr.mxu0 0.0
    %3053 = vmatpush1.msra.mxu0 0.0
    %3054 = vmatprep.subr.mxu0 0.0
    %3055 = vmatpush1.msra.mxu0 0.0
    %3056 = vmatprep.subr.mxu0 0.0
    %3057 = vmatpush1.msra.mxu0 0.0
    %3058 = vmatprep.subr.mxu0 0.0
    %3059 = vmatpush1.msra.mxu0 0.0
    %3060 = vmatprep.subr.mxu0 0.0
    %3061 = vmatpush1.msra.mxu0 0.0
    %3062 = vmatprep.subr.mxu0 0.0
    %3063 = vmatpush1.msra.mxu0 0.0
    %3064 = vmatprep.subr.mxu0 0.0
    %3065 = vmatpush1.msra.mxu0 0.0
    %3066 = vmatprep.subr.mxu0 0.0
    %3067 = vmatpush1.msra.mxu0 0.0
    %3068 = vmatprep.subr.mxu0 0.0
    %3069 = vmatpush1.msra.mxu0 0.0
    %3070 = vmatprep.subr.mxu0 0.0
    %3071 = vmatpush1.msra.mxu0 0.0
    %3072 = vmatprep.subr.mxu0 0.0
    %3073 = vmatpush1.msra.mxu0 0.0
    %3074 = vmatprep.subr.mxu0 0.0
    %3075 = vmatpush1.msra.mxu0 0.0
    %3076 = vmatprep.subr.mxu0 0.0
    %3077 = vmatpush1.msra.mxu0 0.0
    %3078 = vmatprep.subr.mxu0 0.0
    %3079 = vmatpush1.msra.mxu0 0.0
    %3080 = vmatprep.subr.mxu0 0.0
    %3081 = vmatpush1.msra.mxu0 0.0
    %3082 = vmatprep.subr.mxu0 0.0
    %3083 = vmatpush1.msra.mxu0 0.0
    %3084 = vmatprep.subr.mxu0 0.0
    %3085 = vmatpush1.msra.mxu0 0.0
    %3086 = vmatprep.subr.mxu0 0.0
    %3087 = vmatpush1.msra.mxu0 0.0
    %3088 = vmatprep.subr.mxu0 0.0
    %3089 = vmatpush1.msra.mxu0 0.0
    %3090 = vmatprep.subr.mxu0 0.0
    %3091 = vmatpush1.msra.mxu0 0.0
    %3092 = vmatprep.subr.mxu0 0.0
    %3093 = vmatpush1.msra.mxu0 0.0
    %3094 = vmatprep.mubr.f32.mxu0 0.0
    %3095 = vmatmul.mubr.f32.gmra.mrb[0].mxu0 %v3028
    %v3096 = vpop.f32.mrb[0].mxu0
    %v3097 = vadd.f32 %v3025, %v3096
    %v3098 = vpop.f32.mrb[0].mxu0
    %v3099 = vadd.f32 %v3025, %v3098
    %3100 = vdwg.mxu0
    %3101 = vmatprep.subr.mxu0 %v3012
    %3102 = vmatpush1.msra.mxu0 %v3010
    %3103 = vmatprep.subr.mxu0 0.0
    %3104 = vmatpush1.msra.mxu0 0.0
    %3105 = vmatprep.subr.mxu0 0.0
    %3106 = vmatpush1.msra.mxu0 0.0
    %3107 = vmatprep.subr.mxu0 0.0
    %3108 = vmatpush1.msra.mxu0 0.0
    %3109 = vmatprep.subr.mxu0 0.0
    %3110 = vmatpush1.msra.mxu0 0.0
    %3111 = vmatprep.subr.mxu0 0.0
    %3112 = vmatpush1.msra.mxu0 0.0
    %3113 = vmatprep.subr.mxu0 0.0
    %3114 = vmatpush1.msra.mxu0 0.0
    %3115 = vmatprep.subr.mxu0 0.0
    %3116 = vmatpush1.msra.mxu0 0.0
    %3117 = vmatprep.subr.mxu0 0.0
    %3118 = vmatpush1.msra.mxu0 0.0
    %3119 = vmatprep.subr.mxu0 0.0
    %3120 = vmatpush1.msra.mxu0 0.0
    %3121 = vmatprep.subr.mxu0 0.0
    %3122 = vmatpush1.msra.mxu0 0.0
    %3123 = vmatprep.subr.mxu0 0.0
    %3124 = vmatpush1.msra.mxu0 0.0
    %3125 = vmatprep.subr.mxu0 0.0
    %3126 = vmatpush1.msra.mxu0 0.0
    %3127 = vmatprep.subr.mxu0 0.0
    %3128 = vmatpush1.msra.mxu0 0.0
    %3129 = vmatprep.subr.mxu0 0.0
    %3130 = vmatpush1.msra.mxu0 0.0
    %3131 = vmatprep.subr.mxu0 0.0
    %3132 = vmatpush1.msra.mxu0 0.0
    %3133 = vmatprep.subr.mxu0 0.0
    %3134 = vmatpush1.msra.mxu0 0.0
    %3135 = vmatprep.subr.mxu0 0.0
    %3136 = vmatpush1.msra.mxu0 0.0
    %3137 = vmatprep.subr.mxu0 0.0
    %3138 = vmatpush1.msra.mxu0 0.0
    %3139 = vmatprep.subr.mxu0 0.0
    %3140 = vmatpush1.msra.mxu0 0.0
    %3141 = vmatprep.subr.mxu0 0.0
    %3142 = vmatpush1.msra.mxu0 0.0
    %3143 = vmatprep.subr.mxu0 0.0
    %3144 = vmatpush1.msra.mxu0 0.0
    %3145 = vmatprep.subr.mxu0 0.0
    %3146 = vmatpush1.msra.mxu0 0.0
    %3147 = vmatprep.subr.mxu0 0.0
    %3148 = vmatpush1.msra.mxu0 0.0
    %3149 = vmatprep.subr.mxu0 0.0
    %3150 = vmatpush1.msra.mxu0 0.0
    %3151 = vmatprep.subr.mxu0 0.0
    %3152 = vmatpush1.msra.mxu0 0.0
    %3153 = vmatprep.subr.mxu0 0.0
    %3154 = vmatpush1.msra.mxu0 0.0
    %3155 = vmatprep.subr.mxu0 0.0
    %3156 = vmatpush1.msra.mxu0 0.0
    %3157 = vmatprep.subr.mxu0 0.0
    %3158 = vmatpush1.msra.mxu0 0.0
    %3159 = vmatprep.subr.mxu0 0.0
    %3160 = vmatpush1.msra.mxu0 0.0
    %3161 = vmatprep.subr.mxu0 0.0
    %3162 = vmatpush1.msra.mxu0 0.0
    %3163 = vmatprep.subr.mxu0 0.0
    %3164 = vmatpush1.msra.mxu0 0.0
    %3165 = vmatprep.mubr.f32.mxu0 0.0
    %3166 = vmatmul.mubr.f32.gmra.mrb[0].mxu0 %v3028
    %v3167 = vpop.f32.mrb[0].mxu0
    %v3168 = vadd.f32 %v3025, %v3167
    %v3169 = vpop.f32.mrb[0].mxu0
    %v3170 = vadd.f32 %v3025, %v3169
    %3171 = vdwg.mxu0
    %3172 = vrot.lane.b32.xlu0 %v3097, 1
    %v3173 = vpop.permute.xlu0 %3172
    %3174 = vrot.lane.b32.xlu0 %v3099, 1
    %v3175 = vpop.permute.xlu0 %3174
    %3176 = vrot.lane.b32.xlu0 %v3168, 1
    %v3177 = vpop.permute.xlu0 %3176
    %3178 = vrot.lane.b32.xlu0 %v3170, 1
    %v3179 = vpop.permute.xlu0 %3178
    %v3180 = vsel %vm275, %v3177, %v3179
    %v3181 = vsel %vm275, %v3175, %v3177
    %v3182 = vsel %vm275, %v3173, %v3175
    %v3183 = vsel %vm275, %v3179, %v3173
    %v3184 = vsel %vm284, %v3183, 0.0
    %v3185 = vsel %vm285, %v3182, 0.0
    %v3186 = vsel %vm286, %v3181, 0.0
    %v3187 = vsel %vm287, %v3180, 0.0
    %3188 = vrot.lane.b32.xlu0 %v3097, 127
    %v3189 = vpop.permute.xlu0 %3188
    %3190 = vrot.lane.b32.xlu0 %v3099, 127
    %v3191 = vpop.permute.xlu0 %3190
    %3192 = vrot.lane.b32.xlu0 %v3168, 127
    %v3193 = vpop.permute.xlu0 %3192
    %3194 = vrot.lane.b32.xlu0 %v3170, 127
    %v3195 = vpop.permute.xlu0 %3194
    %v3196 = vsel %vm300, %v3193, %v3195
    %v3197 = vsel %vm300, %v3191, %v3193
    %v3198 = vsel %vm300, %v3189, %v3191
    %v3199 = vsel %vm300, %v3195, %v3189
    %v3200 = vsel %vm309, %v3198, 0.0
    %v3201 = vsel %vm310, %v3197, 0.0
    %v3202 = vsel %vm311, %v3196, 0.0
    %v3203 = vsel %vm312, %v3199, 0.0
    %3204 = vst [vmem:[#allocation2] sm:$0xff] %v3184
    %3205 = vst [vmem:[#allocation2 + $0x8] sm:$0xff] %v3185
    %3206 = vst [vmem:[#allocation2 + $0x10] sm:$0xff] %v3186
    %3207 = vst [vmem:[#allocation2 + $0x18] sm:$0xff] %v3187
    %3208 = vst [vmem:[#allocation2 + $0x20] sm:$0xff] %v3097
    %3209 = vst [vmem:[#allocation2 + $0x28] sm:$0xff] %v3099
    %3210 = vst [vmem:[#allocation2 + $0x30] sm:$0xff] %v3168
    %3211 = vst [vmem:[#allocation2 + $0x38] sm:$0xff] %v3170
    %3212 = vst [vmem:[#allocation2 + $0x40] sm:$0xff] %v3200
    %3213 = vst [vmem:[#allocation2 + $0x48] sm:$0xff] %v3201
    %3214 = vst [vmem:[#allocation2 + $0x50] sm:$0xff] %v3202
    %3215 = vst [vmem:[#allocation2 + $0x58] sm:$0xff] %v3203
    %s3216 = scalar_lea.vmem %s3, 48
    %v3217 = vld [vmem:[%s3216] sm:$0xff]
    %v3218 = vld [vmem:[#allocation2] sm:$0xff]
    %v3219 = vld [vmem:[#allocation2 + $0x8] sm:$0xff]
    %v3220 = vld [vmem:[#allocation2 + $0x10] sm:$0xff]
    %v3221 = vld [vmem:[#allocation2 + $0x18] sm:$0xff]
    %v3222 = vld [vmem:[#allocation2 + $0x20] sm:$0xff]
    %v3223 = vld [vmem:[#allocation2 + $0x28] sm:$0xff]
    %v3224 = vld [vmem:[#allocation2 + $0x30] sm:$0xff]
    %v3225 = vld [vmem:[#allocation2 + $0x38] sm:$0xff]
    %v3226 = vld [vmem:[#allocation2 + $0x40] sm:$0xff]
    %v3227 = vld [vmem:[#allocation2 + $0x48] sm:$0xff]
    %v3228 = vld [vmem:[#allocation2 + $0x50] sm:$0xff]
    %v3229 = vld [vmem:[#allocation2 + $0x58] sm:$0xff]
    %s3230 = scalar_lea.vmem %s4, 48
    %v3231 = vld [vmem:[%s3230] sm:$0xff]
    %3233 = vset.pattern.permute.xlu0 0
    %3234 = vperm.xlu0 %3233, %v3231
    %v3235 = vpop.permute.xlu0 %3234
    %v3238 = vsel %vm348, %v3217, 0
    %3240 = vmatprep.subr.mxu0 %v3219
    %3241 = vmatpush1.msra.mxu0 %v3218
    %3242 = vmatprep.subr.mxu0 %v3223
    %3243 = vmatpush1.msra.mxu0 %v3222
    %3244 = vmatprep.subr.mxu0 %v3227
    %3245 = vmatpush1.msra.mxu0 %v3226
    %3246 = vmatprep.subr.mxu0 0.0
    %3247 = vmatpush1.msra.mxu0 0.0
    %3248 = vmatprep.subr.mxu0 0.0
    %3249 = vmatpush1.msra.mxu0 0.0
    %3250 = vmatprep.subr.mxu0 0.0
    %3251 = vmatpush1.msra.mxu0 0.0
    %3252 = vmatprep.subr.mxu0 0.0
    %3253 = vmatpush1.msra.mxu0 0.0
    %3254 = vmatprep.subr.mxu0 0.0
    %3255 = vmatpush1.msra.mxu0 0.0
    %3256 = vmatprep.subr.mxu0 0.0
    %3257 = vmatpush1.msra.mxu0 0.0
    %3258 = vmatprep.subr.mxu0 0.0
    %3259 = vmatpush1.msra.mxu0 0.0
    %3260 = vmatprep.subr.mxu0 0.0
    %3261 = vmatpush1.msra.mxu0 0.0
    %3262 = vmatprep.subr.mxu0 0.0
    %3263 = vmatpush1.msra.mxu0 0.0
    %3264 = vmatprep.subr.mxu0 0.0
    %3265 = vmatpush1.msra.mxu0 0.0
    %3266 = vmatprep.subr.mxu0 0.0
    %3267 = vmatpush1.msra.mxu0 0.0
    %3268 = vmatprep.subr.mxu0 0.0
    %3269 = vmatpush1.msra.mxu0 0.0
    %3270 = vmatprep.subr.mxu0 0.0
    %3271 = vmatpush1.msra.mxu0 0.0
    %3272 = vmatprep.subr.mxu0 0.0
    %3273 = vmatpush1.msra.mxu0 0.0
    %3274 = vmatprep.subr.mxu0 0.0
    %3275 = vmatpush1.msra.mxu0 0.0
    %3276 = vmatprep.subr.mxu0 0.0
    %3277 = vmatpush1.msra.mxu0 0.0
    %3278 = vmatprep.subr.mxu0 0.0
    %3279 = vmatpush1.msra.mxu0 0.0
    %3280 = vmatprep.subr.mxu0 0.0
    %3281 = vmatpush1.msra.mxu0 0.0
    %3282 = vmatprep.subr.mxu0 0.0
    %3283 = vmatpush1.msra.mxu0 0.0
    %3284 = vmatprep.subr.mxu0 0.0
    %3285 = vmatpush1.msra.mxu0 0.0
    %3286 = vmatprep.subr.mxu0 0.0
    %3287 = vmatpush1.msra.mxu0 0.0
    %3288 = vmatprep.subr.mxu0 0.0
    %3289 = vmatpush1.msra.mxu0 0.0
    %3290 = vmatprep.subr.mxu0 0.0
    %3291 = vmatpush1.msra.mxu0 0.0
    %3292 = vmatprep.subr.mxu0 0.0
    %3293 = vmatpush1.msra.mxu0 0.0
    %3294 = vmatprep.subr.mxu0 0.0
    %3295 = vmatpush1.msra.mxu0 0.0
    %3296 = vmatprep.subr.mxu0 0.0
    %3297 = vmatpush1.msra.mxu0 0.0
    %3298 = vmatprep.subr.mxu0 0.0
    %3299 = vmatpush1.msra.mxu0 0.0
    %3300 = vmatprep.subr.mxu0 0.0
    %3301 = vmatpush1.msra.mxu0 0.0
    %3302 = vmatprep.subr.mxu0 0.0
    %3303 = vmatpush1.msra.mxu0 0.0
    %3304 = vmatprep.mubr.f32.mxu0 0.0
    %3305 = vmatmul.mubr.f32.gmra.mrb[0].mxu0 %v3238
    %v3306 = vpop.f32.mrb[0].mxu0
    %v3307 = vadd.f32 %v3235, %v3306
    %v3308 = vpop.f32.mrb[0].mxu0
    %v3309 = vadd.f32 %v3235, %v3308
    %3310 = vdwg.mxu0
    %3311 = vmatprep.subr.mxu0 %v3221
    %3312 = vmatpush1.msra.mxu0 %v3220
    %3313 = vmatprep.subr.mxu0 %v3225
    %3314 = vmatpush1.msra.mxu0 %v3224
    %3315 = vmatprep.subr.mxu0 %v3229
    %3316 = vmatpush1.msra.mxu0 %v3228
    %3317 = vmatprep.subr.mxu0 0.0
    %3318 = vmatpush1.msra.mxu0 0.0
    %3319 = vmatprep.subr.mxu0 0.0
    %3320 = vmatpush1.msra.mxu0 0.0
    %3321 = vmatprep.subr.mxu0 0.0
    %3322 = vmatpush1.msra.mxu0 0.0
    %3323 = vmatprep.subr.mxu0 0.0
    %3324 = vmatpush1.msra.mxu0 0.0
    %3325 = vmatprep.subr.mxu0 0.0
    %3326 = vmatpush1.msra.mxu0 0.0
    %3327 = vmatprep.subr.mxu0 0.0
    %3328 = vmatpush1.msra.mxu0 0.0
    %3329 = vmatprep.subr.mxu0 0.0
    %3330 = vmatpush1.msra.mxu0 0.0
    %3331 = vmatprep.subr.mxu0 0.0
    %3332 = vmatpush1.msra.mxu0 0.0
    %3333 = vmatprep.subr.mxu0 0.0
    %3334 = vmatpush1.msra.mxu0 0.0
    %3335 = vmatprep.subr.mxu0 0.0
    %3336 = vmatpush1.msra.mxu0 0.0
    %3337 = vmatprep.subr.mxu0 0.0
    %3338 = vmatpush1.msra.mxu0 0.0
    %3339 = vmatprep.subr.mxu0 0.0
    %3340 = vmatpush1.msra.mxu0 0.0
    %3341 = vmatprep.subr.mxu0 0.0
    %3342 = vmatpush1.msra.mxu0 0.0
    %3343 = vmatprep.subr.mxu0 0.0
    %3344 = vmatpush1.msra.mxu0 0.0
    %3345 = vmatprep.subr.mxu0 0.0
    %3346 = vmatpush1.msra.mxu0 0.0
    %3347 = vmatprep.subr.mxu0 0.0
    %3348 = vmatpush1.msra.mxu0 0.0
    %3349 = vmatprep.subr.mxu0 0.0
    %3350 = vmatpush1.msra.mxu0 0.0
    %3351 = vmatprep.subr.mxu0 0.0
    %3352 = vmatpush1.msra.mxu0 0.0
    %3353 = vmatprep.subr.mxu0 0.0
    %3354 = vmatpush1.msra.mxu0 0.0
    %3355 = vmatprep.subr.mxu0 0.0
    %3356 = vmatpush1.msra.mxu0 0.0
    %3357 = vmatprep.subr.mxu0 0.0
    %3358 = vmatpush1.msra.mxu0 0.0
    %3359 = vmatprep.subr.mxu0 0.0
    %3360 = vmatpush1.msra.mxu0 0.0
    %3361 = vmatprep.subr.mxu0 0.0
    %3362 = vmatpush1.msra.mxu0 0.0
    %3363 = vmatprep.subr.mxu0 0.0
    %3364 = vmatpush1.msra.mxu0 0.0
    %3365 = vmatprep.subr.mxu0 0.0
    %3366 = vmatpush1.msra.mxu0 0.0
    %3367 = vmatprep.subr.mxu0 0.0
    %3368 = vmatpush1.msra.mxu0 0.0
    %3369 = vmatprep.subr.mxu0 0.0
    %3370 = vmatpush1.msra.mxu0 0.0
    %3371 = vmatprep.subr.mxu0 0.0
    %3372 = vmatpush1.msra.mxu0 0.0
    %3373 = vmatprep.subr.mxu0 0.0
    %3374 = vmatpush1.msra.mxu0 0.0
    %3375 = vmatprep.mubr.f32.mxu0 0.0
    %3376 = vmatmul.mubr.f32.gmra.mrb[0].mxu0 %v3238
    %v3377 = vpop.f32.mrb[0].mxu0
    %v3378 = vadd.f32 %v3235, %v3377
    %v3379 = vpop.f32.mrb[0].mxu0
    %v3380 = vadd.f32 %v3235, %v3379
    %3381 = vdwg.mxu0
    %v3382 = vmax.f32 %v3307, 0.0
    %v3383 = vmax.f32 %v3309, 0.0
    %v3384 = vmax.f32 %v3378, 0.0
    %v3385 = vmax.f32 %v3380, 0.0
    %s3386 = scalar_lea.vmem %s5, 48
    %v3387 = vld [vmem:[%s3386] sm:$0xff]
    %s3388 = scalar_lea.vmem %s6, 48
    %v3389 = vld [vmem:[%s3388] sm:$0xff]
    %3391 = vset.pattern.permute.xlu0 0
    %3392 = vperm.xlu0 %3391, %v3389
    %v3393 = vpop.permute.xlu0 %3392
    %v3396 = vsel %vm121, %v3387, 0
    %3398 = vmatprep.subr.mxu0 %v3383
    %3399 = vmatpush1.msra.mxu0 %v3382
    %3400 = vmatprep.subr.mxu0 0.0
    %3401 = vmatpush1.msra.mxu0 0.0
    %3402 = vmatprep.subr.mxu0 0.0
    %3403 = vmatpush1.msra.mxu0 0.0
    %3404 = vmatprep.subr.mxu0 0.0
    %3405 = vmatpush1.msra.mxu0 0.0
    %3406 = vmatprep.subr.mxu0 0.0
    %3407 = vmatpush1.msra.mxu0 0.0
    %3408 = vmatprep.subr.mxu0 0.0
    %3409 = vmatpush1.msra.mxu0 0.0
    %3410 = vmatprep.subr.mxu0 0.0
    %3411 = vmatpush1.msra.mxu0 0.0
    %3412 = vmatprep.subr.mxu0 0.0
    %3413 = vmatpush1.msra.mxu0 0.0
    %3414 = vmatprep.subr.mxu0 0.0
    %3415 = vmatpush1.msra.mxu0 0.0
    %3416 = vmatprep.subr.mxu0 0.0
    %3417 = vmatpush1.msra.mxu0 0.0
    %3418 = vmatprep.subr.mxu0 0.0
    %3419 = vmatpush1.msra.mxu0 0.0
    %3420 = vmatprep.subr.mxu0 0.0
    %3421 = vmatpush1.msra.mxu0 0.0
    %3422 = vmatprep.subr.mxu0 0.0
    %3423 = vmatpush1.msra.mxu0 0.0
    %3424 = vmatprep.subr.mxu0 0.0
    %3425 = vmatpush1.msra.mxu0 0.0
    %3426 = vmatprep.subr.mxu0 0.0
    %3427 = vmatpush1.msra.mxu0 0.0
    %3428 = vmatprep.subr.mxu0 0.0
    %3429 = vmatpush1.msra.mxu0 0.0
    %3430 = vmatprep.subr.mxu0 0.0
    %3431 = vmatpush1.msra.mxu0 0.0
    %3432 = vmatprep.subr.mxu0 0.0
    %3433 = vmatpush1.msra.mxu0 0.0
    %3434 = vmatprep.subr.mxu0 0.0
    %3435 = vmatpush1.msra.mxu0 0.0
    %3436 = vmatprep.subr.mxu0 0.0
    %3437 = vmatpush1.msra.mxu0 0.0
    %3438 = vmatprep.subr.mxu0 0.0
    %3439 = vmatpush1.msra.mxu0 0.0
    %3440 = vmatprep.subr.mxu0 0.0
    %3441 = vmatpush1.msra.mxu0 0.0
    %3442 = vmatprep.subr.mxu0 0.0
    %3443 = vmatpush1.msra.mxu0 0.0
    %3444 = vmatprep.subr.mxu0 0.0
    %3445 = vmatpush1.msra.mxu0 0.0
    %3446 = vmatprep.subr.mxu0 0.0
    %3447 = vmatpush1.msra.mxu0 0.0
    %3448 = vmatprep.subr.mxu0 0.0
    %3449 = vmatpush1.msra.mxu0 0.0
    %3450 = vmatprep.subr.mxu0 0.0
    %3451 = vmatpush1.msra.mxu0 0.0
    %3452 = vmatprep.subr.mxu0 0.0
    %3453 = vmatpush1.msra.mxu0 0.0
    %3454 = vmatprep.subr.mxu0 0.0
    %3455 = vmatpush1.msra.mxu0 0.0
    %3456 = vmatprep.subr.mxu0 0.0
    %3457 = vmatpush1.msra.mxu0 0.0
    %3458 = vmatprep.subr.mxu0 0.0
    %3459 = vmatpush1.msra.mxu0 0.0
    %3460 = vmatprep.subr.mxu0 0.0
    %3461 = vmatpush1.msra.mxu0 0.0
    %3462 = vmatprep.mubr.f32.mxu0 0.0
    %3463 = vmatmul.mubr.f32.gmra.mrb[0].mxu0 %v3396
    %v3464 = vpop.f32.mrb[0].mxu0
    %v3465 = vadd.f32 %v3393, %v3464
    %v3466 = vpop.f32.mrb[0].mxu0
    %v3467 = vadd.f32 %v3393, %v3466
    %3468 = vdwg.mxu0
    %3469 = vmatprep.subr.mxu0 %v3385
    %3470 = vmatpush1.msra.mxu0 %v3384
    %3471 = vmatprep.subr.mxu0 0.0
    %3472 = vmatpush1.msra.mxu0 0.0
    %3473 = vmatprep.subr.mxu0 0.0
    %3474 = vmatpush1.msra.mxu0 0.0
    %3475 = vmatprep.subr.mxu0 0.0
    %3476 = vmatpush1.msra.mxu0 0.0
    %3477 = vmatprep.subr.mxu0 0.0
    %3478 = vmatpush1.msra.mxu0 0.0
    %3479 = vmatprep.subr.mxu0 0.0
    %3480 = vmatpush1.msra.mxu0 0.0
    %3481 = vmatprep.subr.mxu0 0.0
    %3482 = vmatpush1.msra.mxu0 0.0
    %3483 = vmatprep.subr.mxu0 0.0
    %3484 = vmatpush1.msra.mxu0 0.0
    %3485 = vmatprep.subr.mxu0 0.0
    %3486 = vmatpush1.msra.mxu0 0.0
    %3487 = vmatprep.subr.mxu0 0.0
    %3488 = vmatpush1.msra.mxu0 0.0
    %3489 = vmatprep.subr.mxu0 0.0
    %3490 = vmatpush1.msra.mxu0 0.0
    %3491 = vmatprep.subr.mxu0 0.0
    %3492 = vmatpush1.msra.mxu0 0.0
    %3493 = vmatprep.subr.mxu0 0.0
    %3494 = vmatpush1.msra.mxu0 0.0
    %3495 = vmatprep.subr.mxu0 0.0
    %3496 = vmatpush1.msra.mxu0 0.0
    %3497 = vmatprep.subr.mxu0 0.0
    %3498 = vmatpush1.msra.mxu0 0.0
    %3499 = vmatprep.subr.mxu0 0.0
    %3500 = vmatpush1.msra.mxu0 0.0
    %3501 = vmatprep.subr.mxu0 0.0
    %3502 = vmatpush1.msra.mxu0 0.0
    %3503 = vmatprep.subr.mxu0 0.0
    %3504 = vmatpush1.msra.mxu0 0.0
    %3505 = vmatprep.subr.mxu0 0.0
    %3506 = vmatpush1.msra.mxu0 0.0
    %3507 = vmatprep.subr.mxu0 0.0
    %3508 = vmatpush1.msra.mxu0 0.0
    %3509 = vmatprep.subr.mxu0 0.0
    %3510 = vmatpush1.msra.mxu0 0.0
    %3511 = vmatprep.subr.mxu0 0.0
    %3512 = vmatpush1.msra.mxu0 0.0
    %3513 = vmatprep.subr.mxu0 0.0
    %3514 = vmatpush1.msra.mxu0 0.0
    %3515 = vmatprep.subr.mxu0 0.0
    %3516 = vmatpush1.msra.mxu0 0.0
    %3517 = vmatprep.subr.mxu0 0.0
    %3518 = vmatpush1.msra.mxu0 0.0
    %3519 = vmatprep.subr.mxu0 0.0
    %3520 = vmatpush1.msra.mxu0 0.0
    %3521 = vmatprep.subr.mxu0 0.0
    %3522 = vmatpush1.msra.mxu0 0.0
    %3523 = vmatprep.subr.mxu0 0.0
    %3524 = vmatpush1.msra.mxu0 0.0
    %3525 = vmatprep.subr.mxu0 0.0
    %3526 = vmatpush1.msra.mxu0 0.0
    %3527 = vmatprep.subr.mxu0 0.0
    %3528 = vmatpush1.msra.mxu0 0.0
    %3529 = vmatprep.subr.mxu0 0.0
    %3530 = vmatpush1.msra.mxu0 0.0
    %3531 = vmatprep.subr.mxu0 0.0
    %3532 = vmatpush1.msra.mxu0 0.0
    %3533 = vmatprep.mubr.f32.mxu0 0.0
    %3534 = vmatmul.mubr.f32.gmra.mrb[0].mxu0 %v3396
    %v3535 = vpop.f32.mrb[0].mxu0
    %v3536 = vadd.f32 %v3393, %v3535
    %v3537 = vpop.f32.mrb[0].mxu0
    %v3538 = vadd.f32 %v3393, %v3537
    %3539 = vdwg.mxu0
    %v3540 = vadd.f32 %v3097, %v3465
    %v3541 = vadd.f32 %v3099, %v3467
    %v3542 = vadd.f32 %v3168, %v3536
    %v3543 = vadd.f32 %v3170, %v3538
    %3544 = vrot.lane.b32.xlu0 %v3540, 2
    %v3545 = vpop.permute.xlu0 %3544
    %3546 = vrot.lane.b32.xlu0 %v3541, 2
    %v3547 = vpop.permute.xlu0 %3546
    %3548 = vrot.lane.b32.xlu0 %v3542, 2
    %v3549 = vpop.permute.xlu0 %3548
    %3550 = vrot.lane.b32.xlu0 %v3543, 2
    %v3551 = vpop.permute.xlu0 %3550
    %v3552 = vsel %vm662, %v3549, %v3551
    %v3553 = vsel %vm662, %v3547, %v3549
    %v3554 = vsel %vm662, %v3545, %v3547
    %v3555 = vsel %vm662, %v3551, %v3545
    %v3556 = vsel %vm671, %v3555, 0.0
    %v3557 = vsel %vm672, %v3554, 0.0
    %v3558 = vsel %vm673, %v3553, 0.0
    %v3559 = vsel %vm674, %v3552, 0.0
    %3560 = vrot.lane.b32.xlu0 %v3540, 126
    %v3561 = vpop.permute.xlu0 %3560
    %3562 = vrot.lane.b32.xlu0 %v3541, 126
    %v3563 = vpop.permute.xlu0 %3562
    %3564 = vrot.lane.b32.xlu0 %v3542, 126
    %v3565 = vpop.permute.xlu0 %3564
    %3566 = vrot.lane.b32.xlu0 %v3543, 126
    %v3567 = vpop.permute.xlu0 %3566
    %v3568 = vsel %vm687, %v3565, %v3567
    %v3569 = vsel %vm687, %v3563, %v3565
    %v3570 = vsel %vm687, %v3561, %v3563
    %v3571 = vsel %vm687, %v3567, %v3561
    %v3572 = vsel %vm696, %v3570, 0.0
    %v3573 = vsel %vm697, %v3569, 0.0
    %v3574 = vsel %vm698, %v3568, 0.0
    %v3575 = vsel %vm699, %v3571, 0.0
    %3576 = vst [vmem:[#allocation2] sm:$0xff] %v3556
    %3577 = vst [vmem:[#allocation2 + $0x8] sm:$0xff] %v3557
    %3578 = vst [vmem:[#allocation2 + $0x10] sm:$0xff] %v3558
    %3579 = vst [vmem:[#allocation2 + $0x18] sm:$0xff] %v3559
    %3580 = vst [vmem:[#allocation2 + $0x20] sm:$0xff] %v3540
    %3581 = vst [vmem:[#allocation2 + $0x28] sm:$0xff] %v3541
    %3582 = vst [vmem:[#allocation2 + $0x30] sm:$0xff] %v3542
    %3583 = vst [vmem:[#allocation2 + $0x38] sm:$0xff] %v3543
    %3584 = vst [vmem:[#allocation2 + $0x40] sm:$0xff] %v3572
    %3585 = vst [vmem:[#allocation2 + $0x48] sm:$0xff] %v3573
    %3586 = vst [vmem:[#allocation2 + $0x50] sm:$0xff] %v3574
    %3587 = vst [vmem:[#allocation2 + $0x58] sm:$0xff] %v3575
    %s3588 = scalar_lea.vmem %s3, 56
    %v3589 = vld [vmem:[%s3588] sm:$0xff]
    %v3590 = vld [vmem:[#allocation2] sm:$0xff]
    %v3591 = vld [vmem:[#allocation2 + $0x8] sm:$0xff]
    %v3592 = vld [vmem:[#allocation2 + $0x10] sm:$0xff]
    %v3593 = vld [vmem:[#allocation2 + $0x18] sm:$0xff]
    %v3594 = vld [vmem:[#allocation2 + $0x20] sm:$0xff]
    %v3595 = vld [vmem:[#allocation2 + $0x28] sm:$0xff]
    %v3596 = vld [vmem:[#allocation2 + $0x30] sm:$0xff]
    %v3597 = vld [vmem:[#allocation2 + $0x38] sm:$0xff]
    %v3598 = vld [vmem:[#allocation2 + $0x40] sm:$0xff]
    %v3599 = vld [vmem:[#allocation2 + $0x48] sm:$0xff]
    %v3600 = vld [vmem:[#allocation2 + $0x50] sm:$0xff]
    %v3601 = vld [vmem:[#allocation2 + $0x58] sm:$0xff]
    %s3602 = scalar_lea.vmem %s4, 56
    %v3603 = vld [vmem:[%s3602] sm:$0xff]
    %3605 = vset.pattern.permute.xlu0 0
    %3606 = vperm.xlu0 %3605, %v3603
    %v3607 = vpop.permute.xlu0 %3606
    %v3610 = vsel %vm348, %v3589, 0
    %3612 = vmatprep.subr.mxu0 %v3591
    %3613 = vmatpush1.msra.mxu0 %v3590
    %3614 = vmatprep.subr.mxu0 %v3595
    %3615 = vmatpush1.msra.mxu0 %v3594
    %3616 = vmatprep.subr.mxu0 %v3599
    %3617 = vmatpush1.msra.mxu0 %v3598
    %3618 = vmatprep.subr.mxu0 0.0
    %3619 = vmatpush1.msra.mxu0 0.0
    %3620 = vmatprep.subr.mxu0 0.0
    %3621 = vmatpush1.msra.mxu0 0.0
    %3622 = vmatprep.subr.mxu0 0.0
    %3623 = vmatpush1.msra.mxu0 0.0
    %3624 = vmatprep.subr.mxu0 0.0
    %3625 = vmatpush1.msra.mxu0 0.0
    %3626 = vmatprep.subr.mxu0 0.0
    %3627 = vmatpush1.msra.mxu0 0.0
    %3628 = vmatprep.subr.mxu0 0.0
    %3629 = vmatpush1.msra.mxu0 0.0
    %3630 = vmatprep.subr.mxu0 0.0
    %3631 = vmatpush1.msra.mxu0 0.0
    %3632 = vmatprep.subr.mxu0 0.0
    %3633 = vmatpush1.msra.mxu0 0.0
    %3634 = vmatprep.subr.mxu0 0.0
    %3635 = vmatpush1.msra.mxu0 0.0
    %3636 = vmatprep.subr.mxu0 0.0
    %3637 = vmatpush1.msra.mxu0 0.0
    %3638 = vmatprep.subr.mxu0 0.0
    %3639 = vmatpush1.msra.mxu0 0.0
    %3640 = vmatprep.subr.mxu0 0.0
    %3641 = vmatpush1.msra.mxu0 0.0
    %3642 = vmatprep.subr.mxu0 0.0
    %3643 = vmatpush1.msra.mxu0 0.0
    %3644 = vmatprep.subr.mxu0 0.0
    %3645 = vmatpush1.msra.mxu0 0.0
    %3646 = vmatprep.subr.mxu0 0.0
    %3647 = vmatpush1.msra.mxu0 0.0
    %3648 = vmatprep.subr.mxu0 0.0
    %3649 = vmatpush1.msra.mxu0 0.0
    %3650 = vmatprep.subr.mxu0 0.0
    %3651 = vmatpush1.msra.mxu0 0.0
    %3652 = vmatprep.subr.mxu0 0.0
    %3653 = vmatpush1.msra.mxu0 0.0
    %3654 = vmatprep.subr.mxu0 0.0
    %3655 = vmatpush1.msra.mxu0 0.0
    %3656 = vmatprep.subr.mxu0 0.0
    %3657 = vmatpush1.msra.mxu0 0.0
    %3658 = vmatprep.subr.mxu0 0.0
    %3659 = vmatpush1.msra.mxu0 0.0
    %3660 = vmatprep.subr.mxu0 0.0
    %3661 = vmatpush1.msra.mxu0 0.0
    %3662 = vmatprep.subr.mxu0 0.0
    %3663 = vmatpush1.msra.mxu0 0.0
    %3664 = vmatprep.subr.mxu0 0.0
    %3665 = vmatpush1.msra.mxu0 0.0
    %3666 = vmatprep.subr.mxu0 0.0
    %3667 = vmatpush1.msra.mxu0 0.0
    %3668 = vmatprep.subr.mxu0 0.0
    %3669 = vmatpush1.msra.mxu0 0.0
    %3670 = vmatprep.subr.mxu0 0.0
    %3671 = vmatpush1.msra.mxu0 0.0
    %3672 = vmatprep.subr.mxu0 0.0
    %3673 = vmatpush1.msra.mxu0 0.0
    %3674 = vmatprep.subr.mxu0 0.0
    %3675 = vmatpush1.msra.mxu0 0.0
    %3676 = vmatprep.mubr.f32.mxu0 0.0
    %3677 = vmatmul.mubr.f32.gmra.mrb[0].mxu0 %v3610
    %v3678 = vpop.f32.mrb[0].mxu0
    %v3679 = vadd.f32 %v3607, %v3678
    %v3680 = vpop.f32.mrb[0].mxu0
    %v3681 = vadd.f32 %v3607, %v3680
    %3682 = vdwg.mxu0
    %3683 = vmatprep.subr.mxu0 %v3593
    %3684 = vmatpush1.msra.mxu0 %v3592
    %3685 = vmatprep.subr.mxu0 %v3597
    %3686 = vmatpush1.msra.mxu0 %v3596
    %3687 = vmatprep.subr.mxu0 %v3601
    %3688 = vmatpush1.msra.mxu0 %v3600
    %3689 = vmatprep.subr.mxu0 0.0
    %3690 = vmatpush1.msra.mxu0 0.0
    %3691 = vmatprep.subr.mxu0 0.0
    %3692 = vmatpush1.msra.mxu0 0.0
    %3693 = vmatprep.subr.mxu0 0.0
    %3694 = vmatpush1.msra.mxu0 0.0
    %3695 = vmatprep.subr.mxu0 0.0
    %3696 = vmatpush1.msra.mxu0 0.0
    %3697 = vmatprep.subr.mxu0 0.0
    %3698 = vmatpush1.msra.mxu0 0.0
    %3699 = vmatprep.subr.mxu0 0.0
    %3700 = vmatpush1.msra.mxu0 0.0
    %3701 = vmatprep.subr.mxu0 0.0
    %3702 = vmatpush1.msra.mxu0 0.0
    %3703 = vmatprep.subr.mxu0 0.0
    %3704 = vmatpush1.msra.mxu0 0.0
    %3705 = vmatprep.subr.mxu0 0.0
    %3706 = vmatpush1.msra.mxu0 0.0
    %3707 = vmatprep.subr.mxu0 0.0
    %3708 = vmatpush1.msra.mxu0 0.0
    %3709 = vmatprep.subr.mxu0 0.0
    %3710 = vmatpush1.msra.mxu0 0.0
    %3711 = vmatprep.subr.mxu0 0.0
    %3712 = vmatpush1.msra.mxu0 0.0
    %3713 = vmatprep.subr.mxu0 0.0
    %3714 = vmatpush1.msra.mxu0 0.0
    %3715 = vmatprep.subr.mxu0 0.0
    %3716 = vmatpush1.msra.mxu0 0.0
    %3717 = vmatprep.subr.mxu0 0.0
    %3718 = vmatpush1.msra.mxu0 0.0
    %3719 = vmatprep.subr.mxu0 0.0
    %3720 = vmatpush1.msra.mxu0 0.0
    %3721 = vmatprep.subr.mxu0 0.0
    %3722 = vmatpush1.msra.mxu0 0.0
    %3723 = vmatprep.subr.mxu0 0.0
    %3724 = vmatpush1.msra.mxu0 0.0
    %3725 = vmatprep.subr.mxu0 0.0
    %3726 = vmatpush1.msra.mxu0 0.0
    %3727 = vmatprep.subr.mxu0 0.0
    %3728 = vmatpush1.msra.mxu0 0.0
    %3729 = vmatprep.subr.mxu0 0.0
    %3730 = vmatpush1.msra.mxu0 0.0
    %3731 = vmatprep.subr.mxu0 0.0
    %3732 = vmatpush1.msra.mxu0 0.0
    %3733 = vmatprep.subr.mxu0 0.0
    %3734 = vmatpush1.msra.mxu0 0.0
    %3735 = vmatprep.subr.mxu0 0.0
    %3736 = vmatpush1.msra.mxu0 0.0
    %3737 = vmatprep.subr.mxu0 0.0
    %3738 = vmatpush1.msra.mxu0 0.0
    %3739 = vmatprep.subr.mxu0 0.0
    %3740 = vmatpush1.msra.mxu0 0.0
    %3741 = vmatprep.subr.mxu0 0.0
    %3742 = vmatpush1.msra.mxu0 0.0
    %3743 = vmatprep.subr.mxu0 0.0
    %3744 = vmatpush1.msra.mxu0 0.0
    %3745 = vmatprep.subr.mxu0 0.0
    %3746 = vmatpush1.msra.mxu0 0.0
    %3747 = vmatprep.mubr.f32.mxu0 0.0
    %3748 = vmatmul.mubr.f32.gmra.mrb[0].mxu0 %v3610
    %v3749 = vpop.f32.mrb[0].mxu0
    %v3750 = vadd.f32 %v3607, %v3749
    %v3751 = vpop.f32.mrb[0].mxu0
    %v3752 = vadd.f32 %v3607, %v3751
    %3753 = vdwg.mxu0
    %v3754 = vmax.f32 %v3679, 0.0
    %v3755 = vmax.f32 %v3681, 0.0
    %v3756 = vmax.f32 %v3750, 0.0
    %v3757 = vmax.f32 %v3752, 0.0
    %s3758 = scalar_lea.vmem %s5, 56
    %v3759 = vld [vmem:[%s3758] sm:$0xff]
    %s3760 = scalar_lea.vmem %s6, 56
    %v3761 = vld [vmem:[%s3760] sm:$0xff]
    %3763 = vset.pattern.permute.xlu0 0
    %3764 = vperm.xlu0 %3763, %v3761
    %v3765 = vpop.permute.xlu0 %3764
    %v3768 = vsel %vm121, %v3759, 0
    %3770 = vmatprep.subr.mxu0 %v3755
    %3771 = vmatpush1.msra.mxu0 %v3754
    %3772 = vmatprep.subr.mxu0 0.0
    %3773 = vmatpush1.msra.mxu0 0.0
    %3774 = vmatprep.subr.mxu0 0.0
    %3775 = vmatpush1.msra.mxu0 0.0
    %3776 = vmatprep.subr.mxu0 0.0
    %3777 = vmatpush1.msra.mxu0 0.0
    %3778 = vmatprep.subr.mxu0 0.0
    %3779 = vmatpush1.msra.mxu0 0.0
    %3780 = vmatprep.subr.mxu0 0.0
    %3781 = vmatpush1.msra.mxu0 0.0
    %3782 = vmatprep.subr.mxu0 0.0
    %3783 = vmatpush1.msra.mxu0 0.0
    %3784 = vmatprep.subr.mxu0 0.0
    %3785 = vmatpush1.msra.mxu0 0.0
    %3786 = vmatprep.subr.mxu0 0.0
    %3787 = vmatpush1.msra.mxu0 0.0
    %3788 = vmatprep.subr.mxu0 0.0
    %3789 = vmatpush1.msra.mxu0 0.0
    %3790 = vmatprep.subr.mxu0 0.0
    %3791 = vmatpush1.msra.mxu0 0.0
    %3792 = vmatprep.subr.mxu0 0.0
    %3793 = vmatpush1.msra.mxu0 0.0
    %3794 = vmatprep.subr.mxu0 0.0
    %3795 = vmatpush1.msra.mxu0 0.0
    %3796 = vmatprep.subr.mxu0 0.0
    %3797 = vmatpush1.msra.mxu0 0.0
    %3798 = vmatprep.subr.mxu0 0.0
    %3799 = vmatpush1.msra.mxu0 0.0
    %3800 = vmatprep.subr.mxu0 0.0
    %3801 = vmatpush1.msra.mxu0 0.0
    %3802 = vmatprep.subr.mxu0 0.0
    %3803 = vmatpush1.msra.mxu0 0.0
    %3804 = vmatprep.subr.mxu0 0.0
    %3805 = vmatpush1.msra.mxu0 0.0
    %3806 = vmatprep.subr.mxu0 0.0
    %3807 = vmatpush1.msra.mxu0 0.0
    %3808 = vmatprep.subr.mxu0 0.0
    %3809 = vmatpush1.msra.mxu0 0.0
    %3810 = vmatprep.subr.mxu0 0.0
    %3811 = vmatpush1.msra.mxu0 0.0
    %3812 = vmatprep.subr.mxu0 0.0
    %3813 = vmatpush1.msra.mxu0 0.0
    %3814 = vmatprep.subr.mxu0 0.0
    %3815 = vmatpush1.msra.mxu0 0.0
    %3816 = vmatprep.subr.mxu0 0.0
    %3817 = vmatpush1.msra.mxu0 0.0
    %3818 = vmatprep.subr.mxu0 0.0
    %3819 = vmatpush1.msra.mxu0 0.0
    %3820 = vmatprep.subr.mxu0 0.0
    %3821 = vmatpush1.msra.mxu0 0.0
    %3822 = vmatprep.subr.mxu0 0.0
    %3823 = vmatpush1.msra.mxu0 0.0
    %3824 = vmatprep.subr.mxu0 0.0
    %3825 = vmatpush1.msra.mxu0 0.0
    %3826 = vmatprep.subr.mxu0 0.0
    %3827 = vmatpush1.msra.mxu0 0.0
    %3828 = vmatprep.subr.mxu0 0.0
    %3829 = vmatpush1.msra.mxu0 0.0
    %3830 = vmatprep.subr.mxu0 0.0
    %3831 = vmatpush1.msra.mxu0 0.0
    %3832 = vmatprep.subr.mxu0 0.0
    %3833 = vmatpush1.msra.mxu0 0.0
    %3834 = vmatprep.mubr.f32.mxu0 0.0
    %3835 = vmatmul.mubr.f32.gmra.mrb[0].mxu0 %v3768
    %v3836 = vpop.f32.mrb[0].mxu0
    %v3837 = vadd.f32 %v3765, %v3836
    %v3838 = vpop.f32.mrb[0].mxu0
    %v3839 = vadd.f32 %v3765, %v3838
    %3840 = vdwg.mxu0
    %3841 = vmatprep.subr.mxu0 %v3757
    %3842 = vmatpush1.msra.mxu0 %v3756
    %3843 = vmatprep.subr.mxu0 0.0
    %3844 = vmatpush1.msra.mxu0 0.0
    %3845 = vmatprep.subr.mxu0 0.0
    %3846 = vmatpush1.msra.mxu0 0.0
    %3847 = vmatprep.subr.mxu0 0.0
    %3848 = vmatpush1.msra.mxu0 0.0
    %3849 = vmatprep.subr.mxu0 0.0
    %3850 = vmatpush1.msra.mxu0 0.0
    %3851 = vmatprep.subr.mxu0 0.0
    %3852 = vmatpush1.msra.mxu0 0.0
    %3853 = vmatprep.subr.mxu0 0.0
    %3854 = vmatpush1.msra.mxu0 0.0
    %3855 = vmatprep.subr.mxu0 0.0
    %3856 = vmatpush1.msra.mxu0 0.0
    %3857 = vmatprep.subr.mxu0 0.0
    %3858 = vmatpush1.msra.mxu0 0.0
    %3859 = vmatprep.subr.mxu0 0.0
    %3860 = vmatpush1.msra.mxu0 0.0
    %3861 = vmatprep.subr.mxu0 0.0
    %3862 = vmatpush1.msra.mxu0 0.0
    %3863 = vmatprep.subr.mxu0 0.0
    %3864 = vmatpush1.msra.mxu0 0.0
    %3865 = vmatprep.subr.mxu0 0.0
    %3866 = vmatpush1.msra.mxu0 0.0
    %3867 = vmatprep.subr.mxu0 0.0
    %3868 = vmatpush1.msra.mxu0 0.0
    %3869 = vmatprep.subr.mxu0 0.0
    %3870 = vmatpush1.msra.mxu0 0.0
    %3871 = vmatprep.subr.mxu0 0.0
    %3872 = vmatpush1.msra.mxu0 0.0
    %3873 = vmatprep.subr.mxu0 0.0
    %3874 = vmatpush1.msra.mxu0 0.0
    %3875 = vmatprep.subr.mxu0 0.0
    %3876 = vmatpush1.msra.mxu0 0.0
    %3877 = vmatprep.subr.mxu0 0.0
    %3878 = vmatpush1.msra.mxu0 0.0
    %3879 = vmatprep.subr.mxu0 0.0
    %3880 = vmatpush1.msra.mxu0 0.0
    %3881 = vmatprep.subr.mxu0 0.0
    %3882 = vmatpush1.msra.mxu0 0.0
    %3883 = vmatprep.subr.mxu0 0.0
    %3884 = vmatpush1.msra.mxu0 0.0
    %3885 = vmatprep.subr.mxu0 0.0
    %3886 = vmatpush1.msra.mxu0 0.0
    %3887 = vmatprep.subr.mxu0 0.0
    %3888 = vmatpush1.msra.mxu0 0.0
    %3889 = vmatprep.subr.mxu0 0.0
    %3890 = vmatpush1.msra.mxu0 0.0
    %3891 = vmatprep.subr.mxu0 0.0
    %3892 = vmatpush1.msra.mxu0 0.0
    %3893 = vmatprep.subr.mxu0 0.0
    %3894 = vmatpush1.msra.mxu0 0.0
    %3895 = vmatprep.subr.mxu0 0.0
    %3896 = vmatpush1.msra.mxu0 0.0
    %3897 = vmatprep.subr.mxu0 0.0
    %3898 = vmatpush1.msra.mxu0 0.0
    %3899 = vmatprep.subr.mxu0 0.0
    %3900 = vmatpush1.msra.mxu0 0.0
    %3901 = vmatprep.subr.mxu0 0.0
    %3902 = vmatpush1.msra.mxu0 0.0
    %3903 = vmatprep.subr.mxu0 0.0
    %3904 = vmatpush1.msra.mxu0 0.0
    %3905 = vmatprep.mubr.f32.mxu0 0.0
    %3906 = vmatmul.mubr.f32.gmra.mrb[0].mxu0 %v3768
    %v3907 = vpop.f32.mrb[0].mxu0
    %v3908 = vadd.f32 %v3765, %v3907
    %v3909 = vpop.f32.mrb[0].mxu0
    %v3910 = vadd.f32 %v3765, %v3909
    %3911 = vdwg.mxu0
    %v3912 = vadd.f32 %v3540, %v3837
    %v3913 = vadd.f32 %v3541, %v3839
    %v3914 = vadd.f32 %v3542, %v3908
    %v3915 = vadd.f32 %v3543, %v3910
    %3916 = vrot.lane.b32.xlu0 %v3912, 4
    %v3917 = vpop.permute.xlu0 %3916
    %3918 = vrot.lane.b32.xlu0 %v3913, 4
    %v3919 = vpop.permute.xlu0 %3918
    %3920 = vrot.lane.b32.xlu0 %v3914, 4
    %v3921 = vpop.permute.xlu0 %3920
    %3922 = vrot.lane.b32.xlu0 %v3915, 4
    %v3923 = vpop.permute.xlu0 %3922
    %v3924 = vsel %vm1052, %v3921, %v3923
    %v3925 = vsel %vm1052, %v3919, %v3921
    %v3926 = vsel %vm1052, %v3917, %v3919
    %v3927 = vsel %vm1052, %v3923, %v3917
    %v3928 = vsel %vm1061, %v3927, 0.0
    %v3929 = vsel %vm1062, %v3926, 0.0
    %v3930 = vsel %vm1063, %v3925, 0.0
    %v3931 = vsel %vm1064, %v3924, 0.0
    %3932 = vrot.lane.b32.xlu0 %v3912, 124
    %v3933 = vpop.permute.xlu0 %3932
    %3934 = vrot.lane.b32.xlu0 %v3913, 124
    %v3935 = vpop.permute.xlu0 %3934
    %3936 = vrot.lane.b32.xlu0 %v3914, 124
    %v3937 = vpop.permute.xlu0 %3936
    %3938 = vrot.lane.b32.xlu0 %v3915, 124
    %v3939 = vpop.permute.xlu0 %3938
    %v3940 = vsel %vm1077, %v3937, %v3939
    %v3941 = vsel %vm1077, %v3935, %v3937
    %v3942 = vsel %vm1077, %v3933, %v3935
    %v3943 = vsel %vm1077, %v3939, %v3933
    %v3944 = vsel %vm1086, %v3942, 0.0
    %v3945 = vsel %vm1087, %v3941, 0.0
    %v3946 = vsel %vm1088, %v3940, 0.0
    %v3947 = vsel %vm1089, %v3943, 0.0
    %3948 = vst [vmem:[#allocation2] sm:$0xff] %v3928
    %3949 = vst [vmem:[#allocation2 + $0x8] sm:$0xff] %v3929
    %3950 = vst [vmem:[#allocation2 + $0x10] sm:$0xff] %v3930
    %3951 = vst [vmem:[#allocation2 + $0x18] sm:$0xff] %v3931
    %3952 = vst [vmem:[#allocation2 + $0x20] sm:$0xff] %v3912
    %3953 = vst [vmem:[#allocation2 + $0x28] sm:$0xff] %v3913
    %3954 = vst [vmem:[#allocation2 + $0x30] sm:$0xff] %v3914
    %3955 = vst [vmem:[#allocation2 + $0x38] sm:$0xff] %v3915
    %3956 = vst [vmem:[#allocation2 + $0x40] sm:$0xff] %v3944
    %3957 = vst [vmem:[#allocation2 + $0x48] sm:$0xff] %v3945
    %3958 = vst [vmem:[#allocation2 + $0x50] sm:$0xff] %v3946
    %3959 = vst [vmem:[#allocation2 + $0x58] sm:$0xff] %v3947
    %s3960 = scalar_lea.vmem %s3, 64
    %v3961 = vld [vmem:[%s3960] sm:$0xff]
    %v3962 = vld [vmem:[#allocation2] sm:$0xff]
    %v3963 = vld [vmem:[#allocation2 + $0x8] sm:$0xff]
    %v3964 = vld [vmem:[#allocation2 + $0x10] sm:$0xff]
    %v3965 = vld [vmem:[#allocation2 + $0x18] sm:$0xff]
    %v3966 = vld [vmem:[#allocation2 + $0x20] sm:$0xff]
    %v3967 = vld [vmem:[#allocation2 + $0x28] sm:$0xff]
    %v3968 = vld [vmem:[#allocation2 + $0x30] sm:$0xff]
    %v3969 = vld [vmem:[#allocation2 + $0x38] sm:$0xff]
    %v3970 = vld [vmem:[#allocation2 + $0x40] sm:$0xff]
    %v3971 = vld [vmem:[#allocation2 + $0x48] sm:$0xff]
    %v3972 = vld [vmem:[#allocation2 + $0x50] sm:$0xff]
    %v3973 = vld [vmem:[#allocation2 + $0x58] sm:$0xff]
    %s3974 = scalar_lea.vmem %s4, 64
    %v3975 = vld [vmem:[%s3974] sm:$0xff]
    %3977 = vset.pattern.permute.xlu0 0
    %3978 = vperm.xlu0 %3977, %v3975
    %v3979 = vpop.permute.xlu0 %3978
    %v3982 = vsel %vm348, %v3961, 0
    %3984 = vmatprep.subr.mxu0 %v3963
    %3985 = vmatpush1.msra.mxu0 %v3962
    %3986 = vmatprep.subr.mxu0 %v3967
    %3987 = vmatpush1.msra.mxu0 %v3966
    %3988 = vmatprep.subr.mxu0 %v3971
    %3989 = vmatpush1.msra.mxu0 %v3970
    %3990 = vmatprep.subr.mxu0 0.0
    %3991 = vmatpush1.msra.mxu0 0.0
    %3992 = vmatprep.subr.mxu0 0.0
    %3993 = vmatpush1.msra.mxu0 0.0
    %3994 = vmatprep.subr.mxu0 0.0
    %3995 = vmatpush1.msra.mxu0 0.0
    %3996 = vmatprep.subr.mxu0 0.0
    %3997 = vmatpush1.msra.mxu0 0.0
    %3998 = vmatprep.subr.mxu0 0.0
    %3999 = vmatpush1.msra.mxu0 0.0
    %4000 = vmatprep.subr.mxu0 0.0
    %4001 = vmatpush1.msra.mxu0 0.0
    %4002 = vmatprep.subr.mxu0 0.0
    %4003 = vmatpush1.msra.mxu0 0.0
    %4004 = vmatprep.subr.mxu0 0.0
    %4005 = vmatpush1.msra.mxu0 0.0
    %4006 = vmatprep.subr.mxu0 0.0
    %4007 = vmatpush1.msra.mxu0 0.0
    %4008 = vmatprep.subr.mxu0 0.0
    %4009 = vmatpush1.msra.mxu0 0.0
    %4010 = vmatprep.subr.mxu0 0.0
    %4011 = vmatpush1.msra.mxu0 0.0
    %4012 = vmatprep.subr.mxu0 0.0
    %4013 = vmatpush1.msra.mxu0 0.0
    %4014 = vmatprep.subr.mxu0 0.0
    %4015 = vmatpush1.msra.mxu0 0.0
    %4016 = vmatprep.subr.mxu0 0.0
    %4017 = vmatpush1.msra.mxu0 0.0
    %4018 = vmatprep.subr.mxu0 0.0
    %4019 = vmatpush1.msra.mxu0 0.0
    %4020 = vmatprep.subr.mxu0 0.0
    %4021 = vmatpush1.msra.mxu0 0.0
    %4022 = vmatprep.subr.mxu0 0.0
    %4023 = vmatpush1.msra.mxu0 0.0
    %4024 = vmatprep.subr.mxu0 0.0
    %4025 = vmatpush1.msra.mxu0 0.0
    %4026 = vmatprep.subr.mxu0 0.0
    %4027 = vmatpush1.msra.mxu0 0.0
    %4028 = vmatprep.subr.mxu0 0.0
    %4029 = vmatpush1.msra.mxu0 0.0
    %4030 = vmatprep.subr.mxu0 0.0
    %4031 = vmatpush1.msra.mxu0 0.0
    %4032 = vmatprep.subr.mxu0 0.0
    %4033 = vmatpush1.msra.mxu0 0.0
    %4034 = vmatprep.subr.mxu0 0.0
    %4035 = vmatpush1.msra.mxu0 0.0
    %4036 = vmatprep.subr.mxu0 0.0
    %4037 = vmatpush1.msra.mxu0 0.0
    %4038 = vmatprep.subr.mxu0 0.0
    %4039 = vmatpush1.msra.mxu0 0.0
    %4040 = vmatprep.subr.mxu0 0.0
    %4041 = vmatpush1.msra.mxu0 0.0
    %4042 = vmatprep.subr.mxu0 0.0
    %4043 = vmatpush1.msra.mxu0 0.0
    %4044 = vmatprep.subr.mxu0 0.0
    %4045 = vmatpush1.msra.mxu0 0.0
    %4046 = vmatprep.subr.mxu0 0.0
    %4047 = vmatpush1.msra.mxu0 0.0
    %4048 = vmatprep.mubr.f32.mxu0 0.0
    %4049 = vmatmul.mubr.f32.gmra.mrb[0].mxu0 %v3982
    %v4050 = vpop.f32.mrb[0].mxu0
    %v4051 = vadd.f32 %v3979, %v4050
    %v4052 = vpop.f32.mrb[0].mxu0
    %v4053 = vadd.f32 %v3979, %v4052
    %4054 = vdwg.mxu0
    %4055 = vmatprep.subr.mxu0 %v3965
    %4056 = vmatpush1.msra.mxu0 %v3964
    %4057 = vmatprep.subr.mxu0 %v3969
    %4058 = vmatpush1.msra.mxu0 %v3968
    %4059 = vmatprep.subr.mxu0 %v3973
    %4060 = vmatpush1.msra.mxu0 %v3972
    %4061 = vmatprep.subr.mxu0 0.0
    %4062 = vmatpush1.msra.mxu0 0.0
    %4063 = vmatprep.subr.mxu0 0.0
    %4064 = vmatpush1.msra.mxu0 0.0
    %4065 = vmatprep.subr.mxu0 0.0
    %4066 = vmatpush1.msra.mxu0 0.0
    %4067 = vmatprep.subr.mxu0 0.0
    %4068 = vmatpush1.msra.mxu0 0.0
    %4069 = vmatprep.subr.mxu0 0.0
    %4070 = vmatpush1.msra.mxu0 0.0
    %4071 = vmatprep.subr.mxu0 0.0
    %4072 = vmatpush1.msra.mxu0 0.0
    %4073 = vmatprep.subr.mxu0 0.0
    %4074 = vmatpush1.msra.mxu0 0.0
    %4075 = vmatprep.subr.mxu0 0.0
    %4076 = vmatpush1.msra.mxu0 0.0
    %4077 = vmatprep.subr.mxu0 0.0
    %4078 = vmatpush1.msra.mxu0 0.0
    %4079 = vmatprep.subr.mxu0 0.0
    %4080 = vmatpush1.msra.mxu0 0.0
    %4081 = vmatprep.subr.mxu0 0.0
    %4082 = vmatpush1.msra.mxu0 0.0
    %4083 = vmatprep.subr.mxu0 0.0
    %4084 = vmatpush1.msra.mxu0 0.0
    %4085 = vmatprep.subr.mxu0 0.0
    %4086 = vmatpush1.msra.mxu0 0.0
    %4087 = vmatprep.subr.mxu0 0.0
    %4088 = vmatpush1.msra.mxu0 0.0
    %4089 = vmatprep.subr.mxu0 0.0
    %4090 = vmatpush1.msra.mxu0 0.0
    %4091 = vmatprep.subr.mxu0 0.0
    %4092 = vmatpush1.msra.mxu0 0.0
    %4093 = vmatprep.subr.mxu0 0.0
    %4094 = vmatpush1.msra.mxu0 0.0
    %4095 = vmatprep.subr.mxu0 0.0
    %4096 = vmatpush1.msra.mxu0 0.0
    %4097 = vmatprep.subr.mxu0 0.0
    %4098 = vmatpush1.msra.mxu0 0.0
    %4099 = vmatprep.subr.mxu0 0.0
    %4100 = vmatpush1.msra.mxu0 0.0
    %4101 = vmatprep.subr.mxu0 0.0
    %4102 = vmatpush1.msra.mxu0 0.0
    %4103 = vmatprep.subr.mxu0 0.0
    %4104 = vmatpush1.msra.mxu0 0.0
    %4105 = vmatprep.subr.mxu0 0.0
    %4106 = vmatpush1.msra.mxu0 0.0
    %4107 = vmatprep.subr.mxu0 0.0
    %4108 = vmatpush1.msra.mxu0 0.0
    %4109 = vmatprep.subr.mxu0 0.0
    %4110 = vmatpush1.msra.mxu0 0.0
    %4111 = vmatprep.subr.mxu0 0.0
    %4112 = vmatpush1.msra.mxu0 0.0
    %4113 = vmatprep.subr.mxu0 0.0
    %4114 = vmatpush1.msra.mxu0 0.0
    %4115 = vmatprep.subr.mxu0 0.0
    %4116 = vmatpush1.msra.mxu0 0.0
    %4117 = vmatprep.subr.mxu0 0.0
    %4118 = vmatpush1.msra.mxu0 0.0
    %4119 = vmatprep.mubr.f32.mxu0 0.0
    %4120 = vmatmul.mubr.f32.gmra.mrb[0].mxu0 %v3982
    %v4121 = vpop.f32.mrb[0].mxu0
    %v4122 = vadd.f32 %v3979, %v4121
    %v4123 = vpop.f32.mrb[0].mxu0
    %v4124 = vadd.f32 %v3979, %v4123
    %4125 = vdwg.mxu0
    %v4126 = vmax.f32 %v4051, 0.0
    %v4127 = vmax.f32 %v4053, 0.0
    %v4128 = vmax.f32 %v4122, 0.0
    %v4129 = vmax.f32 %v4124, 0.0
    %s4130 = scalar_lea.vmem %s5, 64
    %v4131 = vld [vmem:[%s4130] sm:$0xff]
    %s4132 = scalar_lea.vmem %s6, 64
    %v4133 = vld [vmem:[%s4132] sm:$0xff]
    %4135 = vset.pattern.permute.xlu0 0
    %4136 = vperm.xlu0 %4135, %v4133
    %v4137 = vpop.permute.xlu0 %4136
    %v4140 = vsel %vm121, %v4131, 0
    %4142 = vmatprep.subr.mxu0 %v4127
    %4143 = vmatpush1.msra.mxu0 %v4126
    %4144 = vmatprep.subr.mxu0 0.0
    %4145 = vmatpush1.msra.mxu0 0.0
    %4146 = vmatprep.subr.mxu0 0.0
    %4147 = vmatpush1.msra.mxu0 0.0
    %4148 = vmatprep.subr.mxu0 0.0
    %4149 = vmatpush1.msra.mxu0 0.0
    %4150 = vmatprep.subr.mxu0 0.0
    %4151 = vmatpush1.msra.mxu0 0.0
    %4152 = vmatprep.subr.mxu0 0.0
    %4153 = vmatpush1.msra.mxu0 0.0
    %4154 = vmatprep.subr.mxu0 0.0
    %4155 = vmatpush1.msra.mxu0 0.0
    %4156 = vmatprep.subr.mxu0 0.0
    %4157 = vmatpush1.msra.mxu0 0.0
    %4158 = vmatprep.subr.mxu0 0.0
    %4159 = vmatpush1.msra.mxu0 0.0
    %4160 = vmatprep.subr.mxu0 0.0
    %4161 = vmatpush1.msra.mxu0 0.0
    %4162 = vmatprep.subr.mxu0 0.0
    %4163 = vmatpush1.msra.mxu0 0.0
    %4164 = vmatprep.subr.mxu0 0.0
    %4165 = vmatpush1.msra.mxu0 0.0
    %4166 = vmatprep.subr.mxu0 0.0
    %4167 = vmatpush1.msra.mxu0 0.0
    %4168 = vmatprep.subr.mxu0 0.0
    %4169 = vmatpush1.msra.mxu0 0.0
    %4170 = vmatprep.subr.mxu0 0.0
    %4171 = vmatpush1.msra.mxu0 0.0
    %4172 = vmatprep.subr.mxu0 0.0
    %4173 = vmatpush1.msra.mxu0 0.0
    %4174 = vmatprep.subr.mxu0 0.0
    %4175 = vmatpush1.msra.mxu0 0.0
    %4176 = vmatprep.subr.mxu0 0.0
    %4177 = vmatpush1.msra.mxu0 0.0
    %4178 = vmatprep.subr.mxu0 0.0
    %4179 = vmatpush1.msra.mxu0 0.0
    %4180 = vmatprep.subr.mxu0 0.0
    %4181 = vmatpush1.msra.mxu0 0.0
    %4182 = vmatprep.subr.mxu0 0.0
    %4183 = vmatpush1.msra.mxu0 0.0
    %4184 = vmatprep.subr.mxu0 0.0
    %4185 = vmatpush1.msra.mxu0 0.0
    %4186 = vmatprep.subr.mxu0 0.0
    %4187 = vmatpush1.msra.mxu0 0.0
    %4188 = vmatprep.subr.mxu0 0.0
    %4189 = vmatpush1.msra.mxu0 0.0
    %4190 = vmatprep.subr.mxu0 0.0
    %4191 = vmatpush1.msra.mxu0 0.0
    %4192 = vmatprep.subr.mxu0 0.0
    %4193 = vmatpush1.msra.mxu0 0.0
    %4194 = vmatprep.subr.mxu0 0.0
    %4195 = vmatpush1.msra.mxu0 0.0
    %4196 = vmatprep.subr.mxu0 0.0
    %4197 = vmatpush1.msra.mxu0 0.0
    %4198 = vmatprep.subr.mxu0 0.0
    %4199 = vmatpush1.msra.mxu0 0.0
    %4200 = vmatprep.subr.mxu0 0.0
    %4201 = vmatpush1.msra.mxu0 0.0
    %4202 = vmatprep.subr.mxu0 0.0
    %4203 = vmatpush1.msra.mxu0 0.0
    %4204 = vmatprep.subr.mxu0 0.0
    %4205 = vmatpush1.msra.mxu0 0.0
    %4206 = vmatprep.mubr.f32.mxu0 0.0
    %4207 = vmatmul.mubr.f32.gmra.mrb[0].mxu0 %v4140
    %v4208 = vpop.f32.mrb[0].mxu0
    %v4209 = vadd.f32 %v4137, %v4208
    %v4210 = vpop.f32.mrb[0].mxu0
    %v4211 = vadd.f32 %v4137, %v4210
    %4212 = vdwg.mxu0
    %4213 = vmatprep.subr.mxu0 %v4129
    %4214 = vmatpush1.msra.mxu0 %v4128
    %4215 = vmatprep.subr.mxu0 0.0
    %4216 = vmatpush1.msra.mxu0 0.0
    %4217 = vmatprep.subr.mxu0 0.0
    %4218 = vmatpush1.msra.mxu0 0.0
    %4219 = vmatprep.subr.mxu0 0.0
    %4220 = vmatpush1.msra.mxu0 0.0
    %4221 = vmatprep.subr.mxu0 0.0
    %4222 = vmatpush1.msra.mxu0 0.0
    %4223 = vmatprep.subr.mxu0 0.0
    %4224 = vmatpush1.msra.mxu0 0.0
    %4225 = vmatprep.subr.mxu0 0.0
    %4226 = vmatpush1.msra.mxu0 0.0
    %4227 = vmatprep.subr.mxu0 0.0
    %4228 = vmatpush1.msra.mxu0 0.0
    %4229 = vmatprep.subr.mxu0 0.0
    %4230 = vmatpush1.msra.mxu0 0.0
    %4231 = vmatprep.subr.mxu0 0.0
    %4232 = vmatpush1.msra.mxu0 0.0
    %4233 = vmatprep.subr.mxu0 0.0
    %4234 = vmatpush1.msra.mxu0 0.0
    %4235 = vmatprep.subr.mxu0 0.0
    %4236 = vmatpush1.msra.mxu0 0.0
    %4237 = vmatprep.subr.mxu0 0.0
    %4238 = vmatpush1.msra.mxu0 0.0
    %4239 = vmatprep.subr.mxu0 0.0
    %4240 = vmatpush1.msra.mxu0 0.0
    %4241 = vmatprep.subr.mxu0 0.0
    %4242 = vmatpush1.msra.mxu0 0.0
    %4243 = vmatprep.subr.mxu0 0.0
    %4244 = vmatpush1.msra.mxu0 0.0
    %4245 = vmatprep.subr.mxu0 0.0
    %4246 = vmatpush1.msra.mxu0 0.0
    %4247 = vmatprep.subr.mxu0 0.0
    %4248 = vmatpush1.msra.mxu0 0.0
    %4249 = vmatprep.subr.mxu0 0.0
    %4250 = vmatpush1.msra.mxu0 0.0
    %4251 = vmatprep.subr.mxu0 0.0
    %4252 = vmatpush1.msra.mxu0 0.0
    %4253 = vmatprep.subr.mxu0 0.0
    %4254 = vmatpush1.msra.mxu0 0.0
    %4255 = vmatprep.subr.mxu0 0.0
    %4256 = vmatpush1.msra.mxu0 0.0
    %4257 = vmatprep.subr.mxu0 0.0
    %4258 = vmatpush1.msra.mxu0 0.0
    %4259 = vmatprep.subr.mxu0 0.0
    %4260 = vmatpush1.msra.mxu0 0.0
    %4261 = vmatprep.subr.mxu0 0.0
    %4262 = vmatpush1.msra.mxu0 0.0
    %4263 = vmatprep.subr.mxu0 0.0
    %4264 = vmatpush1.msra.mxu0 0.0
    %4265 = vmatprep.subr.mxu0 0.0
    %4266 = vmatpush1.msra.mxu0 0.0
    %4267 = vmatprep.subr.mxu0 0.0
    %4268 = vmatpush1.msra.mxu0 0.0
    %4269 = vmatprep.subr.mxu0 0.0
    %4270 = vmatpush1.msra.mxu0 0.0
    %4271 = vmatprep.subr.mxu0 0.0
    %4272 = vmatpush1.msra.mxu0 0.0
    %4273 = vmatprep.subr.mxu0 0.0
    %4274 = vmatpush1.msra.mxu0 0.0
    %4275 = vmatprep.subr.mxu0 0.0
    %4276 = vmatpush1.msra.mxu0 0.0
    %4277 = vmatprep.mubr.f32.mxu0 0.0
    %4278 = vmatmul.mubr.f32.gmra.mrb[0].mxu0 %v4140
    %v4279 = vpop.f32.mrb[0].mxu0
    %v4280 = vadd.f32 %v4137, %v4279
    %v4281 = vpop.f32.mrb[0].mxu0
    %v4282 = vadd.f32 %v4137, %v4281
    %4283 = vdwg.mxu0
    %v4284 = vadd.f32 %v3912, %v4209
    %v4285 = vadd.f32 %v3913, %v4211
    %v4286 = vadd.f32 %v3914, %v4280
    %v4287 = vadd.f32 %v3915, %v4282
    %s4288 = scalar_lea.vmem %s7, 16
    %v4289 = vld [vmem:[%s4288] sm:$0xff]
    %s4290 = scalar_lea.vmem %s8, 16
    %v4291 = vld [vmem:[%s4290] sm:$0xff]
    %4293 = vset.pattern.permute.xlu0 0
    %4294 = vperm.xlu0 %4293, %v4291
    %v4295 = vpop.permute.xlu0 %4294
    %v4298 = vsel %vm121, %v4289, 0
    %4300 = vmatprep.subr.mxu0 %v4285
    %4301 = vmatpush1.msra.mxu0 %v4284
    %4302 = vmatprep.subr.mxu0 0.0
    %4303 = vmatpush1.msra.mxu0 0.0
    %4304 = vmatprep.subr.mxu0 0.0
    %4305 = vmatpush1.msra.mxu0 0.0
    %4306 = vmatprep.subr.mxu0 0.0
    %4307 = vmatpush1.msra.mxu0 0.0
    %4308 = vmatprep.subr.mxu0 0.0
    %4309 = vmatpush1.msra.mxu0 0.0
    %4310 = vmatprep.subr.mxu0 0.0
    %4311 = vmatpush1.msra.mxu0 0.0
    %4312 = vmatprep.subr.mxu0 0.0
    %4313 = vmatpush1.msra.mxu0 0.0
    %4314 = vmatprep.subr.mxu0 0.0
    %4315 = vmatpush1.msra.mxu0 0.0
    %4316 = vmatprep.subr.mxu0 0.0
    %4317 = vmatpush1.msra.mxu0 0.0
    %4318 = vmatprep.subr.mxu0 0.0
    %4319 = vmatpush1.msra.mxu0 0.0
    %4320 = vmatprep.subr.mxu0 0.0
    %4321 = vmatpush1.msra.mxu0 0.0
    %4322 = vmatprep.subr.mxu0 0.0
    %4323 = vmatpush1.msra.mxu0 0.0
    %4324 = vmatprep.subr.mxu0 0.0
    %4325 = vmatpush1.msra.mxu0 0.0
    %4326 = vmatprep.subr.mxu0 0.0
    %4327 = vmatpush1.msra.mxu0 0.0
    %4328 = vmatprep.subr.mxu0 0.0
    %4329 = vmatpush1.msra.mxu0 0.0
    %4330 = vmatprep.subr.mxu0 0.0
    %4331 = vmatpush1.msra.mxu0 0.0
    %4332 = vmatprep.subr.mxu0 0.0
    %4333 = vmatpush1.msra.mxu0 0.0
    %4334 = vmatprep.subr.mxu0 0.0
    %4335 = vmatpush1.msra.mxu0 0.0
    %4336 = vmatprep.subr.mxu0 0.0
    %4337 = vmatpush1.msra.mxu0 0.0
    %4338 = vmatprep.subr.mxu0 0.0
    %4339 = vmatpush1.msra.mxu0 0.0
    %4340 = vmatprep.subr.mxu0 0.0
    %4341 = vmatpush1.msra.mxu0 0.0
    %4342 = vmatprep.subr.mxu0 0.0
    %4343 = vmatpush1.msra.mxu0 0.0
    %4344 = vmatprep.subr.mxu0 0.0
    %4345 = vmatpush1.msra.mxu0 0.0
    %4346 = vmatprep.subr.mxu0 0.0
    %4347 = vmatpush1.msra.mxu0 0.0
    %4348 = vmatprep.subr.mxu0 0.0
    %4349 = vmatpush1.msra.mxu0 0.0
    %4350 = vmatprep.subr.mxu0 0.0
    %4351 = vmatpush1.msra.mxu0 0.0
    %4352 = vmatprep.subr.mxu0 0.0
    %4353 = vmatpush1.msra.mxu0 0.0
    %4354 = vmatprep.subr.mxu0 0.0
    %4355 = vmatpush1.msra.mxu0 0.0
    %4356 = vmatprep.subr.mxu0 0.0
    %4357 = vmatpush1.msra.mxu0 0.0
    %4358 = vmatprep.subr.mxu0 0.0
    %4359 = vmatpush1.msra.mxu0 0.0
    %4360 = vmatprep.subr.mxu0 0.0
    %4361 = vmatpush1.msra.mxu0 0.0
    %4362 = vmatprep.subr.mxu0 0.0
    %4363 = vmatpush1.msra.mxu0 0.0
    %4364 = vmatprep.mubr.f32.mxu0 0.0
    %4365 = vmatmul.mubr.f32.gmra.mrb[0].mxu0 %v4298
    %v4366 = vpop.f32.mrb[0].mxu0
    %v4367 = vadd.f32 %v4295, %v4366
    %v4368 = vpop.f32.mrb[0].mxu0
    %v4369 = vadd.f32 %v4295, %v4368
    %4370 = vdwg.mxu0
    %4371 = vmatprep.subr.mxu0 %v4287
    %4372 = vmatpush1.msra.mxu0 %v4286
    %4373 = vmatprep.subr.mxu0 0.0
    %4374 = vmatpush1.msra.mxu0 0.0
    %4375 = vmatprep.subr.mxu0 0.0
    %4376 = vmatpush1.msra.mxu0 0.0
    %4377 = vmatprep.subr.mxu0 0.0
    %4378 = vmatpush1.msra.mxu0 0.0
    %4379 = vmatprep.subr.mxu0 0.0
    %4380 = vmatpush1.msra.mxu0 0.0
    %4381 = vmatprep.subr.mxu0 0.0
    %4382 = vmatpush1.msra.mxu0 0.0
    %4383 = vmatprep.subr.mxu0 0.0
    %4384 = vmatpush1.msra.mxu0 0.0
    %4385 = vmatprep.subr.mxu0 0.0
    %4386 = vmatpush1.msra.mxu0 0.0
    %4387 = vmatprep.subr.mxu0 0.0
    %4388 = vmatpush1.msra.mxu0 0.0
    %4389 = vmatprep.subr.mxu0 0.0
    %4390 = vmatpush1.msra.mxu0 0.0
    %4391 = vmatprep.subr.mxu0 0.0
    %4392 = vmatpush1.msra.mxu0 0.0
    %4393 = vmatprep.subr.mxu0 0.0
    %4394 = vmatpush1.msra.mxu0 0.0
    %4395 = vmatprep.subr.mxu0 0.0
    %4396 = vmatpush1.msra.mxu0 0.0
    %4397 = vmatprep.subr.mxu0 0.0
    %4398 = vmatpush1.msra.mxu0 0.0
    %4399 = vmatprep.subr.mxu0 0.0
    %4400 = vmatpush1.msra.mxu0 0.0
    %4401 = vmatprep.subr.mxu0 0.0
    %4402 = vmatpush1.msra.mxu0 0.0
    %4403 = vmatprep.subr.mxu0 0.0
    %4404 = vmatpush1.msra.mxu0 0.0
    %4405 = vmatprep.subr.mxu0 0.0
    %4406 = vmatpush1.msra.mxu0 0.0
    %4407 = vmatprep.subr.mxu0 0.0
    %4408 = vmatpush1.msra.mxu0 0.0
    %4409 = vmatprep.subr.mxu0 0.0
    %4410 = vmatpush1.msra.mxu0 0.0
    %4411 = vmatprep.subr.mxu0 0.0
    %4412 = vmatpush1.msra.mxu0 0.0
    %4413 = vmatprep.subr.mxu0 0.0
    %4414 = vmatpush1.msra.mxu0 0.0
    %4415 = vmatprep.subr.mxu0 0.0
    %4416 = vmatpush1.msra.mxu0 0.0
    %4417 = vmatprep.subr.mxu0 0.0
    %4418 = vmatpush1.msra.mxu0 0.0
    %4419 = vmatprep.subr.mxu0 0.0
    %4420 = vmatpush1.msra.mxu0 0.0
    %4421 = vmatprep.subr.mxu0 0.0
    %4422 = vmatpush1.msra.mxu0 0.0
    %4423 = vmatprep.subr.mxu0 0.0
    %4424 = vmatpush1.msra.mxu0 0.0
    %4425 = vmatprep.subr.mxu0 0.0
    %4426 = vmatpush1.msra.mxu0 0.0
    %4427 = vmatprep.subr.mxu0 0.0
    %4428 = vmatpush1.msra.mxu0 0.0
    %4429 = vmatprep.subr.mxu0 0.0
    %4430 = vmatpush1.msra.mxu0 0.0
    %4431 = vmatprep.subr.mxu0 0.0
    %4432 = vmatpush1.msra.mxu0 0.0
    %4433 = vmatprep.subr.mxu0 0.0
    %4434 = vmatpush1.msra.mxu0 0.0
    %4435 = vmatprep.mubr.f32.mxu0 0.0
    %4436 = vmatmul.mubr.f32.gmra.mrb[0].mxu0 %v4298
    %v4437 = vpop.f32.mrb[0].mxu0
    %v4438 = vadd.f32 %v4295, %v4437
    %v4439 = vpop.f32.mrb[0].mxu0
    %v4440 = vadd.f32 %v4295, %v4439
    %4441 = vdwg.mxu0
    %4442 = vst [vmem:[#allocation3 + $0x40] sm:$0xff] %v4367
    %4443 = vst [vmem:[#allocation3 + $0x48] sm:$0xff] %v4369
    %4444 = vst [vmem:[#allocation3 + $0x50] sm:$0xff] %v4438
    %4445 = vst [vmem:[#allocation3 + $0x58] sm:$0xff] %v4440
    // Predicated region
    $region38: #{tpu_custom_call.1} parent=1 // pred_check
      _
    $region39: #{tpu_custom_call.1} parent=1 // pred_check_branch
      %4447 = sbr.rel (0) target = $region41
    $region40: #{tpu_custom_call.1} parent=1 // pred_region
      %s4449 = ssub.s32 1536, 1536
      %4450 = vsyncadd [#allocation4], %s4449
      %s4451 = sshll.u32 [#allocation3], 4
      %s4452 = int_to_ptr.vmem [resolvable:$true] %s4451
      %4457 = dma.vmem_to_hbm [thread:$0]  %s4452, 1536, %s9, [#allocation4], 512, 512, 32
    $region41: #{tpu_custom_call.1} parent=1 // pred_fallthru
      _
    // Predicated region
    $region42: #{tpu_custom_call.1} parent=1 // pred_check
      _
    $region43: #{tpu_custom_call.1} parent=1 // pred_check_branch
      %4459 = sbr.rel (0) target = $region45
    $region44: #{tpu_custom_call.1} parent=1 // pred_region
      %4460 = dma.done [#allocation4], 1536
    $region45: #{tpu_custom_call.1} parent=1 // pred_fallthru
      _
    %4461 = vsyncpa [#allocation4], 1

</llo_original>
